<compile_context>
chip_gen: v7x
topology: tpu7x:2x2x1
jax: 0.10.0
libtpu: 0.0.40
codegen_flags: <defaults>
</compile_context>

<pallas_src>
import functools

import jax
import jax.numpy as jnp
from jax.experimental import pallas as pl
from jax.experimental.pallas import tpu as pltpu


# -----------------------------------------------------------------------------
# Fused whole-network Pallas kernel.
# Layout: channel-major [C, B*N] (batch folded into the lane axis); all constants
# are static sub-views of one packed f32 slab.
# -----------------------------------------------------------------------------
def _fused_unet_kernel(xcc_ref, xf_ref, slab_ref, o_ref, *, meta, eps=1e-5):
    f32 = jnp.float32

    def const(name):
        o, r, c = meta[name]                     # static Python ints -> static slice
        return slab_ref[o:o + r, 0:c]

    def linW(name):
        o, r, c = meta[name]                     # block is [Cout, Cin+1] = [W^T | b]
        blk = slab_ref[o:o + r, 0:c]
        return blk[:, : c - 1], blk[:, c - 1:c]  # W^T [Cout,Cin], b [Cout,1]

    def agg(op_name, x):
        # x: [C, B*Nsrc] @ block_diag(A^T): [B*Nsrc, B*Ndst] -> [C, B*Ndst]
        return jnp.dot(x, const(op_name), preferred_element_type=f32)

    def gconv(op_name, x, w_name, relu=True):
        wT, b = linW(w_name)
        y = jnp.dot(wT, agg(op_name, x), preferred_element_type=f32) + b
        return jnp.maximum(y, 0.0) if relu else y

    def gconv_cat(op_name, xa, xb, w_name, relu=True):
        # channel concat == cheap sublane concat; single agg + single full-width weight
        return gconv(op_name, jnp.concatenate([xa, xb], axis=0), w_name, relu)

    def inorm(x, m_name):
        # one-pass instance norm: [x ; x*x] @ segment-averaging matrix gives mean and
        # E[x^2] (already broadcast back over each batch's lanes) in one matmul.
        cdim = x.shape[0]
        mom = jnp.dot(jnp.concatenate([x, x * x], axis=0), const(m_name),
                      preferred_element_type=f32)
        m, ex2 = mom[:cdim], mom[cdim:]
        v = jnp.maximum(ex2 - m * m, 0.0)        # guard cancellation for tiny variance
        return (x - m) * jax.lax.rsqrt(v + eps)

    xcc = inorm(xcc_ref[...], "Mnc")                       # [2,  B*Nc]
    xf = inorm(xf_ref[...], "Mnf")                         # [4,  B*Nf]

    # convN_1: centerFace -> (cat with face feats) -> facePoint -> pointPoint
    h = gconv("cfT", xcc, "c1_cf")                         # [8,  B*Nf]
    h = gconv_cat("fpT", h, xf, "c1_fp")                   # [12, B*Np0]
    conv1 = inorm(gconv("pp0T", h, "c1_pp"), "Mp0")        # [12, B*Np0]

    # convN_2: (pool0 folded into aggregation) -> pp1 x2
    h = gconv("pool0_pp1T", conv1, "c2_1")                 # [12, B*Np1]
    conv2 = inorm(gconv("pp1T", h, "c2_2"), "Mp1")

    # convN_3
    h = gconv("pool1_pp2T", conv2, "c3_1")                 # [12, B*Np2]
    conv3 = inorm(gconv("pp2T", h, "c3_2"), "Mp2")

    # convN_4 (less layers): pool -> pp3 x4 -> unpool
    h = gconv("pool2_pp3T", conv3, "c4_1")                 # [24, B*Np3]
    h = gconv("pp3T", h, "c4_2")
    h = gconv("pp3T", h, "c4_3")
    h = gconv("pp3T", h, "c4_4")
    conv4 = inorm(agg("unpool2T", h), "Mp2")               # [24, B*Np2]

    # convN_7: cat(conv4, conv3) -> pp2 x2 -> unpool
    h = gconv_cat("pp2T", conv4, conv3, "c7_1")            # [24, B*Np2]
    h = gconv("pp2T", h, "c7_2")
    conv7 = inorm(agg("unpool1T", h), "Mp1")               # [24, B*Np1]

    # convN_8: cat(conv7, conv2) -> pp1 x2 -> unpool
    h = gconv_cat("pp1T", conv7, conv2, "c8_1")            # [12, B*Np1]
    h = gconv("pp1T", h, "c8_2")
    conv8 = inorm(agg("unpool0T", h), "Mp0")               # [12, B*Np0]

    # convN_9 (== _ConvBlock9): pointPoint conv on cat(conv8, conv1) -> pointCenter conv
    h = gconv_cat("pp0T", conv8, conv1, "c9_1")            # [12, B*Np0]
    conv9 = gconv("pcT", h, "c9_2")                        # [12, B*Nc]

    # final SelfLoopLayer 12 -> 1 (linear, no activation) — single store of the result
    wT, b = linW("final")
    out = jnp.dot(wT, conv9, preferred_element_type=f32) + b
    o_ref[...] = out.astype(o_ref.dtype)                   # [1, B*Nc]


# -----------------------------------------------------------------------------
# One-time constant preparation (plain JAX):
#   * transpose operators, fold pools into the next conv's aggregation matrix,
#   * fold the batch into block-diagonal kron(I_B, A)^T operators,
#   * build per-level InstanceNorm segment-averaging matrices,
#   * store [W^T | b] per linear layer,
#   * pack EVERYTHING into one contiguous f32 slab (single HBM->VMEM DMA) and
#     return static (row_offset, rows, cols) metadata for in-kernel slicing.
# -----------------------------------------------------------------------------
def prepare_constants(graphs, params, B):
    f32 = jnp.float32

    def bdiag(A):
        return jnp.kron(jnp.eye(B, dtype=f32), jnp.asarray(A, f32))

    def opT(A):
        return bdiag(jnp.asarray(A, f32).T)

    entries = {
        "cfT": opT(graphs["A_centerFace"]),
        "fpT": opT(graphs["A_facePoint"]),
        "pp0T": opT(graphs["A_pp0"]),
        "pool0_pp1T": opT(graphs["A_pp1"] @ graphs["Pool0"]),   # pool folded
        "pp1T": opT(graphs["A_pp1"]),
        "pool1_pp2T": opT(graphs["A_pp2"] @ graphs["Pool1"]),
        "pp2T": opT(graphs["A_pp2"]),
        "pool2_pp3T": opT(graphs["A_pp3"] @ graphs["Pool2"]),
        "pp3T": opT(graphs["A_pp3"]),
        "unpool2T": opT(graphs["Unpool2"]),
        "unpool1T": opT(graphs["Unpool1"]),
        "unpool0T": opT(graphs["Unpool0"]),
        "pcT": opT(graphs["A_pointCenter"]),
    }

    # InstanceNorm segment-averaging matrices (per-batch mean over the lane axis)
    def navg(n):
        return bdiag(jnp.full((n, n), 1.0 / n, f32))

    Nf, Nc = graphs["A_centerFace"].shape
    entries["Mnc"] = navg(Nc)
    entries["Mnf"] = navg(Nf)
    entries["Mp0"] = navg(graphs["A_pp0"].shape[0])
    entries["Mp1"] = navg(graphs["A_pp1"].shape[0])
    entries["Mp2"] = navg(graphs["A_pp2"].shape[0])

    # linear layers: [Cout, Cin+1] blocks = [W^T | b]
    def lw(p):
        wT = jnp.asarray(p["W"], f32).T
        b = jnp.asarray(p["b"], f32).reshape(-1, 1)
        return jnp.concatenate([wT, b], axis=1)

    layer_names = {
        "c1_cf": ("convN_1", "layerCenterFace"),
        "c1_fp": ("convN_1", "layerFacePoint"),
        "c1_pp": ("convN_1", "layerPointPoint"),
        "c2_1": ("convN_2", "layer1"), "c2_2": ("convN_2", "layer2"),
        "c3_1": ("convN_3", "layer1"), "c3_2": ("convN_3", "layer2"),
        "c4_1": ("convN_4", "layer1"), "c4_2": ("convN_4", "layer2"),
        "c4_3": ("convN_4", "layer3"), "c4_4": ("convN_4", "layer4"),
        "c7_1": ("convN_7", "layer1"), "c7_2": ("convN_7", "layer2"),
        "c8_1": ("convN_8", "layer1"), "c8_2": ("convN_8", "layer2"),
        "c9_1": ("convN_9", "layer1"), "c9_2": ("convN_9", "layer2"),
        "final": ("final", "layer1"),
    }
    for name, (blk, lyr) in layer_names.items():
        entries[name] = lw(params[blk][lyr])

    # pack into one slab; each block's row offset is sublane(8)-aligned
    width = max(int(a.shape[1]) for a in entries.values())
    meta, blocks, row = {}, [], 0
    for name, a in entries.items():
        r, c = int(a.shape[0]), int(a.shape[1])
        rp = -(-r // 8) * 8
        blocks.append(jnp.zeros((rp, width), f32).at[:r, :c].set(a))
        meta[name] = (row, r, c)
        row += rp
    slab = jnp.concatenate(blocks, axis=0)
    return slab, meta


# -----------------------------------------------------------------------------
# Forward wrapper: a single pallas_call, single grid step, 3 inputs + 1 output.
# -----------------------------------------------------------------------------
def graph_unet_forward(xCellCenters, xFace, slab, *, meta):
    B, Nc, Ccc = xCellCenters.shape
    Nf, Cf = xFace.shape[1], xFace.shape[2]

    # layout plumbing: channel-major, batch folded into lanes -> [C, B*N]
    xcc = jnp.transpose(xCellCenters, (2, 0, 1)).reshape(Ccc, B * Nc)
    xf = jnp.transpose(xFace, (2, 0, 1)).reshape(Cf, B * Nf)

    kernel = functools.partial(_fused_unet_kernel, meta=meta)

    out2d = pl.pallas_call(
        kernel,
        out_shape=jax.ShapeDtypeStruct((1, B * Nc), jnp.float32),
        grid=(1,),
        in_specs=[
            pl.BlockSpec(xcc.shape, lambda i: (0, 0)),
            pl.BlockSpec(xf.shape, lambda i: (0, 0)),
            pl.BlockSpec(slab.shape, lambda i: (0, 0)),   # one constant slab DMA
        ],
        out_specs=pl.BlockSpec((1, B * Nc), lambda i: (0, 0)),
        compiler_params=pltpu.CompilerParams(
            dimension_semantics=("arbitrary",)),
    )(xcc, xf, slab)

    return out2d.reshape(B, Nc, 1)


# -----------------------------------------------------------------------------
# Pure-JAX f32 reference (node-major, explicit pools / concats, two-pass inorm) —
# sanity check only.
# -----------------------------------------------------------------------------
def graph_unet_reference(xCellCenters, xFace, graphs, params):
    def gconv(A, x, W, b, relu=True):
        y = jnp.einsum("ds,bsc->bdc", A, x) @ W + b
        return jnp.maximum(y, 0.0) if relu else y

    def pool(P, x):
        return jnp.einsum("ds,bsc->bdc", P, x)

    def inorm(x, eps=1e-5):
        m = jnp.mean(x, axis=1, keepdims=True)
        v = jnp.mean((x - m) ** 2, axis=1, keepdims=True)
        return (x - m) * jax.lax.rsqrt(v + eps)

    xCC, xF = inorm(xCellCenters), inorm(xFace)
    p = params["convN_1"]
    h = gconv(graphs["A_centerFace"], xCC, **p["layerCenterFace"])
    h = jnp.concatenate([h, xF], axis=-1)
    h = gconv(graphs["A_facePoint"], h, **p["layerFacePoint"])
    conv1 = inorm(gconv(graphs["A_pp0"], h, **p["layerPointPoint"]))
    p = params["convN_2"]
    h = gconv(graphs["A_pp1"], pool(graphs["Pool0"], conv1), **p["layer1"])
    conv2 = inorm(gconv(graphs["A_pp1"], h, **p["layer2"]))
    p = params["convN_3"]
    h = gconv(graphs["A_pp2"], pool(graphs["Pool1"], conv2), **p["layer1"])
    conv3 = inorm(gconv(graphs["A_pp2"], h, **p["layer2"]))
    p = params["convN_4"]
    h = gconv(graphs["A_pp3"], pool(graphs["Pool2"], conv3), **p["layer1"])
    h = gconv(graphs["A_pp3"], h, **p["layer2"])
    h = gconv(graphs["A_pp3"], h, **p["layer3"])
    h = gconv(graphs["A_pp3"], h, **p["layer4"])
    conv4 = inorm(pool(graphs["Unpool2"], h))
    p = params["convN_7"]
    h = gconv(graphs["A_pp2"], jnp.concatenate([conv4, conv3], -1), **p["layer1"])
    h = gconv(graphs["A_pp2"], h, **p["layer2"])
    conv7 = inorm(pool(graphs["Unpool1"], h))
    p = params["convN_8"]
    h = gconv(graphs["A_pp1"], jnp.concatenate([conv7, conv2], -1), **p["layer1"])
    h = gconv(graphs["A_pp1"], h, **p["layer2"])
    conv8 = inorm(pool(graphs["Unpool0"], h))
    p = params["convN_9"]
    h = gconv(graphs["A_pp0"], jnp.concatenate([conv8, conv1], -1), **p["layer1"])
    conv9 = gconv(graphs["A_pointCenter"], h, **p["layer2"])
    pf = params["final"]["layer1"]
    return conv9 @ pf["W"] + pf["b"]


# -----------------------------------------------------------------------------
# Deterministic parameter / graph construction (glue, plain JAX)
# -----------------------------------------------------------------------------
def _lin_params(key, cin, cout):
    kw, kb = jax.random.split(key)
    W = 0.2 * jax.random.normal(kw, (cin, cout), jnp.float32)
    b = 0.05 * jax.random.normal(kb, (1, cout), jnp.float32)
    return {"W": W, "b": b}


def make_params(key):
    names_and_shapes = {
        "convN_1": {"layerCenterFace": (2, 8), "layerFacePoint": (12, 12),
                    "layerPointPoint": (12, 12)},
        "convN_2": {"layer1": (12, 12), "layer2": (12, 12)},
        "convN_3": {"layer1": (12, 12), "layer2": (12, 12)},
        "convN_4": {"layer1": (12, 24), "layer2": (24, 24),
                    "layer3": (24, 24), "layer4": (24, 24)},
        "convN_7": {"layer1": (36, 24), "layer2": (24, 24)},
        "convN_8": {"layer1": (36, 12), "layer2": (12, 12)},
        "convN_9": {"layer1": (24, 12), "layer2": (12, 12)},
        "final":   {"layer1": (12, 1)},
    }
    params = {}
    for blk, layers in names_and_shapes.items():
        params[blk] = {}
        for lname, (cin, cout) in layers.items():
            key, sub = jax.random.split(key)
            params[blk][lname] = _lin_params(sub, cin, cout)
    return params


def _rand_operator(key, n_dst, n_src, density=0.25):
    """Dense edge-weighted operator (row-normalized sum aggregation)."""
    k1, k2 = jax.random.split(key)
    mask = (jax.random.uniform(k1, (n_dst, n_src)) < density).astype(jnp.float32)
    w = jax.random.uniform(k2, (n_dst, n_src), minval=0.5, maxval=1.5)
    A = mask * w
    deg = jnp.maximum(jnp.sum(A, axis=1, keepdims=True), 1.0)
    return (A / deg).astype(jnp.float32)


def make_graphs(key, Nc, Nf, Np0, Np1, Np2, Np3):
    keys = jax.random.split(key, 13)
    return {
        "A_centerFace": _rand_operator(keys[0], Nf, Nc),
        "A_facePoint": _rand_operator(keys[1], Np0, Nf),
        "A_pp0": _rand_operator(keys[2], Np0, Np0),
        "A_pp1": _rand_operator(keys[3], Np1, Np1),
        "A_pp2": _rand_operator(keys[4], Np2, Np2),
        "A_pp3": _rand_operator(keys[5], Np3, Np3),
        "Pool0": _rand_operator(keys[6], Np1, Np0),
        "Unpool0": _rand_operator(keys[7], Np0, Np1),
        "Pool1": _rand_operator(keys[8], Np2, Np1),
        "Unpool1": _rand_operator(keys[9], Np1, Np2),
        "Pool2": _rand_operator(keys[10], Np3, Np2),
        "Unpool2": _rand_operator(keys[11], Np2, Np3),
        "A_pointCenter": _rand_operator(keys[12], Nc, Np0),
    }


# -----------------------------------------------------------------------------
if __name__ == "__main__":
    B = 2
    Nc, Nf = 48, 96                      # cell centers, faces
    Np0, Np1, Np2, Np3 = 64, 32, 16, 8   # point nodes per U-Net level

    root = jax.random.PRNGKey(0)
    k_in1, k_in2, k_params, k_graphs = jax.random.split(root, 4)

    xCellCenters = jax.random.normal(k_in1, (B, Nc, 2), jnp.float32)
    xFace = jax.random.normal(k_in2, (B, Nf, 4), jnp.float32)

    params = make_params(k_params)
    graphs = make_graphs(k_graphs, Nc, Nf, Np0, Np1, Np2, Np3)

    # one-time folding + single-slab packing (plain JAX); meta stays static Python ints
    slab, meta = prepare_constants(graphs, params, B)

    fwd = jax.jit(functools.partial(graph_unet_forward, meta=meta))
    out = fwd(xCellCenters, xFace, slab)
    jax.block_until_ready(out)

    assert out.shape == (B, Nc, 1), out.shape
    assert jnp.all(jnp.isfinite(out))

    # sanity check against a pure-JAX f32 reference (tight: everything stays f32 now)
    ref = jax.jit(graph_unet_reference)(xCellCenters, xFace, graphs, params)
    rel_err = float(jnp.linalg.norm(out - ref) / (jnp.linalg.norm(ref) + 1e-8))
    assert rel_err < 1e-2, rel_err

    print("KERNEL_OK")
</pallas_src>

<mosaic_0001>
module attributes {stable_mosaic.version = 11 : i64} {
  func.func @_fused_unet_kernel(%arg0: i32, %arg1: memref<2x96xf32, #tpu.memory_space<vmem>>, %arg2: memref<4x192xf32, #tpu.memory_space<vmem>>, %arg3: memref<1824x192xf32, #tpu.memory_space<vmem>>, %arg4: memref<1x96xf32, #tpu.memory_space<vmem>>) attributes {dimension_semantics = [#tpu.dimension_semantics<arbitrary>], iteration_bounds = array<i64: 1>, scalar_prefetch = 0 : i64, scratch_operands = 0 : i64, tpu.core_type = #tpu.core_type<tc>, window_params = [{pipeline_mode = #tpu.pipeline_mode<synchronous>, transform_indices = @transform_0, window_bounds = array<i64: 2, 96>}, {pipeline_mode = #tpu.pipeline_mode<synchronous>, transform_indices = @transform_1, window_bounds = array<i64: 4, 192>}, {pipeline_mode = #tpu.pipeline_mode<synchronous>, transform_indices = @transform_2, window_bounds = array<i64: 1824, 192>}, {pipeline_mode = #tpu.pipeline_mode<synchronous>, transform_indices = @transform_3, window_bounds = array<i64: 1, 96>}]} {
    %c0 = arith.constant 0 : index
    %c0_0 = arith.constant 0 : index
    %0 = vector.load %arg1[%c0, %c0_0] : memref<2x96xf32, #tpu.memory_space<vmem>>, vector<2x96xf32>
    %1 = arith.mulf %0, %0 : vector<2x96xf32>
    %2 = tpu.concatenate %0, %1 in 0 : vector<2x96xf32>, vector<2x96xf32> -> vector<4x96xf32>
    %c992 = arith.constant 992 : index
    %c0_1 = arith.constant 0 : index
    %3 = vector.load %arg3[%c992, %c0_1] : memref<1824x192xf32, #tpu.memory_space<vmem>>, vector<96x96xf32>
    %cst = arith.constant dense<0.000000e+00> : vector<4x96xf32>
    %4 = tpu.matmul %2, %3, %cst {dimension_numbers = #tpu.dot_dimension_numbers<[1], [0], [0], [1], [0, 0, 1, 1], [], []>} : vector<4x96xf32>, vector<96x96xf32>, vector<4x96xf32> -> vector<4x96xf32>
    %5 = vector.extract_strided_slice %4 {offsets = [0, 0], sizes = [2, 96], strides = [1, 1]} : vector<4x96xf32> to vector<2x96xf32>
    %6 = vector.extract_strided_slice %4 {offsets = [2, 0], sizes = [2, 96], strides = [1, 1]} : vector<4x96xf32> to vector<2x96xf32>
    %7 = arith.mulf %5, %5 : vector<2x96xf32>
    %8 = arith.subf %6, %7 : vector<2x96xf32>
    %cst_2 = arith.constant 0.000000e+00 : f32
    %9 = vector.broadcast %cst_2 : f32 to vector<2x96xf32>
    %10 = arith.maximumf %8, %9 : vector<2x96xf32>
    %11 = arith.subf %0, %5 : vector<2x96xf32>
    %cst_3 = arith.constant 9.99999974E-6 : f32
    %12 = vector.broadcast %cst_3 : f32 to vector<2x96xf32>
    %13 = arith.addf %10, %12 : vector<2x96xf32>
    %14 = math.rsqrt %13 : vector<2x96xf32>
    %15 = arith.mulf %11, %14 : vector<2x96xf32>
    %c0_4 = arith.constant 0 : index
    %c0_5 = arith.constant 0 : index
    %16 = vector.load %arg2[%c0_4, %c0_5] : memref<4x192xf32, #tpu.memory_space<vmem>>, vector<4x192xf32>
    %17 = arith.mulf %16, %16 : vector<4x192xf32>
    %18 = tpu.concatenate %16, %17 in 0 : vector<4x192xf32>, vector<4x192xf32> -> vector<8x192xf32>
    %c1088 = arith.constant 1088 : index
    %c0_6 = arith.constant 0 : index
    %19 = vector.load %arg3[%c1088, %c0_6] : memref<1824x192xf32, #tpu.memory_space<vmem>>, vector<192x192xf32>
    %cst_7 = arith.constant dense<0.000000e+00> : vector<8x192xf32>
    %20 = tpu.matmul %18, %19, %cst_7 {dimension_numbers = #tpu.dot_dimension_numbers<[1], [0], [0], [1], [0, 0, 1, 1], [], []>} : vector<8x192xf32>, vector<192x192xf32>, vector<8x192xf32> -> vector<8x192xf32>
    %21 = vector.extract_strided_slice %20 {offsets = [0, 0], sizes = [4, 192], strides = [1, 1]} : vector<8x192xf32> to vector<4x192xf32>
    %22 = vector.extract_strided_slice %20 {offsets = [4, 0], sizes = [4, 192], strides = [1, 1]} : vector<8x192xf32> to vector<4x192xf32>
    %23 = arith.mulf %21, %21 : vector<4x192xf32>
    %24 = arith.subf %22, %23 : vector<4x192xf32>
    %cst_8 = arith.constant 0.000000e+00 : f32
    %25 = vector.broadcast %cst_8 : f32 to vector<4x192xf32>
    %26 = arith.maximumf %24, %25 : vector<4x192xf32>
    %27 = arith.subf %16, %21 : vector<4x192xf32>
    %cst_9 = arith.constant 9.99999974E-6 : f32
    %28 = vector.broadcast %cst_9 : f32 to vector<4x192xf32>
    %29 = arith.addf %26, %28 : vector<4x192xf32>
    %30 = math.rsqrt %29 : vector<4x192xf32>
    %31 = arith.mulf %27, %30 : vector<4x192xf32>
    %c1504 = arith.constant 1504 : index
    %c0_10 = arith.constant 0 : index
    %32 = vector.load %arg3[%c1504, %c0_10] : memref<1824x192xf32, #tpu.memory_space<vmem>>, vector<8x3xf32>
    %33 = vector.extract_strided_slice %32 {offsets = [0, 0], sizes = [8, 2], strides = [1, 1]} : vector<8x3xf32> to vector<8x2xf32>
    %34 = vector.extract_strided_slice %32 {offsets = [0, 2], sizes = [8, 1], strides = [1, 1]} : vector<8x3xf32> to vector<8x1xf32>
    %c0_11 = arith.constant 0 : index
    %c0_12 = arith.constant 0 : index
    %35 = vector.load %arg3[%c0_11, %c0_12] : memref<1824x192xf32, #tpu.memory_space<vmem>>, vector<96x192xf32>
    %cst_13 = arith.constant dense<0.000000e+00> : vector<2x192xf32>
    %36 = tpu.matmul %15, %35, %cst_13 {dimension_numbers = #tpu.dot_dimension_numbers<[1], [0], [0], [1], [0, 0, 1, 1], [], []>} : vector<2x96xf32>, vector<96x192xf32>, vector<2x192xf32> -> vector<2x192xf32>
    %cst_14 = arith.constant dense<0.000000e+00> : vector<8x192xf32>
    %37 = tpu.matmul %33, %36, %cst_14 {dimension_numbers = #tpu.dot_dimension_numbers<[1], [0], [0], [1], [0, 0, 1, 1], [], []>} : vector<8x2xf32>, vector<2x192xf32>, vector<8x192xf32> -> vector<8x192xf32>
    %38 = vector.broadcast %34 : vector<8x1xf32> to vector<8x192xf32>
    %39 = arith.addf %37, %38 : vector<8x192xf32>
    %cst_15 = arith.constant 0.000000e+00 : f32
    %40 = vector.broadcast %cst_15 : f32 to vector<8x192xf32>
    %41 = arith.maximumf %39, %40 : vector<8x192xf32>
    %42 = tpu.concatenate %41, %31 in 0 : vector<8x192xf32>, vector<4x192xf32> -> vector<12x192xf32>
    %c1512 = arith.constant 1512 : index
    %c0_16 = arith.constant 0 : index
    %43 = vector.load %arg3[%c1512, %c0_16] : memref<1824x192xf32, #tpu.memory_space<vmem>>, vector<12x13xf32>
    %44 = vector.extract_strided_slice %43 {offsets = [0, 0], sizes = [12, 12], strides = [1, 1]} : vector<12x13xf32> to vector<12x12xf32>
    %45 = vector.extract_strided_slice %43 {offsets = [0, 12], sizes = [12, 1], strides = [1, 1]} : vector<12x13xf32> to vector<12x1xf32>
    %c96 = arith.constant 96 : index
    %c0_17 = arith.constant 0 : index
    %46 = vector.load %arg3[%c96, %c0_17] : memref<1824x192xf32, #tpu.memory_space<vmem>>, vector<192x128xf32>
    %cst_18 = arith.constant dense<0.000000e+00> : vector<12x128xf32>
    %47 = tpu.matmul %42, %46, %cst_18 {dimension_numbers = #tpu.dot_dimension_numbers<[1], [0], [0], [1], [0, 0, 1, 1], [], []>} : vector<12x192xf32>, vector<192x128xf32>, vector<12x128xf32> -> vector<12x128xf32>
    %cst_19 = arith.constant dense<0.000000e+00> : vector<12x128xf32>
    %48 = tpu.matmul %44, %47, %cst_19 {dimension_numbers = #tpu.dot_dimension_numbers<[1], [0], [0], [1], [0, 0, 1, 1], [], []>} : vector<12x12xf32>, vector<12x128xf32>, vector<12x128xf32> -> vector<12x128xf32>
    %49 = vector.broadcast %45 : vector<12x1xf32> to vector<12x128xf32>
    %50 = arith.addf %48, %49 : vector<12x128xf32>
    %cst_20 = arith.constant 0.000000e+00 : f32
    %51 = vector.broadcast %cst_20 : f32 to vector<12x128xf32>
    %52 = arith.maximumf %50, %51 : vector<12x128xf32>
    %c1528 = arith.constant 1528 : index
    %c0_21 = arith.constant 0 : index
    %53 = vector.load %arg3[%c1528, %c0_21] : memref<1824x192xf32, #tpu.memory_space<vmem>>, vector<12x13xf32>
    %54 = vector.extract_strided_slice %53 {offsets = [0, 0], sizes = [12, 12], strides = [1, 1]} : vector<12x13xf32> to vector<12x12xf32>
    %55 = vector.extract_strided_slice %53 {offsets = [0, 12], sizes = [12, 1], strides = [1, 1]} : vector<12x13xf32> to vector<12x1xf32>
    %c288 = arith.constant 288 : index
    %c0_22 = arith.constant 0 : index
    %56 = vector.load %arg3[%c288, %c0_22] : memref<1824x192xf32, #tpu.memory_space<vmem>>, vector<128x128xf32>
    %cst_23 = arith.constant dense<0.000000e+00> : vector<12x128xf32>
    %57 = tpu.matmul %52, %56, %cst_23 {dimension_numbers = #tpu.dot_dimension_numbers<[1], [0], [0], [1], [0, 0, 1, 1], [], []>} : vector<12x128xf32>, vector<128x128xf32>, vector<12x128xf32> -> vector<12x128xf32>
    %cst_24 = arith.constant dense<0.000000e+00> : vector<12x128xf32>
    %58 = tpu.matmul %54, %57, %cst_24 {dimension_numbers = #tpu.dot_dimension_numbers<[1], [0], [0], [1], [0, 0, 1, 1], [], []>} : vector<12x12xf32>, vector<12x128xf32>, vector<12x128xf32> -> vector<12x128xf32>
    %59 = vector.broadcast %55 : vector<12x1xf32> to vector<12x128xf32>
    %60 = arith.addf %58, %59 : vector<12x128xf32>
    %cst_25 = arith.constant 0.000000e+00 : f32
    %61 = vector.broadcast %cst_25 : f32 to vector<12x128xf32>
    %62 = arith.maximumf %60, %61 : vector<12x128xf32>
    %63 = arith.mulf %62, %62 : vector<12x128xf32>
    %64 = tpu.concatenate %62, %63 in 0 : vector<12x128xf32>, vector<12x128xf32> -> vector<24x128xf32>
    %c1280 = arith.constant 1280 : index
    %c0_26 = arith.constant 0 : index
    %65 = vector.load %arg3[%c1280, %c0_26] : memref<1824x192xf32, #tpu.memory_space<vmem>>, vector<128x128xf32>
    %cst_27 = arith.constant dense<0.000000e+00> : vector<24x128xf32>
    %66 = tpu.matmul %64, %65, %cst_27 {dimension_numbers = #tpu.dot_dimension_numbers<[1], [0], [0], [1], [0, 0, 1, 1], [], []>} : vector<24x128xf32>, vector<128x128xf32>, vector<24x128xf32> -> vector<24x128xf32>
    %67 = vector.extract_strided_slice %66 {offsets = [0, 0], sizes = [12, 128], strides = [1, 1]} : vector<24x128xf32> to vector<12x128xf32>
    %68 = vector.extract_strided_slice %66 {offsets = [12, 0], sizes = [12, 128], strides = [1, 1]} : vector<24x128xf32> to vector<12x128xf32>
    %69 = arith.mulf %67, %67 : vector<12x128xf32>
    %70 = arith.subf %68, %69 : vector<12x128xf32>
    %cst_28 = arith.constant 0.000000e+00 : f32
    %71 = vector.broadcast %cst_28 : f32 to vector<12x128xf32>
    %72 = arith.maximumf %70, %71 : vector<12x128xf32>
    %73 = arith.subf %62, %67 : vector<12x128xf32>
    %cst_29 = arith.constant 9.99999974E-6 : f32
    %74 = vector.broadcast %cst_29 : f32 to vector<12x128xf32>
    %75 = arith.addf %72, %74 : vector<12x128xf32>
    %76 = math.rsqrt %75 : vector<12x128xf32>
    %77 = arith.mulf %73, %76 : vector<12x128xf32>
    %c1544 = arith.constant 1544 : index
    %c0_30 = arith.constant 0 : index
    %78 = vector.load %arg3[%c1544, %c0_30] : memref<1824x192xf32, #tpu.memory_space<vmem>>, vector<12x13xf32>
    %79 = vector.extract_strided_slice %78 {offsets = [0, 0], sizes = [12, 12], strides = [1, 1]} : vector<12x13xf32> to vector<12x12xf32>
    %80 = vector.extract_strided_slice %78 {offsets = [0, 12], sizes = [12, 1], strides = [1, 1]} : vector<12x13xf32> to vector<12x1xf32>
    %c416 = arith.constant 416 : index
    %c0_31 = arith.constant 0 : index
    %81 = vector.load %arg3[%c416, %c0_31] : memref<1824x192xf32, #tpu.memory_space<vmem>>, vector<128x64xf32>
    %cst_32 = arith.constant dense<0.000000e+00> : vector<12x64xf32>
    %82 = tpu.matmul %77, %81, %cst_32 {dimension_numbers = #tpu.dot_dimension_numbers<[1], [0], [0], [1], [0, 0, 1, 1], [], []>} : vector<12x128xf32>, vector<128x64xf32>, vector<12x64xf32> -> vector<12x64xf32>
    %cst_33 = arith.constant dense<0.000000e+00> : vector<12x64xf32>
    %83 = tpu.matmul %79, %82, %cst_33 {dimension_numbers = #tpu.dot_dimension_numbers<[1], [0], [0], [1], [0, 0, 1, 1], [], []>} : vector<12x12xf32>, vector<12x64xf32>, vector<12x64xf32> -> vector<12x64xf32>
    %84 = vector.broadcast %80 : vector<12x1xf32> to vector<12x64xf32>
    %85 = arith.addf %83, %84 : vector<12x64xf32>
    %cst_34 = arith.constant 0.000000e+00 : f32
    %86 = vector.broadcast %cst_34 : f32 to vector<12x64xf32>
    %87 = arith.maximumf %85, %86 : vector<12x64xf32>
    %c1560 = arith.constant 1560 : index
    %c0_35 = arith.constant 0 : index
    %88 = vector.load %arg3[%c1560, %c0_35] : memref<1824x192xf32, #tpu.memory_space<vmem>>, vector<12x13xf32>
    %89 = vector.extract_strided_slice %88 {offsets = [0, 0], sizes = [12, 12], strides = [1, 1]} : vector<12x13xf32> to vector<12x12xf32>
    %90 = vector.extract_strided_slice %88 {offsets = [0, 12], sizes = [12, 1], strides = [1, 1]} : vector<12x13xf32> to vector<12x1xf32>
    %c544 = arith.constant 544 : index
    %c0_36 = arith.constant 0 : index
    %91 = vector.load %arg3[%c544, %c0_36] : memref<1824x192xf32, #tpu.memory_space<vmem>>, vector<64x64xf32>
    %cst_37 = arith.constant dense<0.000000e+00> : vector<12x64xf32>
    %92 = tpu.matmul %87, %91, %cst_37 {dimension_numbers = #tpu.dot_dimension_numbers<[1], [0], [0], [1], [0, 0, 1, 1], [], []>} : vector<12x64xf32>, vector<64x64xf32>, vector<12x64xf32> -> vector<12x64xf32>
    %cst_38 = arith.constant dense<0.000000e+00> : vector<12x64xf32>
    %93 = tpu.matmul %89, %92, %cst_38 {dimension_numbers = #tpu.dot_dimension_numbers<[1], [0], [0], [1], [0, 0, 1, 1], [], []>} : vector<12x12xf32>, vector<12x64xf32>, vector<12x64xf32> -> vector<12x64xf32>
    %94 = vector.broadcast %90 : vector<12x1xf32> to vector<12x64xf32>
    %95 = arith.addf %93, %94 : vector<12x64xf32>
    %cst_39 = arith.constant 0.000000e+00 : f32
    %96 = vector.broadcast %cst_39 : f32 to vector<12x64xf32>
    %97 = arith.maximumf %95, %96 : vector<12x64xf32>
    %98 = arith.mulf %97, %97 : vector<12x64xf32>
    %99 = tpu.concatenate %97, %98 in 0 : vector<12x64xf32>, vector<12x64xf32> -> vector<24x64xf32>
    %c1408 = arith.constant 1408 : index
    %c0_40 = arith.constant 0 : index
    %100 = vector.load %arg3[%c1408, %c0_40] : memref<1824x192xf32, #tpu.memory_space<vmem>>, vector<64x64xf32>
    %cst_41 = arith.constant dense<0.000000e+00> : vector<24x64xf32>
    %101 = tpu.matmul %99, %100, %cst_41 {dimension_numbers = #tpu.dot_dimension_numbers<[1], [0], [0], [1], [0, 0, 1, 1], [], []>} : vector<24x64xf32>, vector<64x64xf32>, vector<24x64xf32> -> vector<24x64xf32>
    %102 = vector.extract_strided_slice %101 {offsets = [0, 0], sizes = [12, 64], strides = [1, 1]} : vector<24x64xf32> to vector<12x64xf32>
    %103 = vector.extract_strided_slice %101 {offsets = [12, 0], sizes = [12, 64], strides = [1, 1]} : vector<24x64xf32> to vector<12x64xf32>
    %104 = arith.mulf %102, %102 : vector<12x64xf32>
    %105 = arith.subf %103, %104 : vector<12x64xf32>
    %cst_42 = arith.constant 0.000000e+00 : f32
    %106 = vector.broadcast %cst_42 : f32 to vector<12x64xf32>
    %107 = arith.maximumf %105, %106 : vector<12x64xf32>
    %108 = arith.subf %97, %102 : vector<12x64xf32>
    %cst_43 = arith.constant 9.99999974E-6 : f32
    %109 = vector.broadcast %cst_43 : f32 to vector<12x64xf32>
    %110 = arith.addf %107, %109 : vector<12x64xf32>
    %111 = math.rsqrt %110 : vector<12x64xf32>
    %112 = arith.mulf %108, %111 : vector<12x64xf32>
    %c1576 = arith.constant 1576 : index
    %c0_44 = arith.constant 0 : index
    %113 = vector.load %arg3[%c1576, %c0_44] : memref<1824x192xf32, #tpu.memory_space<vmem>>, vector<12x13xf32>
    %114 = vector.extract_strided_slice %113 {offsets = [0, 0], sizes = [12, 12], strides = [1, 1]} : vector<12x13xf32> to vector<12x12xf32>
    %115 = vector.extract_strided_slice %113 {offsets = [0, 12], sizes = [12, 1], strides = [1, 1]} : vector<12x13xf32> to vector<12x1xf32>
    %c608 = arith.constant 608 : index
    %c0_45 = arith.constant 0 : index
    %116 = vector.load %arg3[%c608, %c0_45] : memref<1824x192xf32, #tpu.memory_space<vmem>>, vector<64x32xf32>
    %cst_46 = arith.constant dense<0.000000e+00> : vector<12x32xf32>
    %117 = tpu.matmul %112, %116, %cst_46 {dimension_numbers = #tpu.dot_dimension_numbers<[1], [0], [0], [1], [0, 0, 1, 1], [], []>} : vector<12x64xf32>, vector<64x32xf32>, vector<12x32xf32> -> vector<12x32xf32>
    %cst_47 = arith.constant dense<0.000000e+00> : vector<12x32xf32>
    %118 = tpu.matmul %114, %117, %cst_47 {dimension_numbers = #tpu.dot_dimension_numbers<[1], [0], [0], [1], [0, 0, 1, 1], [], []>} : vector<12x12xf32>, vector<12x32xf32>, vector<12x32xf32> -> vector<12x32xf32>
    %119 = vector.broadcast %115 : vector<12x1xf32> to vector<12x32xf32>
    %120 = arith.addf %118, %119 : vector<12x32xf32>
    %cst_48 = arith.constant 0.000000e+00 : f32
    %121 = vector.broadcast %cst_48 : f32 to vector<12x32xf32>
    %122 = arith.maximumf %120, %121 : vector<12x32xf32>
    %c1592 = arith.constant 1592 : index
    %c0_49 = arith.constant 0 : index
    %123 = vector.load %arg3[%c1592, %c0_49] : memref<1824x192xf32, #tpu.memory_space<vmem>>, vector<12x13xf32>
    %124 = vector.extract_strided_slice %123 {offsets = [0, 0], sizes = [12, 12], strides = [1, 1]} : vector<12x13xf32> to vector<12x12xf32>
    %125 = vector.extract_strided_slice %123 {offsets = [0, 12], sizes = [12, 1], strides = [1, 1]} : vector<12x13xf32> to vector<12x1xf32>
    %c672 = arith.constant 672 : index
    %c0_50 = arith.constant 0 : index
    %126 = vector.load %arg3[%c672, %c0_50] : memref<1824x192xf32, #tpu.memory_space<vmem>>, vector<32x32xf32>
    %cst_51 = arith.constant dense<0.000000e+00> : vector<12x32xf32>
    %127 = tpu.matmul %122, %126, %cst_51 {dimension_numbers = #tpu.dot_dimension_numbers<[1], [0], [0], [1], [0, 0, 1, 1], [], []>} : vector<12x32xf32>, vector<32x32xf32>, vector<12x32xf32> -> vector<12x32xf32>
    %cst_52 = arith.constant dense<0.000000e+00> : vector<12x32xf32>
    %128 = tpu.matmul %124, %127, %cst_52 {dimension_numbers = #tpu.dot_dimension_numbers<[1], [0], [0], [1], [0, 0, 1, 1], [], []>} : vector<12x12xf32>, vector<12x32xf32>, vector<12x32xf32> -> vector<12x32xf32>
    %129 = vector.broadcast %125 : vector<12x1xf32> to vector<12x32xf32>
    %130 = arith.addf %128, %129 : vector<12x32xf32>
    %cst_53 = arith.constant 0.000000e+00 : f32
    %131 = vector.broadcast %cst_53 : f32 to vector<12x32xf32>
    %132 = arith.maximumf %130, %131 : vector<12x32xf32>
    %133 = arith.mulf %132, %132 : vector<12x32xf32>
    %134 = tpu.concatenate %132, %133 in 0 : vector<12x32xf32>, vector<12x32xf32> -> vector<24x32xf32>
    %c1472 = arith.constant 1472 : index
    %c0_54 = arith.constant 0 : index
    %135 = vector.load %arg3[%c1472, %c0_54] : memref<1824x192xf32, #tpu.memory_space<vmem>>, vector<32x32xf32>
    %cst_55 = arith.constant dense<0.000000e+00> : vector<24x32xf32>
    %136 = tpu.matmul %134, %135, %cst_55 {dimension_numbers = #tpu.dot_dimension_numbers<[1], [0], [0], [1], [0, 0, 1, 1], [], []>} : vector<24x32xf32>, vector<32x32xf32>, vector<24x32xf32> -> vector<24x32xf32>
    %137 = vector.extract_strided_slice %136 {offsets = [0, 0], sizes = [12, 32], strides = [1, 1]} : vector<24x32xf32> to vector<12x32xf32>
    %138 = vector.extract_strided_slice %136 {offsets = [12, 0], sizes = [12, 32], strides = [1, 1]} : vector<24x32xf32> to vector<12x32xf32>
    %139 = arith.mulf %137, %137 : vector<12x32xf32>
    %140 = arith.subf %138, %139 : vector<12x32xf32>
    %cst_56 = arith.constant 0.000000e+00 : f32
    %141 = vector.broadcast %cst_56 : f32 to vector<12x32xf32>
    %142 = arith.maximumf %140, %141 : vector<12x32xf32>
    %143 = arith.subf %132, %137 : vector<12x32xf32>
    %cst_57 = arith.constant 9.99999974E-6 : f32
    %144 = vector.broadcast %cst_57 : f32 to vector<12x32xf32>
    %145 = arith.addf %142, %144 : vector<12x32xf32>
    %146 = math.rsqrt %145 : vector<12x32xf32>
    %147 = arith.mulf %143, %146 : vector<12x32xf32>
    %c1608 = arith.constant 1608 : index
    %c0_58 = arith.constant 0 : index
    %148 = vector.load %arg3[%c1608, %c0_58] : memref<1824x192xf32, #tpu.memory_space<vmem>>, vector<24x13xf32>
    %149 = vector.extract_strided_slice %148 {offsets = [0, 0], sizes = [24, 12], strides = [1, 1]} : vector<24x13xf32> to vector<24x12xf32>
    %150 = vector.extract_strided_slice %148 {offsets = [0, 12], sizes = [24, 1], strides = [1, 1]} : vector<24x13xf32> to vector<24x1xf32>
    %c704 = arith.constant 704 : index
    %c0_59 = arith.constant 0 : index
    %151 = vector.load %arg3[%c704, %c0_59] : memref<1824x192xf32, #tpu.memory_space<vmem>>, vector<32x16xf32>
    %cst_60 = arith.constant dense<0.000000e+00> : vector<12x16xf32>
    %152 = tpu.matmul %147, %151, %cst_60 {dimension_numbers = #tpu.dot_dimension_numbers<[1], [0], [0], [1], [0, 0, 1, 1], [], []>} : vector<12x32xf32>, vector<32x16xf32>, vector<12x16xf32> -> vector<12x16xf32>
    %cst_61 = arith.constant dense<0.000000e+00> : vector<24x16xf32>
    %153 = tpu.matmul %149, %152, %cst_61 {dimension_numbers = #tpu.dot_dimension_numbers<[1], [0], [0], [1], [0, 0, 1, 1], [], []>} : vector<24x12xf32>, vector<12x16xf32>, vector<24x16xf32> -> vector<24x16xf32>
    %154 = vector.broadcast %150 : vector<24x1xf32> to vector<24x16xf32>
    %155 = arith.addf %153, %154 : vector<24x16xf32>
    %cst_62 = arith.constant 0.000000e+00 : f32
    %156 = vector.broadcast %cst_62 : f32 to vector<24x16xf32>
    %157 = arith.maximumf %155, %156 : vector<24x16xf32>
    %c1632 = arith.constant 1632 : index
    %c0_63 = arith.constant 0 : index
    %158 = vector.load %arg3[%c1632, %c0_63] : memref<1824x192xf32, #tpu.memory_space<vmem>>, vector<24x25xf32>
    %159 = vector.extract_strided_slice %158 {offsets = [0, 0], sizes = [24, 24], strides = [1, 1]} : vector<24x25xf32> to vector<24x24xf32>
    %160 = vector.extract_strided_slice %158 {offsets = [0, 24], sizes = [24, 1], strides = [1, 1]} : vector<24x25xf32> to vector<24x1xf32>
    %c736 = arith.constant 736 : index
    %c0_64 = arith.constant 0 : index
    %161 = vector.load %arg3[%c736, %c0_64] : memref<1824x192xf32, #tpu.memory_space<vmem>>, vector<16x16xf32>
    %cst_65 = arith.constant dense<0.000000e+00> : vector<24x16xf32>
    %162 = tpu.matmul %157, %161, %cst_65 {dimension_numbers = #tpu.dot_dimension_numbers<[1], [0], [0], [1], [0, 0, 1, 1], [], []>} : vector<24x16xf32>, vector<16x16xf32>, vector<24x16xf32> -> vector<24x16xf32>
    %cst_66 = arith.constant dense<0.000000e+00> : vector<24x16xf32>
    %163 = tpu.matmul %159, %162, %cst_66 {dimension_numbers = #tpu.dot_dimension_numbers<[1], [0], [0], [1], [0, 0, 1, 1], [], []>} : vector<24x24xf32>, vector<24x16xf32>, vector<24x16xf32> -> vector<24x16xf32>
    %164 = vector.broadcast %160 : vector<24x1xf32> to vector<24x16xf32>
    %165 = arith.addf %163, %164 : vector<24x16xf32>
    %cst_67 = arith.constant 0.000000e+00 : f32
    %166 = vector.broadcast %cst_67 : f32 to vector<24x16xf32>
    %167 = arith.maximumf %165, %166 : vector<24x16xf32>
    %c1656 = arith.constant 1656 : index
    %c0_68 = arith.constant 0 : index
    %168 = vector.load %arg3[%c1656, %c0_68] : memref<1824x192xf32, #tpu.memory_space<vmem>>, vector<24x25xf32>
    %169 = vector.extract_strided_slice %168 {offsets = [0, 0], sizes = [24, 24], strides = [1, 1]} : vector<24x25xf32> to vector<24x24xf32>
    %170 = vector.extract_strided_slice %168 {offsets = [0, 24], sizes = [24, 1], strides = [1, 1]} : vector<24x25xf32> to vector<24x1xf32>
    %c736_69 = arith.constant 736 : index
    %c0_70 = arith.constant 0 : index
    %171 = vector.load %arg3[%c736_69, %c0_70] : memref<1824x192xf32, #tpu.memory_space<vmem>>, vector<16x16xf32>
    %cst_71 = arith.constant dense<0.000000e+00> : vector<24x16xf32>
    %172 = tpu.matmul %167, %171, %cst_71 {dimension_numbers = #tpu.dot_dimension_numbers<[1], [0], [0], [1], [0, 0, 1, 1], [], []>} : vector<24x16xf32>, vector<16x16xf32>, vector<24x16xf32> -> vector<24x16xf32>
    %cst_72 = arith.constant dense<0.000000e+00> : vector<24x16xf32>
    %173 = tpu.matmul %169, %172, %cst_72 {dimension_numbers = #tpu.dot_dimension_numbers<[1], [0], [0], [1], [0, 0, 1, 1], [], []>} : vector<24x24xf32>, vector<24x16xf32>, vector<24x16xf32> -> vector<24x16xf32>
    %174 = vector.broadcast %170 : vector<24x1xf32> to vector<24x16xf32>
    %175 = arith.addf %173, %174 : vector<24x16xf32>
    %cst_73 = arith.constant 0.000000e+00 : f32
    %176 = vector.broadcast %cst_73 : f32 to vector<24x16xf32>
    %177 = arith.maximumf %175, %176 : vector<24x16xf32>
    %c1680 = arith.constant 1680 : index
    %c0_74 = arith.constant 0 : index
    %178 = vector.load %arg3[%c1680, %c0_74] : memref<1824x192xf32, #tpu.memory_space<vmem>>, vector<24x25xf32>
    %179 = vector.extract_strided_slice %178 {offsets = [0, 0], sizes = [24, 24], strides = [1, 1]} : vector<24x25xf32> to vector<24x24xf32>
    %180 = vector.extract_strided_slice %178 {offsets = [0, 24], sizes = [24, 1], strides = [1, 1]} : vector<24x25xf32> to vector<24x1xf32>
    %c736_75 = arith.constant 736 : index
    %c0_76 = arith.constant 0 : index
    %181 = vector.load %arg3[%c736_75, %c0_76] : memref<1824x192xf32, #tpu.memory_space<vmem>>, vector<16x16xf32>
    %cst_77 = arith.constant dense<0.000000e+00> : vector<24x16xf32>
    %182 = tpu.matmul %177, %181, %cst_77 {dimension_numbers = #tpu.dot_dimension_numbers<[1], [0], [0], [1], [0, 0, 1, 1], [], []>} : vector<24x16xf32>, vector<16x16xf32>, vector<24x16xf32> -> vector<24x16xf32>
    %cst_78 = arith.constant dense<0.000000e+00> : vector<24x16xf32>
    %183 = tpu.matmul %179, %182, %cst_78 {dimension_numbers = #tpu.dot_dimension_numbers<[1], [0], [0], [1], [0, 0, 1, 1], [], []>} : vector<24x24xf32>, vector<24x16xf32>, vector<24x16xf32> -> vector<24x16xf32>
    %184 = vector.broadcast %180 : vector<24x1xf32> to vector<24x16xf32>
    %185 = arith.addf %183, %184 : vector<24x16xf32>
    %cst_79 = arith.constant 0.000000e+00 : f32
    %186 = vector.broadcast %cst_79 : f32 to vector<24x16xf32>
    %187 = arith.maximumf %185, %186 : vector<24x16xf32>
    %c752 = arith.constant 752 : index
    %c0_80 = arith.constant 0 : index
    %188 = vector.load %arg3[%c752, %c0_80] : memref<1824x192xf32, #tpu.memory_space<vmem>>, vector<16x32xf32>
    %cst_81 = arith.constant dense<0.000000e+00> : vector<24x32xf32>
    %189 = tpu.matmul %187, %188, %cst_81 {dimension_numbers = #tpu.dot_dimension_numbers<[1], [0], [0], [1], [0, 0, 1, 1], [], []>} : vector<24x16xf32>, vector<16x32xf32>, vector<24x32xf32> -> vector<24x32xf32>
    %190 = arith.mulf %189, %189 : vector<24x32xf32>
    %191 = tpu.concatenate %189, %190 in 0 : vector<24x32xf32>, vector<24x32xf32> -> vector<48x32xf32>
    %c1472_82 = arith.constant 1472 : index
    %c0_83 = arith.constant 0 : index
    %192 = vector.load %arg3[%c1472_82, %c0_83] : memref<1824x192xf32, #tpu.memory_space<vmem>>, vector<32x32xf32>
    %cst_84 = arith.constant dense<0.000000e+00> : vector<48x32xf32>
    %193 = tpu.matmul %191, %192, %cst_84 {dimension_numbers = #tpu.dot_dimension_numbers<[1], [0], [0], [1], [0, 0, 1, 1], [], []>} : vector<48x32xf32>, vector<32x32xf32>, vector<48x32xf32> -> vector<48x32xf32>
    %194 = vector.extract_strided_slice %193 {offsets = [0, 0], sizes = [24, 32], strides = [1, 1]} : vector<48x32xf32> to vector<24x32xf32>
    %195 = vector.extract_strided_slice %193 {offsets = [24, 0], sizes = [24, 32], strides = [1, 1]} : vector<48x32xf32> to vector<24x32xf32>
    %196 = arith.mulf %194, %194 : vector<24x32xf32>
    %197 = arith.subf %195, %196 : vector<24x32xf32>
    %cst_85 = arith.constant 0.000000e+00 : f32
    %198 = vector.broadcast %cst_85 : f32 to vector<24x32xf32>
    %199 = arith.maximumf %197, %198 : vector<24x32xf32>
    %200 = arith.subf %189, %194 : vector<24x32xf32>
    %cst_86 = arith.constant 9.99999974E-6 : f32
    %201 = vector.broadcast %cst_86 : f32 to vector<24x32xf32>
    %202 = arith.addf %199, %201 : vector<24x32xf32>
    %203 = math.rsqrt %202 : vector<24x32xf32>
    %204 = arith.mulf %200, %203 : vector<24x32xf32>
    %205 = tpu.concatenate %204, %147 in 0 : vector<24x32xf32>, vector<12x32xf32> -> vector<36x32xf32>
    %c1704 = arith.constant 1704 : index
    %c0_87 = arith.constant 0 : index
    %206 = vector.load %arg3[%c1704, %c0_87] : memref<1824x192xf32, #tpu.memory_space<vmem>>, vector<24x37xf32>
    %207 = vector.extract_strided_slice %206 {offsets = [0, 0], sizes = [24, 36], strides = [1, 1]} : vector<24x37xf32> to vector<24x36xf32>
    %208 = vector.extract_strided_slice %206 {offsets = [0, 36], sizes = [24, 1], strides = [1, 1]} : vector<24x37xf32> to vector<24x1xf32>
    %c672_88 = arith.constant 672 : index
    %c0_89 = arith.constant 0 : index
    %209 = vector.load %arg3[%c672_88, %c0_89] : memref<1824x192xf32, #tpu.memory_space<vmem>>, vector<32x32xf32>
    %cst_90 = arith.constant dense<0.000000e+00> : vector<36x32xf32>
    %210 = tpu.matmul %205, %209, %cst_90 {dimension_numbers = #tpu.dot_dimension_numbers<[1], [0], [0], [1], [0, 0, 1, 1], [], []>} : vector<36x32xf32>, vector<32x32xf32>, vector<36x32xf32> -> vector<36x32xf32>
    %cst_91 = arith.constant dense<0.000000e+00> : vector<24x32xf32>
    %211 = tpu.matmul %207, %210, %cst_91 {dimension_numbers = #tpu.dot_dimension_numbers<[1], [0], [0], [1], [0, 0, 1, 1], [], []>} : vector<24x36xf32>, vector<36x32xf32>, vector<24x32xf32> -> vector<24x32xf32>
    %212 = vector.broadcast %208 : vector<24x1xf32> to vector<24x32xf32>
    %213 = arith.addf %211, %212 : vector<24x32xf32>
    %cst_92 = arith.constant 0.000000e+00 : f32
    %214 = vector.broadcast %cst_92 : f32 to vector<24x32xf32>
    %215 = arith.maximumf %213, %214 : vector<24x32xf32>
    %c1728 = arith.constant 1728 : index
    %c0_93 = arith.constant 0 : index
    %216 = vector.load %arg3[%c1728, %c0_93] : memref<1824x192xf32, #tpu.memory_space<vmem>>, vector<24x25xf32>
    %217 = vector.extract_strided_slice %216 {offsets = [0, 0], sizes = [24, 24], strides = [1, 1]} : vector<24x25xf32> to vector<24x24xf32>
    %218 = vector.extract_strided_slice %216 {offsets = [0, 24], sizes = [24, 1], strides = [1, 1]} : vector<24x25xf32> to vector<24x1xf32>
    %c672_94 = arith.constant 672 : index
    %c0_95 = arith.constant 0 : index
    %219 = vector.load %arg3[%c672_94, %c0_95] : memref<1824x192xf32, #tpu.memory_space<vmem>>, vector<32x32xf32>
    %cst_96 = arith.constant dense<0.000000e+00> : vector<24x32xf32>
    %220 = tpu.matmul %215, %219, %cst_96 {dimension_numbers = #tpu.dot_dimension_numbers<[1], [0], [0], [1], [0, 0, 1, 1], [], []>} : vector<24x32xf32>, vector<32x32xf32>, vector<24x32xf32> -> vector<24x32xf32>
    %cst_97 = arith.constant dense<0.000000e+00> : vector<24x32xf32>
    %221 = tpu.matmul %217, %220, %cst_97 {dimension_numbers = #tpu.dot_dimension_numbers<[1], [0], [0], [1], [0, 0, 1, 1], [], []>} : vector<24x24xf32>, vector<24x32xf32>, vector<24x32xf32> -> vector<24x32xf32>
    %222 = vector.broadcast %218 : vector<24x1xf32> to vector<24x32xf32>
    %223 = arith.addf %221, %222 : vector<24x32xf32>
    %cst_98 = arith.constant 0.000000e+00 : f32
    %224 = vector.broadcast %cst_98 : f32 to vector<24x32xf32>
    %225 = arith.maximumf %223, %224 : vector<24x32xf32>
    %c768 = arith.constant 768 : index
    %c0_99 = arith.constant 0 : index
    %226 = vector.load %arg3[%c768, %c0_99] : memref<1824x192xf32, #tpu.memory_space<vmem>>, vector<32x64xf32>
    %cst_100 = arith.constant dense<0.000000e+00> : vector<24x64xf32>
    %227 = tpu.matmul %225, %226, %cst_100 {dimension_numbers = #tpu.dot_dimension_numbers<[1], [0], [0], [1], [0, 0, 1, 1], [], []>} : vector<24x32xf32>, vector<32x64xf32>, vector<24x64xf32> -> vector<24x64xf32>
    %228 = arith.mulf %227, %227 : vector<24x64xf32>
    %229 = tpu.concatenate %227, %228 in 0 : vector<24x64xf32>, vector<24x64xf32> -> vector<48x64xf32>
    %c1408_101 = arith.constant 1408 : index
    %c0_102 = arith.constant 0 : index
    %230 = vector.load %arg3[%c1408_101, %c0_102] : memref<1824x192xf32, #tpu.memory_space<vmem>>, vector<64x64xf32>
    %cst_103 = arith.constant dense<0.000000e+00> : vector<48x64xf32>
    %231 = tpu.matmul %229, %230, %cst_103 {dimension_numbers = #tpu.dot_dimension_numbers<[1], [0], [0], [1], [0, 0, 1, 1], [], []>} : vector<48x64xf32>, vector<64x64xf32>, vector<48x64xf32> -> vector<48x64xf32>
    %232 = vector.extract_strided_slice %231 {offsets = [0, 0], sizes = [24, 64], strides = [1, 1]} : vector<48x64xf32> to vector<24x64xf32>
    %233 = vector.extract_strided_slice %231 {offsets = [24, 0], sizes = [24, 64], strides = [1, 1]} : vector<48x64xf32> to vector<24x64xf32>
    %234 = arith.mulf %232, %232 : vector<24x64xf32>
    %235 = arith.subf %233, %234 : vector<24x64xf32>
    %cst_104 = arith.constant 0.000000e+00 : f32
    %236 = vector.broadcast %cst_104 : f32 to vector<24x64xf32>
    %237 = arith.maximumf %235, %236 : vector<24x64xf32>
    %238 = arith.subf %227, %232 : vector<24x64xf32>
    %cst_105 = arith.constant 9.99999974E-6 : f32
    %239 = vector.broadcast %cst_105 : f32 to vector<24x64xf32>
    %240 = arith.addf %237, %239 : vector<24x64xf32>
    %241 = math.rsqrt %240 : vector<24x64xf32>
    %242 = arith.mulf %238, %241 : vector<24x64xf32>
    %243 = tpu.concatenate %242, %112 in 0 : vector<24x64xf32>, vector<12x64xf32> -> vector<36x64xf32>
    %c1752 = arith.constant 1752 : index
    %c0_106 = arith.constant 0 : index
    %244 = vector.load %arg3[%c1752, %c0_106] : memref<1824x192xf32, #tpu.memory_space<vmem>>, vector<12x37xf32>
    %245 = vector.extract_strided_slice %244 {offsets = [0, 0], sizes = [12, 36], strides = [1, 1]} : vector<12x37xf32> to vector<12x36xf32>
    %246 = vector.extract_strided_slice %244 {offsets = [0, 36], sizes = [12, 1], strides = [1, 1]} : vector<12x37xf32> to vector<12x1xf32>
    %c544_107 = arith.constant 544 : index
    %c0_108 = arith.constant 0 : index
    %247 = vector.load %arg3[%c544_107, %c0_108] : memref<1824x192xf32, #tpu.memory_space<vmem>>, vector<64x64xf32>
    %cst_109 = arith.constant dense<0.000000e+00> : vector<36x64xf32>
    %248 = tpu.matmul %243, %247, %cst_109 {dimension_numbers = #tpu.dot_dimension_numbers<[1], [0], [0], [1], [0, 0, 1, 1], [], []>} : vector<36x64xf32>, vector<64x64xf32>, vector<36x64xf32> -> vector<36x64xf32>
    %cst_110 = arith.constant dense<0.000000e+00> : vector<12x64xf32>
    %249 = tpu.matmul %245, %248, %cst_110 {dimension_numbers = #tpu.dot_dimension_numbers<[1], [0], [0], [1], [0, 0, 1, 1], [], []>} : vector<12x36xf32>, vector<36x64xf32>, vector<12x64xf32> -> vector<12x64xf32>
    %250 = vector.broadcast %246 : vector<12x1xf32> to vector<12x64xf32>
    %251 = arith.addf %249, %250 : vector<12x64xf32>
    %cst_111 = arith.constant 0.000000e+00 : f32
    %252 = vector.broadcast %cst_111 : f32 to vector<12x64xf32>
    %253 = arith.maximumf %251, %252 : vector<12x64xf32>
    %c1768 = arith.constant 1768 : index
    %c0_112 = arith.constant 0 : index
    %254 = vector.load %arg3[%c1768, %c0_112] : memref<1824x192xf32, #tpu.memory_space<vmem>>, vector<12x13xf32>
    %255 = vector.extract_strided_slice %254 {offsets = [0, 0], sizes = [12, 12], strides = [1, 1]} : vector<12x13xf32> to vector<12x12xf32>
    %256 = vector.extract_strided_slice %254 {offsets = [0, 12], sizes = [12, 1], strides = [1, 1]} : vector<12x13xf32> to vector<12x1xf32>
    %c544_113 = arith.constant 544 : index
    %c0_114 = arith.constant 0 : index
    %257 = vector.load %arg3[%c544_113, %c0_114] : memref<1824x192xf32, #tpu.memory_space<vmem>>, vector<64x64xf32>
    %cst_115 = arith.constant dense<0.000000e+00> : vector<12x64xf32>
    %258 = tpu.matmul %253, %257, %cst_115 {dimension_numbers = #tpu.dot_dimension_numbers<[1], [0], [0], [1], [0, 0, 1, 1], [], []>} : vector<12x64xf32>, vector<64x64xf32>, vector<12x64xf32> -> vector<12x64xf32>
    %cst_116 = arith.constant dense<0.000000e+00> : vector<12x64xf32>
    %259 = tpu.matmul %255, %258, %cst_116 {dimension_numbers = #tpu.dot_dimension_numbers<[1], [0], [0], [1], [0, 0, 1, 1], [], []>} : vector<12x12xf32>, vector<12x64xf32>, vector<12x64xf32> -> vector<12x64xf32>
    %260 = vector.broadcast %256 : vector<12x1xf32> to vector<12x64xf32>
    %261 = arith.addf %259, %260 : vector<12x64xf32>
    %cst_117 = arith.constant 0.000000e+00 : f32
    %262 = vector.broadcast %cst_117 : f32 to vector<12x64xf32>
    %263 = arith.maximumf %261, %262 : vector<12x64xf32>
    %c800 = arith.constant 800 : index
    %c0_118 = arith.constant 0 : index
    %264 = vector.load %arg3[%c800, %c0_118] : memref<1824x192xf32, #tpu.memory_space<vmem>>, vector<64x128xf32>
    %cst_119 = arith.constant dense<0.000000e+00> : vector<12x128xf32>
    %265 = tpu.matmul %263, %264, %cst_119 {dimension_numbers = #tpu.dot_dimension_numbers<[1], [0], [0], [1], [0, 0, 1, 1], [], []>} : vector<12x64xf32>, vector<64x128xf32>, vector<12x128xf32> -> vector<12x128xf32>
    %266 = arith.mulf %265, %265 : vector<12x128xf32>
    %267 = tpu.concatenate %265, %266 in 0 : vector<12x128xf32>, vector<12x128xf32> -> vector<24x128xf32>
    %c1280_120 = arith.constant 1280 : index
    %c0_121 = arith.constant 0 : index
    %268 = vector.load %arg3[%c1280_120, %c0_121] : memref<1824x192xf32, #tpu.memory_space<vmem>>, vector<128x128xf32>
    %cst_122 = arith.constant dense<0.000000e+00> : vector<24x128xf32>
    %269 = tpu.matmul %267, %268, %cst_122 {dimension_numbers = #tpu.dot_dimension_numbers<[1], [0], [0], [1], [0, 0, 1, 1], [], []>} : vector<24x128xf32>, vector<128x128xf32>, vector<24x128xf32> -> vector<24x128xf32>
    %270 = vector.extract_strided_slice %269 {offsets = [0, 0], sizes = [12, 128], strides = [1, 1]} : vector<24x128xf32> to vector<12x128xf32>
    %271 = vector.extract_strided_slice %269 {offsets = [12, 0], sizes = [12, 128], strides = [1, 1]} : vector<24x128xf32> to vector<12x128xf32>
    %272 = arith.mulf %270, %270 : vector<12x128xf32>
    %273 = arith.subf %271, %272 : vector<12x128xf32>
    %cst_123 = arith.constant 0.000000e+00 : f32
    %274 = vector.broadcast %cst_123 : f32 to vector<12x128xf32>
    %275 = arith.maximumf %273, %274 : vector<12x128xf32>
    %276 = arith.subf %265, %270 : vector<12x128xf32>
    %cst_124 = arith.constant 9.99999974E-6 : f32
    %277 = vector.broadcast %cst_124 : f32 to vector<12x128xf32>
    %278 = arith.addf %275, %277 : vector<12x128xf32>
    %279 = math.rsqrt %278 : vector<12x128xf32>
    %280 = arith.mulf %276, %279 : vector<12x128xf32>
    %281 = tpu.concatenate %280, %77 in 0 : vector<12x128xf32>, vector<12x128xf32> -> vector<24x128xf32>
    %c1784 = arith.constant 1784 : index
    %c0_125 = arith.constant 0 : index
    %282 = vector.load %arg3[%c1784, %c0_125] : memref<1824x192xf32, #tpu.memory_space<vmem>>, vector<12x25xf32>
    %283 = vector.extract_strided_slice %282 {offsets = [0, 0], sizes = [12, 24], strides = [1, 1]} : vector<12x25xf32> to vector<12x24xf32>
    %284 = vector.extract_strided_slice %282 {offsets = [0, 24], sizes = [12, 1], strides = [1, 1]} : vector<12x25xf32> to vector<12x1xf32>
    %c288_126 = arith.constant 288 : index
    %c0_127 = arith.constant 0 : index
    %285 = vector.load %arg3[%c288_126, %c0_127] : memref<1824x192xf32, #tpu.memory_space<vmem>>, vector<128x128xf32>
    %cst_128 = arith.constant dense<0.000000e+00> : vector<24x128xf32>
    %286 = tpu.matmul %281, %285, %cst_128 {dimension_numbers = #tpu.dot_dimension_numbers<[1], [0], [0], [1], [0, 0, 1, 1], [], []>} : vector<24x128xf32>, vector<128x128xf32>, vector<24x128xf32> -> vector<24x128xf32>
    %cst_129 = arith.constant dense<0.000000e+00> : vector<12x128xf32>
    %287 = tpu.matmul %283, %286, %cst_129 {dimension_numbers = #tpu.dot_dimension_numbers<[1], [0], [0], [1], [0, 0, 1, 1], [], []>} : vector<12x24xf32>, vector<24x128xf32>, vector<12x128xf32> -> vector<12x128xf32>
    %288 = vector.broadcast %284 : vector<12x1xf32> to vector<12x128xf32>
    %289 = arith.addf %287, %288 : vector<12x128xf32>
    %cst_130 = arith.constant 0.000000e+00 : f32
    %290 = vector.broadcast %cst_130 : f32 to vector<12x128xf32>
    %291 = arith.maximumf %289, %290 : vector<12x128xf32>
    %c1800 = arith.constant 1800 : index
    %c0_131 = arith.constant 0 : index
    %292 = vector.load %arg3[%c1800, %c0_131] : memref<1824x192xf32, #tpu.memory_space<vmem>>, vector<12x13xf32>
    %293 = vector.extract_strided_slice %292 {offsets = [0, 0], sizes = [12, 12], strides = [1, 1]} : vector<12x13xf32> to vector<12x12xf32>
    %294 = vector.extract_strided_slice %292 {offsets = [0, 12], sizes = [12, 1], strides = [1, 1]} : vector<12x13xf32> to vector<12x1xf32>
    %c864 = arith.constant 864 : index
    %c0_132 = arith.constant 0 : index
    %295 = vector.load %arg3[%c864, %c0_132] : memref<1824x192xf32, #tpu.memory_space<vmem>>, vector<128x96xf32>
    %cst_133 = arith.constant dense<0.000000e+00> : vector<12x96xf32>
    %296 = tpu.matmul %291, %295, %cst_133 {dimension_numbers = #tpu.dot_dimension_numbers<[1], [0], [0], [1], [0, 0, 1, 1], [], []>} : vector<12x128xf32>, vector<128x96xf32>, vector<12x96xf32> -> vector<12x96xf32>
    %cst_134 = arith.constant dense<0.000000e+00> : vector<12x96xf32>
    %297 = tpu.matmul %293, %296, %cst_134 {dimension_numbers = #tpu.dot_dimension_numbers<[1], [0], [0], [1], [0, 0, 1, 1], [], []>} : vector<12x12xf32>, vector<12x96xf32>, vector<12x96xf32> -> vector<12x96xf32>
    %298 = vector.broadcast %294 : vector<12x1xf32> to vector<12x96xf32>
    %299 = arith.addf %297, %298 : vector<12x96xf32>
    %cst_135 = arith.constant 0.000000e+00 : f32
    %300 = vector.broadcast %cst_135 : f32 to vector<12x96xf32>
    %301 = arith.maximumf %299, %300 : vector<12x96xf32>
    %c1816 = arith.constant 1816 : index
    %c0_136 = arith.constant 0 : index
    %302 = vector.load %arg3[%c1816, %c0_136] : memref<1824x192xf32, #tpu.memory_space<vmem>>, vector<1x13xf32>
    %303 = vector.extract_strided_slice %302 {offsets = [0, 0], sizes = [1, 12], strides = [1, 1]} : vector<1x13xf32> to vector<1x12xf32>
    %304 = vector.extract_strided_slice %302 {offsets = [0, 12], sizes = [1, 1], strides = [1, 1]} : vector<1x13xf32> to vector<1x1xf32>
    %cst_137 = arith.constant dense<0.000000e+00> : vector<1x96xf32>
    %305 = tpu.matmul %303, %301, %cst_137 {dimension_numbers = #tpu.dot_dimension_numbers<[1], [0], [0], [1], [0, 0, 1, 1], [], []>} : vector<1x12xf32>, vector<12x96xf32>, vector<1x96xf32> -> vector<1x96xf32>
    %306 = vector.broadcast %304 : vector<1x1xf32> to vector<1x96xf32>
    %307 = arith.addf %305, %306 : vector<1x96xf32>
    %c0_138 = arith.constant 0 : index
    %c0_139 = arith.constant 0 : index
    %308 = vector.load %arg4[%c0_138, %c0_139] : memref<1x96xf32, #tpu.memory_space<vmem>>, vector<1x96xf32>
    tpu.vector_store %arg4[%c0_138, %c0_139], %307 {strides = array<i32>} : memref<1x96xf32, #tpu.memory_space<vmem>>, vector<1x96xf32>,
    return
  }
  func.func @transform_0(%arg0: i32) -> (i32, i32) {
    %c0_i32 = arith.constant 0 : i32
    %c0_i32_0 = arith.constant 0 : i32
    %c0_i32_1 = arith.constant 0 : i32
    return %c0_i32, %c0_i32_0 : i32, i32
  }
  func.func @transform_1(%arg0: i32) -> (i32, i32) {
    %c0_i32 = arith.constant 0 : i32
    %c0_i32_0 = arith.constant 0 : i32
    %c0_i32_1 = arith.constant 0 : i32
    return %c0_i32, %c0_i32_0 : i32, i32
  }
  func.func @transform_2(%arg0: i32) -> (i32, i32) {
    %c0_i32 = arith.constant 0 : i32
    %c0_i32_0 = arith.constant 0 : i32
    %c0_i32_1 = arith.constant 0 : i32
    return %c0_i32, %c0_i32_0 : i32, i32
  }
  func.func @transform_3(%arg0: i32) -> (i32, i32) {
    %c0_i32 = arith.constant 0 : i32
    %c0_i32_0 = arith.constant 0 : i32
    %c0_i32_1 = arith.constant 0 : i32
    return %c0_i32, %c0_i32_0 : i32, i32
  }
}

</mosaic_0001>

<llo_original>
// kernel: graph_unet_forward.1
$region0: #{graph_unet_forward.1}
  #allocation0 [shape = 'u32[]', space=smem, size = 0x4, offset = 0x4, fixed_abs, tag = 'smem constant byte address 0x4 - core index']
  #allocation1 [shape = 'u32[144,128]{1,0:T(1,128)}', space=vmem, size = 0x12000, scoped, tag = 'internal scratch']
  %s0 = inlined_call_operand.vmem [shape: f32[2,96], index: 0, kind: input, shape index: {}]
  %s1 = inlined_call_operand.vmem [shape: f32[4,192], index: 1, kind: input, shape index: {}]
  %s2 = inlined_call_operand.vmem [shape: f32[1824,192], index: 2, kind: input, shape index: {}]
  %s3 = inlined_call_operand.vmem [shape: f32[1,96], index: 3, kind: output, shape index: {}]
  %s4 = sld [smem:[#allocation0]]
  $region22: #{graph_unet_forward.1} parent=0
    _
  %s6 = ssub.s32 1, %s4
  %s7 = scalar_select 0, %s6, %s4
  // Predicated region
  $region2: #{graph_unet_forward.1} parent=0 // pred_check
    _
  $region3: #{graph_unet_forward.1} parent=0 // pred_check_branch
    %9 = sbr.rel (0) target = $region5
  $region4: #{graph_unet_forward.1} parent=0 // pred_region
    _
  $region5: #{graph_unet_forward.1} parent=0 // pred_fallthru
    _
  // Predicated region
  $region6: #{graph_unet_forward.1} parent=0 // pred_check
    _
  $region7: #{graph_unet_forward.1} parent=0 // pred_check_branch
    %11 = sbr.rel (0) target = $region9
  $region8: #{graph_unet_forward.1} parent=0 // pred_region
    _
  $region9: #{graph_unet_forward.1} parent=0 // pred_fallthru
    _
  // Predicated region
  $region10: #{graph_unet_forward.1} parent=0 // pred_check
    _
  $region11: #{graph_unet_forward.1} parent=0 // pred_check_branch
    %13 = sbr.rel (0) target = $region13
  $region12: #{graph_unet_forward.1} parent=0 // pred_region
    _
  $region13: #{graph_unet_forward.1} parent=0 // pred_fallthru
    _
  %v14 = vld [vmem:[%s0] sm:$0x3]
  %v15 = vmul.f32 %v14, %v14
  %v17 = vrot.slane %v15, 6
  %vm19 = vcmask 1041408
  %v20 = vsel %vm19, %v14, %v17
  %v21 = vld [vmem:[%s2 + $0x7c0] sm:$0xff]
  %v22 = vld [vmem:[%s2 + $0x7d0] sm:$0xff]
  %v23 = vld [vmem:[%s2 + $0x7e0] sm:$0xff]
  %v24 = vld [vmem:[%s2 + $0x7f0] sm:$0xff]
  %v25 = vld [vmem:[%s2 + $0x800] sm:$0xff]
  %v26 = vld [vmem:[%s2 + $0x810] sm:$0xff]
  %v27 = vld [vmem:[%s2 + $0x820] sm:$0xff]
  %v28 = vld [vmem:[%s2 + $0x830] sm:$0xff]
  %v29 = vld [vmem:[%s2 + $0x840] sm:$0xff]
  %v30 = vld [vmem:[%s2 + $0x850] sm:$0xff]
  %v31 = vld [vmem:[%s2 + $0x860] sm:$0xff]
  %v32 = vld [vmem:[%s2 + $0x870] sm:$0xff]
  %vm33 = vcmask 785408
  %v35 = vsel %vm33, %v20, 0
  %37 = vmatprep.subr.mxu0 0.0
  %38 = vmatpush1.msra.mxu0 %v21
  %39 = vmatprep.subr.mxu0 0.0
  %40 = vmatpush1.msra.mxu0 %v22
  %41 = vmatprep.subr.mxu0 0.0
  %42 = vmatpush1.msra.mxu0 %v23
  %43 = vmatprep.subr.mxu0 0.0
  %44 = vmatpush1.msra.mxu0 %v24
  %45 = vmatprep.subr.mxu0 0.0
  %46 = vmatpush1.msra.mxu0 %v25
  %47 = vmatprep.subr.mxu0 0.0
  %48 = vmatpush1.msra.mxu0 %v26
  %49 = vmatprep.subr.mxu0 0.0
  %50 = vmatpush1.msra.mxu0 %v27
  %51 = vmatprep.subr.mxu0 0.0
  %52 = vmatpush1.msra.mxu0 %v28
  %53 = vmatprep.subr.mxu0 0.0
  %54 = vmatpush1.msra.mxu0 %v29
  %55 = vmatprep.subr.mxu0 0.0
  %56 = vmatpush1.msra.mxu0 %v30
  %57 = vmatprep.subr.mxu0 0.0
  %58 = vmatpush1.msra.mxu0 %v31
  %59 = vmatprep.subr.mxu0 0.0
  %60 = vmatpush1.msra.mxu0 %v32
  %61 = vmatprep.subr.mxu0 0.0
  %62 = vmatpush1.msra.mxu0 0.0
  %63 = vmatprep.subr.mxu0 0.0
  %64 = vmatpush1.msra.mxu0 0.0
  %65 = vmatprep.subr.mxu0 0.0
  %66 = vmatpush1.msra.mxu0 0.0
  %67 = vmatprep.subr.mxu0 0.0
  %68 = vmatpush1.msra.mxu0 0.0
  %69 = vmatprep.subr.mxu0 0.0
  %70 = vmatpush1.msra.mxu0 0.0
  %71 = vmatprep.subr.mxu0 0.0
  %72 = vmatpush1.msra.mxu0 0.0
  %73 = vmatprep.subr.mxu0 0.0
  %74 = vmatpush1.msra.mxu0 0.0
  %75 = vmatprep.subr.mxu0 0.0
  %76 = vmatpush1.msra.mxu0 0.0
  %77 = vmatprep.subr.mxu0 0.0
  %78 = vmatpush1.msra.mxu0 0.0
  %79 = vmatprep.subr.mxu0 0.0
  %80 = vmatpush1.msra.mxu0 0.0
  %81 = vmatprep.subr.mxu0 0.0
  %82 = vmatpush1.msra.mxu0 0.0
  %83 = vmatprep.subr.mxu0 0.0
  %84 = vmatpush1.msra.mxu0 0.0
  %85 = vmatprep.subr.mxu0 0.0
  %86 = vmatpush1.msra.mxu0 0.0
  %87 = vmatprep.subr.mxu0 0.0
  %88 = vmatpush1.msra.mxu0 0.0
  %89 = vmatprep.subr.mxu0 0.0
  %90 = vmatpush1.msra.mxu0 0.0
  %91 = vmatprep.subr.mxu0 0.0
  %92 = vmatpush1.msra.mxu0 0.0
  %93 = vmatprep.subr.mxu0 0.0
  %94 = vmatpush1.msra.mxu0 0.0
  %95 = vmatprep.subr.mxu0 0.0
  %96 = vmatpush1.msra.mxu0 0.0
  %97 = vmatprep.subr.mxu0 0.0
  %98 = vmatpush1.msra.mxu0 0.0
  %99 = vmatprep.subr.mxu0 0.0
  %100 = vmatpush1.msra.mxu0 0.0
  %101 = vmatprep.mubr.f32.mxu0 0.0
  %102 = vmatmul.mubr.f32.gmra.mrb[0].mxu0 %v35
  %v103 = vpop.f32.mrb[0].mxu0
  %v104 = vadd.f32 0.0, %v103
  %v105 = vpop.f32.mrb[0].mxu0
  %106 = vdwg.mxu0
  %v107 = vmul.f32 %v104, %v104
  %v109 = vrot.slane %v107, 6
  %v111 = vsub.f32 %v104, %v109
  %v112 = vmax.f32 %v111, 0.0
  %v113 = vsub.f32 %v14, %v104
  %v114 = vadd.f32 %v112, 1e-05
  %v115 = vrsqrt.pop %v114
  %v117 = vrot.slane %v115, 2
  %v119 = vmul.f32 %v113, %v117
  %v120 = vld [vmem:[%s1] sm:$0xff]
  %v121 = vmul.f32 %v120, %v120
  %v123 = vcombine.high %v120, %v120
  %v126 = vcombine.low %v121, %v121
  %vm128 = vcmask 1043456
  %v129 = vsel %vm128, %v120, %v126
  %v130 = vsel %vm128, %v123, %v121
  %v131 = vld [vmem:[%s2 + $0x880] sm:$0xff]
  %v132 = vld [vmem:[%s2 + $0x888] sm:$0xff]
  %v133 = vld [vmem:[%s2 + $0x890] sm:$0xff]
  %v134 = vld [vmem:[%s2 + $0x898] sm:$0xff]
  %v135 = vld [vmem:[%s2 + $0x8a0] sm:$0xff]
  %v136 = vld [vmem:[%s2 + $0x8a8] sm:$0xff]
  %v137 = vld [vmem:[%s2 + $0x8b0] sm:$0xff]
  %v138 = vld [vmem:[%s2 + $0x8b8] sm:$0xff]
  %v139 = vld [vmem:[%s2 + $0x8c0] sm:$0xff]
  %v140 = vld [vmem:[%s2 + $0x8c8] sm:$0xff]
  %v141 = vld [vmem:[%s2 + $0x8d0] sm:$0xff]
  %v142 = vld [vmem:[%s2 + $0x8d8] sm:$0xff]
  %v143 = vld [vmem:[%s2 + $0x8e0] sm:$0xff]
  %v144 = vld [vmem:[%s2 + $0x8e8] sm:$0xff]
  %v145 = vld [vmem:[%s2 + $0x8f0] sm:$0xff]
  %v146 = vld [vmem:[%s2 + $0x8f8] sm:$0xff]
  %v147 = vld [vmem:[%s2 + $0x900] sm:$0xff]
  %v148 = vld [vmem:[%s2 + $0x908] sm:$0xff]
  %v149 = vld [vmem:[%s2 + $0x910] sm:$0xff]
  %v150 = vld [vmem:[%s2 + $0x918] sm:$0xff]
  %v151 = vld [vmem:[%s2 + $0x920] sm:$0xff]
  %v152 = vld [vmem:[%s2 + $0x928] sm:$0xff]
  %v153 = vld [vmem:[%s2 + $0x930] sm:$0xff]
  %v154 = vld [vmem:[%s2 + $0x938] sm:$0xff]
  %v155 = vld [vmem:[%s2 + $0x940] sm:$0xff]
  %v156 = vld [vmem:[%s2 + $0x948] sm:$0xff]
  %v157 = vld [vmem:[%s2 + $0x950] sm:$0xff]
  %v158 = vld [vmem:[%s2 + $0x958] sm:$0xff]
  %v159 = vld [vmem:[%s2 + $0x960] sm:$0xff]
  %v160 = vld [vmem:[%s2 + $0x968] sm:$0xff]
  %v161 = vld [vmem:[%s2 + $0x970] sm:$0xff]
  %v162 = vld [vmem:[%s2 + $0x978] sm:$0xff]
  %v163 = vld [vmem:[%s2 + $0x980] sm:$0xff]
  %v164 = vld [vmem:[%s2 + $0x988] sm:$0xff]
  %v165 = vld [vmem:[%s2 + $0x990] sm:$0xff]
  %v166 = vld [vmem:[%s2 + $0x998] sm:$0xff]
  %v167 = vld [vmem:[%s2 + $0x9a0] sm:$0xff]
  %v168 = vld [vmem:[%s2 + $0x9a8] sm:$0xff]
  %v169 = vld [vmem:[%s2 + $0x9b0] sm:$0xff]
  %v170 = vld [vmem:[%s2 + $0x9b8] sm:$0xff]
  %v171 = vld [vmem:[%s2 + $0x9c0] sm:$0xff]
  %v172 = vld [vmem:[%s2 + $0x9c8] sm:$0xff]
  %v173 = vld [vmem:[%s2 + $0x9d0] sm:$0xff]
  %v174 = vld [vmem:[%s2 + $0x9d8] sm:$0xff]
  %v175 = vld [vmem:[%s2 + $0x9e0] sm:$0xff]
  %v176 = vld [vmem:[%s2 + $0x9e8] sm:$0xff]
  %v177 = vld [vmem:[%s2 + $0x9f0] sm:$0xff]
  %v178 = vld [vmem:[%s2 + $0x9f8] sm:$0xff]
  %vm179 = vcmask 523264
  %v181 = vsel %vm179, %v130, 0
  %183 = vmatprep.subr.mxu0 %v132
  %184 = vmatpush1.msra.mxu0 %v131
  %185 = vmatprep.subr.mxu0 %v134
  %186 = vmatpush1.msra.mxu0 %v133
  %187 = vmatprep.subr.mxu0 %v136
  %188 = vmatpush1.msra.mxu0 %v135
  %189 = vmatprep.subr.mxu0 %v138
  %190 = vmatpush1.msra.mxu0 %v137
  %191 = vmatprep.subr.mxu0 %v140
  %192 = vmatpush1.msra.mxu0 %v139
  %193 = vmatprep.subr.mxu0 %v142
  %194 = vmatpush1.msra.mxu0 %v141
  %195 = vmatprep.subr.mxu0 %v144
  %196 = vmatpush1.msra.mxu0 %v143
  %197 = vmatprep.subr.mxu0 %v146
  %198 = vmatpush1.msra.mxu0 %v145
  %199 = vmatprep.subr.mxu0 %v148
  %200 = vmatpush1.msra.mxu0 %v147
  %201 = vmatprep.subr.mxu0 %v150
  %202 = vmatpush1.msra.mxu0 %v149
  %203 = vmatprep.subr.mxu0 %v152
  %204 = vmatpush1.msra.mxu0 %v151
  %205 = vmatprep.subr.mxu0 %v154
  %206 = vmatpush1.msra.mxu0 %v153
  %207 = vmatprep.subr.mxu0 %v156
  %208 = vmatpush1.msra.mxu0 %v155
  %209 = vmatprep.subr.mxu0 %v158
  %210 = vmatpush1.msra.mxu0 %v157
  %211 = vmatprep.subr.mxu0 %v160
  %212 = vmatpush1.msra.mxu0 %v159
  %213 = vmatprep.subr.mxu0 %v162
  %214 = vmatpush1.msra.mxu0 %v161
  %215 = vmatprep.subr.mxu0 %v164
  %216 = vmatpush1.msra.mxu0 %v163
  %217 = vmatprep.subr.mxu0 %v166
  %218 = vmatpush1.msra.mxu0 %v165
  %219 = vmatprep.subr.mxu0 %v168
  %220 = vmatpush1.msra.mxu0 %v167
  %221 = vmatprep.subr.mxu0 %v170
  %222 = vmatpush1.msra.mxu0 %v169
  %223 = vmatprep.subr.mxu0 %v172
  %224 = vmatpush1.msra.mxu0 %v171
  %225 = vmatprep.subr.mxu0 %v174
  %226 = vmatpush1.msra.mxu0 %v173
  %227 = vmatprep.subr.mxu0 %v176
  %228 = vmatpush1.msra.mxu0 %v175
  %229 = vmatprep.subr.mxu0 %v178
  %230 = vmatpush1.msra.mxu0 %v177
  %231 = vmatprep.subr.mxu0 0.0
  %232 = vmatpush1.msra.mxu0 0.0
  %233 = vmatprep.subr.mxu0 0.0
  %234 = vmatpush1.msra.mxu0 0.0
  %235 = vmatprep.subr.mxu0 0.0
  %236 = vmatpush1.msra.mxu0 0.0
  %237 = vmatprep.subr.mxu0 0.0
  %238 = vmatpush1.msra.mxu0 0.0
  %239 = vmatprep.subr.mxu0 0.0
  %240 = vmatpush1.msra.mxu0 0.0
  %241 = vmatprep.subr.mxu0 0.0
  %242 = vmatpush1.msra.mxu0 0.0
  %243 = vmatprep.subr.mxu0 0.0
  %244 = vmatpush1.msra.mxu0 0.0
  %245 = vmatprep.subr.mxu0 0.0
  %246 = vmatpush1.msra.mxu0 0.0
  %247 = vmatprep.mubr.f32.mxu0 %v181
  %248 = vmatmul.mubr.f32.gmra.mrb[0].mxu0 %v129
  %v249 = vpop.f32.mrb[0].mxu0
  %v250 = vadd.f32 0.0, %v249
  %v251 = vpop.f32.mrb[0].mxu0
  %v252 = vadd.f32 0.0, %v251
  %253 = vdwg.mxu0
  %v254 = vmul.f32 %v250, %v250
  %v255 = vmul.f32 %v252, %v252
  %v258 = vrot.slane %v254, 4
  %v259 = vrot.slane %v255, 4
  %v262 = vsub.f32 %v250, %v258
  %v263 = vsub.f32 %v252, %v259
  %v264 = vmax.f32 %v262, 0.0
  %v265 = vmax.f32 %v263, 0.0
  %v268 = vcombine.low %v250, %v252
  %v270 = vsub.f32 %v120, %v268
  %v271 = vadd.f32 %v264, 1e-05
  %v272 = vadd.f32 %v265, 1e-05
  %v273 = vrsqrt.pop %v271
  %v274 = vrsqrt.pop %v272
  %v277 = vcombine.high %v273, %v274
  %v279 = vmul.f32 %v270, %v277
  %v280 = vld [vmem:[%s2 + $0xbc0] sm:$0xff]
  %v281 = vld [vmem:[%s2] sm:$0xff]
  %v282 = vld [vmem:[%s2 + $0x8] sm:$0xff]
  %v283 = vld [vmem:[%s2 + $0x10] sm:$0xff]
  %v284 = vld [vmem:[%s2 + $0x18] sm:$0xff]
  %v285 = vld [vmem:[%s2 + $0x20] sm:$0xff]
  %v286 = vld [vmem:[%s2 + $0x28] sm:$0xff]
  %v287 = vld [vmem:[%s2 + $0x30] sm:$0xff]
  %v288 = vld [vmem:[%s2 + $0x38] sm:$0xff]
  %v289 = vld [vmem:[%s2 + $0x40] sm:$0xff]
  %v290 = vld [vmem:[%s2 + $0x48] sm:$0xff]
  %v291 = vld [vmem:[%s2 + $0x50] sm:$0xff]
  %v292 = vld [vmem:[%s2 + $0x58] sm:$0xff]
  %v293 = vld [vmem:[%s2 + $0x60] sm:$0xff]
  %v294 = vld [vmem:[%s2 + $0x68] sm:$0xff]
  %v295 = vld [vmem:[%s2 + $0x70] sm:$0xff]
  %v296 = vld [vmem:[%s2 + $0x78] sm:$0xff]
  %v297 = vld [vmem:[%s2 + $0x80] sm:$0xff]
  %v298 = vld [vmem:[%s2 + $0x88] sm:$0xff]
  %v299 = vld [vmem:[%s2 + $0x90] sm:$0xff]
  %v300 = vld [vmem:[%s2 + $0x98] sm:$0xff]
  %v301 = vld [vmem:[%s2 + $0xa0] sm:$0xff]
  %v302 = vld [vmem:[%s2 + $0xa8] sm:$0xff]
  %v303 = vld [vmem:[%s2 + $0xb0] sm:$0xff]
  %v304 = vld [vmem:[%s2 + $0xb8] sm:$0xff]
  %v306 = vsel %vm33, %v119, 0
  %308 = vmatprep.subr.mxu0 %v282
  %309 = vmatpush1.msra.mxu0 %v281
  %310 = vmatprep.subr.mxu0 %v284
  %311 = vmatpush1.msra.mxu0 %v283
  %312 = vmatprep.subr.mxu0 %v286
  %313 = vmatpush1.msra.mxu0 %v285
  %314 = vmatprep.subr.mxu0 %v288
  %315 = vmatpush1.msra.mxu0 %v287
  %316 = vmatprep.subr.mxu0 %v290
  %317 = vmatpush1.msra.mxu0 %v289
  %318 = vmatprep.subr.mxu0 %v292
  %319 = vmatpush1.msra.mxu0 %v291
  %320 = vmatprep.subr.mxu0 %v294
  %321 = vmatpush1.msra.mxu0 %v293
  %322 = vmatprep.subr.mxu0 %v296
  %323 = vmatpush1.msra.mxu0 %v295
  %324 = vmatprep.subr.mxu0 %v298
  %325 = vmatpush1.msra.mxu0 %v297
  %326 = vmatprep.subr.mxu0 %v300
  %327 = vmatpush1.msra.mxu0 %v299
  %328 = vmatprep.subr.mxu0 %v302
  %329 = vmatpush1.msra.mxu0 %v301
  %330 = vmatprep.subr.mxu0 %v304
  %331 = vmatpush1.msra.mxu0 %v303
  %332 = vmatprep.subr.mxu0 0.0
  %333 = vmatpush1.msra.mxu0 0.0
  %334 = vmatprep.subr.mxu0 0.0
  %335 = vmatpush1.msra.mxu0 0.0
  %336 = vmatprep.subr.mxu0 0.0
  %337 = vmatpush1.msra.mxu0 0.0
  %338 = vmatprep.subr.mxu0 0.0
  %339 = vmatpush1.msra.mxu0 0.0
  %340 = vmatprep.subr.mxu0 0.0
  %341 = vmatpush1.msra.mxu0 0.0
  %342 = vmatprep.subr.mxu0 0.0
  %343 = vmatpush1.msra.mxu0 0.0
  %344 = vmatprep.subr.mxu0 0.0
  %345 = vmatpush1.msra.mxu0 0.0
  %346 = vmatprep.subr.mxu0 0.0
  %347 = vmatpush1.msra.mxu0 0.0
  %348 = vmatprep.subr.mxu0 0.0
  %349 = vmatpush1.msra.mxu0 0.0
  %350 = vmatprep.subr.mxu0 0.0
  %351 = vmatpush1.msra.mxu0 0.0
  %352 = vmatprep.subr.mxu0 0.0
  %353 = vmatpush1.msra.mxu0 0.0
  %354 = vmatprep.subr.mxu0 0.0
  %355 = vmatpush1.msra.mxu0 0.0
  %356 = vmatprep.subr.mxu0 0.0
  %357 = vmatpush1.msra.mxu0 0.0
  %358 = vmatprep.subr.mxu0 0.0
  %359 = vmatpush1.msra.mxu0 0.0
  %360 = vmatprep.subr.mxu0 0.0
  %361 = vmatpush1.msra.mxu0 0.0
  %362 = vmatprep.subr.mxu0 0.0
  %363 = vmatpush1.msra.mxu0 0.0
  %364 = vmatprep.subr.mxu0 0.0
  %365 = vmatpush1.msra.mxu0 0.0
  %366 = vmatprep.subr.mxu0 0.0
  %367 = vmatpush1.msra.mxu0 0.0
  %368 = vmatprep.subr.mxu0 0.0
  %369 = vmatpush1.msra.mxu0 0.0
  %370 = vmatprep.subr.mxu0 0.0
  %371 = vmatpush1.msra.mxu0 0.0
  %372 = vmatprep.mubr.f32.mxu0 0.0
  %373 = vmatmul.mubr.f32.gmra.mrb[0].mxu0 %v306
  %v374 = vpop.f32.mrb[0].mxu0
  %v375 = vadd.f32 0.0, %v374
  %v376 = vpop.f32.mrb[0].mxu0
  %v377 = vadd.f32 0.0, %v376
  %378 = vdwg.mxu0
  %380 = vset.pattern.permute.xlu0 2
  %381 = vperm.xlu0 %380, %v280
  %v382 = vpop.permute.xlu0 %381
  %vm384 = vcmask 15360
  %v385 = vsel %vm384, %v280, 0
  %v388 = vsel %vm19, %v375, 0
  %v391 = vsel %vm19, %v377, 0
  %393 = vmatprep.subr.mxu0 %v391
  %394 = vmatpush1.msra.mxu0 %v388
  %395 = vmatprep.subr.mxu0 0.0
  %396 = vmatpush1.msra.mxu0 0.0
  %397 = vmatprep.subr.mxu0 0.0
  %398 = vmatpush1.msra.mxu0 0.0
  %399 = vmatprep.subr.mxu0 0.0
  %400 = vmatpush1.msra.mxu0 0.0
  %401 = vmatprep.subr.mxu0 0.0
  %402 = vmatpush1.msra.mxu0 0.0
  %403 = vmatprep.subr.mxu0 0.0
  %404 = vmatpush1.msra.mxu0 0.0
  %405 = vmatprep.subr.mxu0 0.0
  %406 = vmatpush1.msra.mxu0 0.0
  %407 = vmatprep.subr.mxu0 0.0
  %408 = vmatpush1.msra.mxu0 0.0
  %409 = vmatprep.subr.mxu0 0.0
  %410 = vmatpush1.msra.mxu0 0.0
  %411 = vmatprep.subr.mxu0 0.0
  %412 = vmatpush1.msra.mxu0 0.0
  %413 = vmatprep.subr.mxu0 0.0
  %414 = vmatpush1.msra.mxu0 0.0
  %415 = vmatprep.subr.mxu0 0.0
  %416 = vmatpush1.msra.mxu0 0.0
  %417 = vmatprep.subr.mxu0 0.0
  %418 = vmatpush1.msra.mxu0 0.0
  %419 = vmatprep.subr.mxu0 0.0
  %420 = vmatpush1.msra.mxu0 0.0
  %421 = vmatprep.subr.mxu0 0.0
  %422 = vmatpush1.msra.mxu0 0.0
  %423 = vmatprep.subr.mxu0 0.0
  %424 = vmatpush1.msra.mxu0 0.0
  %425 = vmatprep.subr.mxu0 0.0
  %426 = vmatpush1.msra.mxu0 0.0
  %427 = vmatprep.subr.mxu0 0.0
  %428 = vmatpush1.msra.mxu0 0.0
  %429 = vmatprep.subr.mxu0 0.0
  %430 = vmatpush1.msra.mxu0 0.0
  %431 = vmatprep.subr.mxu0 0.0
  %432 = vmatpush1.msra.mxu0 0.0
  %433 = vmatprep.subr.mxu0 0.0
  %434 = vmatpush1.msra.mxu0 0.0
  %435 = vmatprep.subr.mxu0 0.0
  %436 = vmatpush1.msra.mxu0 0.0
  %437 = vmatprep.subr.mxu0 0.0
  %438 = vmatpush1.msra.mxu0 0.0
  %439 = vmatprep.subr.mxu0 0.0
  %440 = vmatpush1.msra.mxu0 0.0
  %441 = vmatprep.subr.mxu0 0.0
  %442 = vmatpush1.msra.mxu0 0.0
  %443 = vmatprep.subr.mxu0 0.0
  %444 = vmatpush1.msra.mxu0 0.0
  %445 = vmatprep.subr.mxu0 0.0
  %446 = vmatpush1.msra.mxu0 0.0
  %447 = vmatprep.subr.mxu0 0.0
  %448 = vmatpush1.msra.mxu0 0.0
  %449 = vmatprep.subr.mxu0 0.0
  %450 = vmatpush1.msra.mxu0 0.0
  %451 = vmatprep.subr.mxu0 0.0
  %452 = vmatpush1.msra.mxu0 0.0
  %453 = vmatprep.subr.mxu0 0.0
  %454 = vmatpush1.msra.mxu0 0.0
  %455 = vmatprep.subr.mxu0 0.0
  %456 = vmatpush1.msra.mxu0 0.0
  %457 = vmatprep.mubr.f32.mxu0 0.0
  %458 = vmatmul.mubr.f32.gmra.mrb[0].mxu0 %v385
  %v459 = vpop.f32.mrb[0].mxu0
  %v460 = vadd.f32 %v382, %v459
  %v461 = vpop.f32.mrb[0].mxu0
  %v462 = vadd.f32 %v382, %v461
  %463 = vdwg.mxu0
  %v464 = vmax.f32 %v460, 0.0
  %v465 = vmax.f32 %v462, 0.0
  %v467 = vcombine.high %v279, %v279
  %v468 = vld [vmem:[%s2 + $0xbd0] sm:$0xff]
  %v469 = vld [vmem:[%s2 + $0xbe0] sm:$0xf]
  %v470 = vld [vmem:[%s2 + $0xc0] sm:$0xff]
  %v471 = vld [vmem:[%s2 + $0xd0] sm:$0xff]
  %v472 = vld [vmem:[%s2 + $0xe0] sm:$0xff]
  %v473 = vld [vmem:[%s2 + $0xf0] sm:$0xff]
  %v474 = vld [vmem:[%s2 + $0x100] sm:$0xff]
  %v475 = vld [vmem:[%s2 + $0x110] sm:$0xff]
  %v476 = vld [vmem:[%s2 + $0x120] sm:$0xff]
  %v477 = vld [vmem:[%s2 + $0x130] sm:$0xff]
  %v478 = vld [vmem:[%s2 + $0x140] sm:$0xff]
  %v479 = vld [vmem:[%s2 + $0x150] sm:$0xff]
  %v480 = vld [vmem:[%s2 + $0x160] sm:$0xff]
  %v481 = vld [vmem:[%s2 + $0x170] sm:$0xff]
  %v482 = vld [vmem:[%s2 + $0x180] sm:$0xff]
  %v483 = vld [vmem:[%s2 + $0x190] sm:$0xff]
  %v484 = vld [vmem:[%s2 + $0x1a0] sm:$0xff]
  %v485 = vld [vmem:[%s2 + $0x1b0] sm:$0xff]
  %v486 = vld [vmem:[%s2 + $0x1c0] sm:$0xff]
  %v487 = vld [vmem:[%s2 + $0x1d0] sm:$0xff]
  %v488 = vld [vmem:[%s2 + $0x1e0] sm:$0xff]
  %v489 = vld [vmem:[%s2 + $0x1f0] sm:$0xff]
  %v490 = vld [vmem:[%s2 + $0x200] sm:$0xff]
  %v491 = vld [vmem:[%s2 + $0x210] sm:$0xff]
  %v492 = vld [vmem:[%s2 + $0x220] sm:$0xff]
  %v493 = vld [vmem:[%s2 + $0x230] sm:$0xff]
  %v495 = vsel %vm179, %v465, 0
  %v497 = vsel %vm179, %v467, 0
  %499 = vmatprep.subr.mxu0 0.0
  %500 = vmatpush1.msra.mxu0 %v470
  %501 = vmatprep.subr.mxu0 0.0
  %502 = vmatpush1.msra.mxu0 %v471
  %503 = vmatprep.subr.mxu0 0.0
  %504 = vmatpush1.msra.mxu0 %v472
  %505 = vmatprep.subr.mxu0 0.0
  %506 = vmatpush1.msra.mxu0 %v473
  %507 = vmatprep.subr.mxu0 0.0
  %508 = vmatpush1.msra.mxu0 %v474
  %509 = vmatprep.subr.mxu0 0.0
  %510 = vmatpush1.msra.mxu0 %v475
  %511 = vmatprep.subr.mxu0 0.0
  %512 = vmatpush1.msra.mxu0 %v476
  %513 = vmatprep.subr.mxu0 0.0
  %514 = vmatpush1.msra.mxu0 %v477
  %515 = vmatprep.subr.mxu0 0.0
  %516 = vmatpush1.msra.mxu0 %v478
  %517 = vmatprep.subr.mxu0 0.0
  %518 = vmatpush1.msra.mxu0 %v479
  %519 = vmatprep.subr.mxu0 0.0
  %520 = vmatpush1.msra.mxu0 %v480
  %521 = vmatprep.subr.mxu0 0.0
  %522 = vmatpush1.msra.mxu0 %v481
  %523 = vmatprep.subr.mxu0 0.0
  %524 = vmatpush1.msra.mxu0 %v482
  %525 = vmatprep.subr.mxu0 0.0
  %526 = vmatpush1.msra.mxu0 %v483
  %527 = vmatprep.subr.mxu0 0.0
  %528 = vmatpush1.msra.mxu0 %v484
  %529 = vmatprep.subr.mxu0 0.0
  %530 = vmatpush1.msra.mxu0 %v485
  %531 = vmatprep.subr.mxu0 0.0
  %532 = vmatpush1.msra.mxu0 %v486
  %533 = vmatprep.subr.mxu0 0.0
  %534 = vmatpush1.msra.mxu0 %v487
  %535 = vmatprep.subr.mxu0 0.0
  %536 = vmatpush1.msra.mxu0 %v488
  %537 = vmatprep.subr.mxu0 0.0
  %538 = vmatpush1.msra.mxu0 %v489
  %539 = vmatprep.subr.mxu0 0.0
  %540 = vmatpush1.msra.mxu0 %v490
  %541 = vmatprep.subr.mxu0 0.0
  %542 = vmatpush1.msra.mxu0 %v491
  %543 = vmatprep.subr.mxu0 0.0
  %544 = vmatpush1.msra.mxu0 %v492
  %545 = vmatprep.subr.mxu0 0.0
  %546 = vmatpush1.msra.mxu0 %v493
  %547 = vmatprep.subr.mxu0 0.0
  %548 = vmatpush1.msra.mxu0 0.0
  %549 = vmatprep.subr.mxu0 0.0
  %550 = vmatpush1.msra.mxu0 0.0
  %551 = vmatprep.subr.mxu0 0.0
  %552 = vmatpush1.msra.mxu0 0.0
  %553 = vmatprep.subr.mxu0 0.0
  %554 = vmatpush1.msra.mxu0 0.0
  %555 = vmatprep.subr.mxu0 0.0
  %556 = vmatpush1.msra.mxu0 0.0
  %557 = vmatprep.subr.mxu0 0.0
  %558 = vmatpush1.msra.mxu0 0.0
  %559 = vmatprep.subr.mxu0 0.0
  %560 = vmatpush1.msra.mxu0 0.0
  %561 = vmatprep.subr.mxu0 0.0
  %562 = vmatpush1.msra.mxu0 0.0
  %563 = vmatprep.mubr.f32.mxu0 %v495
  %564 = vmatmul.mubr.f32.gmra.mrb[0].mxu0 %v464
  %v565 = vpop.f32.mrb[0].mxu0
  %v566 = vadd.f32 0.0, %v565
  %v567 = vpop.f32.mrb[0].mxu0
  %568 = vmatprep.mubr.f32.mxu0 %v497
  %569 = vmatmul.mubr.f32.gmra.mrb[0].mxu0 %v279
  %v570 = vpop.f32.mrb[0].mxu0
  %v571 = vadd.f32 0.0, %v570
  %v572 = vpop.f32.mrb[0].mxu0
  %573 = vdwg.mxu0
  %575 = vset.pattern.permute.xlu0 12
  %576 = vperm.xlu0 %575, %v468
  %v577 = vpop.permute.xlu0 %576
  %580 = vset.pattern.permute.xlu0 12
  %581 = vperm.xlu0 %580, %v469
  %v582 = vpop.permute.xlu0 %581
  %vm584 = vcmask 97280
  %v585 = vsel %vm584, %v468, 0
  %v587 = vsel %vm584, %v469, 0
  %v590 = vsel %vm128, %v571, 0
  %592 = vmatprep.subr.mxu0 0.0
  %593 = vmatpush1.msra.mxu0 %v566
  %594 = vmatprep.subr.mxu0 0.0
  %595 = vmatpush1.msra.mxu0 %v590
  %596 = vmatprep.subr.mxu0 0.0
  %597 = vmatpush1.msra.mxu0 0.0
  %598 = vmatprep.subr.mxu0 0.0
  %599 = vmatpush1.msra.mxu0 0.0
  %600 = vmatprep.subr.mxu0 0.0
  %601 = vmatpush1.msra.mxu0 0.0
  %602 = vmatprep.subr.mxu0 0.0
  %603 = vmatpush1.msra.mxu0 0.0
  %604 = vmatprep.subr.mxu0 0.0
  %605 = vmatpush1.msra.mxu0 0.0
  %606 = vmatprep.subr.mxu0 0.0
  %607 = vmatpush1.msra.mxu0 0.0
  %608 = vmatprep.subr.mxu0 0.0
  %609 = vmatpush1.msra.mxu0 0.0
  %610 = vmatprep.subr.mxu0 0.0
  %611 = vmatpush1.msra.mxu0 0.0
  %612 = vmatprep.subr.mxu0 0.0
  %613 = vmatpush1.msra.mxu0 0.0
  %614 = vmatprep.subr.mxu0 0.0
  %615 = vmatpush1.msra.mxu0 0.0
  %616 = vmatprep.subr.mxu0 0.0
  %617 = vmatpush1.msra.mxu0 0.0
  %618 = vmatprep.subr.mxu0 0.0
  %619 = vmatpush1.msra.mxu0 0.0
  %620 = vmatprep.subr.mxu0 0.0
  %621 = vmatpush1.msra.mxu0 0.0
  %622 = vmatprep.subr.mxu0 0.0
  %623 = vmatpush1.msra.mxu0 0.0
  %624 = vmatprep.subr.mxu0 0.0
  %625 = vmatpush1.msra.mxu0 0.0
  %626 = vmatprep.subr.mxu0 0.0
  %627 = vmatpush1.msra.mxu0 0.0
  %628 = vmatprep.subr.mxu0 0.0
  %629 = vmatpush1.msra.mxu0 0.0
  %630 = vmatprep.subr.mxu0 0.0
  %631 = vmatpush1.msra.mxu0 0.0
  %632 = vmatprep.subr.mxu0 0.0
  %633 = vmatpush1.msra.mxu0 0.0
  %634 = vmatprep.subr.mxu0 0.0
  %635 = vmatpush1.msra.mxu0 0.0
  %636 = vmatprep.subr.mxu0 0.0
  %637 = vmatpush1.msra.mxu0 0.0
  %638 = vmatprep.subr.mxu0 0.0
  %639 = vmatpush1.msra.mxu0 0.0
  %640 = vmatprep.subr.mxu0 0.0
  %641 = vmatpush1.msra.mxu0 0.0
  %642 = vmatprep.subr.mxu0 0.0
  %643 = vmatpush1.msra.mxu0 0.0
  %644 = vmatprep.subr.mxu0 0.0
  %645 = vmatpush1.msra.mxu0 0.0
  %646 = vmatprep.subr.mxu0 0.0
  %647 = vmatpush1.msra.mxu0 0.0
  %648 = vmatprep.subr.mxu0 0.0
  %649 = vmatpush1.msra.mxu0 0.0
  %650 = vmatprep.subr.mxu0 0.0
  %651 = vmatpush1.msra.mxu0 0.0
  %652 = vmatprep.subr.mxu0 0.0
  %653 = vmatpush1.msra.mxu0 0.0
  %654 = vmatprep.subr.mxu0 0.0
  %655 = vmatpush1.msra.mxu0 0.0
  %656 = vmatprep.mubr.f32.mxu0 0.0
  %657 = vmatmul.mubr.f32.gmra.mrb[0].mxu0 %v585
  %v658 = vpop.f32.mrb[0].mxu0
  %v659 = vadd.f32 %v577, %v658
  %v660 = vpop.f32.mrb[0].mxu0
  %661 = vmatprep.mubr.f32.mxu0 0.0
  %662 = vmatmul.mubr.f32.gmra.mrb[0].mxu0 %v587
  %v663 = vpop.f32.mrb[0].mxu0
  %v664 = vadd.f32 %v582, %v663
  %v665 = vpop.f32.mrb[0].mxu0
  %666 = vdwg.mxu0
  %v667 = vmax.f32 %v659, 0.0
  %v668 = vmax.f32 %v664, 0.0
  %v669 = vld [vmem:[%s2 + $0xbf0] sm:$0xff]
  %v670 = vld [vmem:[%s2 + $0xc00] sm:$0xf]
  %v671 = vld [vmem:[%s2 + $0x240] sm:$0xff]
  %v672 = vld [vmem:[%s2 + $0x250] sm:$0xff]
  %v673 = vld [vmem:[%s2 + $0x260] sm:$0xff]
  %v674 = vld [vmem:[%s2 + $0x270] sm:$0xff]
  %v675 = vld [vmem:[%s2 + $0x280] sm:$0xff]
  %v676 = vld [vmem:[%s2 + $0x290] sm:$0xff]
  %v677 = vld [vmem:[%s2 + $0x2a0] sm:$0xff]
  %v678 = vld [vmem:[%s2 + $0x2b0] sm:$0xff]
  %v679 = vld [vmem:[%s2 + $0x2c0] sm:$0xff]
  %v680 = vld [vmem:[%s2 + $0x2d0] sm:$0xff]
  %v681 = vld [vmem:[%s2 + $0x2e0] sm:$0xff]
  %v682 = vld [vmem:[%s2 + $0x2f0] sm:$0xff]
  %v683 = vld [vmem:[%s2 + $0x300] sm:$0xff]
  %v684 = vld [vmem:[%s2 + $0x310] sm:$0xff]
  %v685 = vld [vmem:[%s2 + $0x320] sm:$0xff]
  %v686 = vld [vmem:[%s2 + $0x330] sm:$0xff]
  %687 = vmatprep.subr.mxu0 0.0
  %688 = vmatpush1.msra.mxu0 %v671
  %689 = vmatprep.subr.mxu0 0.0
  %690 = vmatpush1.msra.mxu0 %v672
  %691 = vmatprep.subr.mxu0 0.0
  %692 = vmatpush1.msra.mxu0 %v673
  %693 = vmatprep.subr.mxu0 0.0
  %694 = vmatpush1.msra.mxu0 %v674
  %695 = vmatprep.subr.mxu0 0.0
  %696 = vmatpush1.msra.mxu0 %v675
  %697 = vmatprep.subr.mxu0 0.0
  %698 = vmatpush1.msra.mxu0 %v676
  %699 = vmatprep.subr.mxu0 0.0
  %700 = vmatpush1.msra.mxu0 %v677
  %701 = vmatprep.subr.mxu0 0.0
  %702 = vmatpush1.msra.mxu0 %v678
  %703 = vmatprep.subr.mxu0 0.0
  %704 = vmatpush1.msra.mxu0 %v679
  %705 = vmatprep.subr.mxu0 0.0
  %706 = vmatpush1.msra.mxu0 %v680
  %707 = vmatprep.subr.mxu0 0.0
  %708 = vmatpush1.msra.mxu0 %v681
  %709 = vmatprep.subr.mxu0 0.0
  %710 = vmatpush1.msra.mxu0 %v682
  %711 = vmatprep.subr.mxu0 0.0
  %712 = vmatpush1.msra.mxu0 %v683
  %713 = vmatprep.subr.mxu0 0.0
  %714 = vmatpush1.msra.mxu0 %v684
  %715 = vmatprep.subr.mxu0 0.0
  %716 = vmatpush1.msra.mxu0 %v685
  %717 = vmatprep.subr.mxu0 0.0
  %718 = vmatpush1.msra.mxu0 %v686
  %719 = vmatprep.subr.mxu0 0.0
  %720 = vmatpush1.msra.mxu0 0.0
  %721 = vmatprep.subr.mxu0 0.0
  %722 = vmatpush1.msra.mxu0 0.0
  %723 = vmatprep.subr.mxu0 0.0
  %724 = vmatpush1.msra.mxu0 0.0
  %725 = vmatprep.subr.mxu0 0.0
  %726 = vmatpush1.msra.mxu0 0.0
  %727 = vmatprep.subr.mxu0 0.0
  %728 = vmatpush1.msra.mxu0 0.0
  %729 = vmatprep.subr.mxu0 0.0
  %730 = vmatpush1.msra.mxu0 0.0
  %731 = vmatprep.subr.mxu0 0.0
  %732 = vmatpush1.msra.mxu0 0.0
  %733 = vmatprep.subr.mxu0 0.0
  %734 = vmatpush1.msra.mxu0 0.0
  %735 = vmatprep.subr.mxu0 0.0
  %736 = vmatpush1.msra.mxu0 0.0
  %737 = vmatprep.subr.mxu0 0.0
  %738 = vmatpush1.msra.mxu0 0.0
  %739 = vmatprep.subr.mxu0 0.0
  %740 = vmatpush1.msra.mxu0 0.0
  %741 = vmatprep.subr.mxu0 0.0
  %742 = vmatpush1.msra.mxu0 0.0
  %743 = vmatprep.subr.mxu0 0.0
  %744 = vmatpush1.msra.mxu0 0.0
  %745 = vmatprep.subr.mxu0 0.0
  %746 = vmatpush1.msra.mxu0 0.0
  %747 = vmatprep.subr.mxu0 0.0
  %748 = vmatpush1.msra.mxu0 0.0
  %749 = vmatprep.subr.mxu0 0.0
  %750 = vmatpush1.msra.mxu0 0.0
  %751 = vmatprep.mubr.f32.mxu0 0.0
  %752 = vmatmul.mubr.f32.gmra.mrb[0].mxu0 %v667
  %v753 = vpop.f32.mrb[0].mxu0
  %v754 = vadd.f32 0.0, %v753
  %v755 = vpop.f32.mrb[0].mxu0
  %756 = vmatprep.mubr.f32.mxu0 0.0
  %757 = vmatmul.mubr.f32.gmra.mrb[0].mxu0 %v668
  %v758 = vpop.f32.mrb[0].mxu0
  %v759 = vadd.f32 0.0, %v758
  %v760 = vpop.f32.mrb[0].mxu0
  %761 = vdwg.mxu0
  %763 = vset.pattern.permute.xlu0 12
  %764 = vperm.xlu0 %763, %v669
  %v765 = vpop.permute.xlu0 %764
  %768 = vset.pattern.permute.xlu0 12
  %769 = vperm.xlu0 %768, %v670
  %v770 = vpop.permute.xlu0 %769
  %v772 = vsel %vm584, %v669, 0
  %v774 = vsel %vm584, %v670, 0
  %v777 = vsel %vm128, %v759, 0
  %779 = vmatprep.subr.mxu0 0.0
  %780 = vmatpush1.msra.mxu0 %v754
  %781 = vmatprep.subr.mxu0 0.0
  %782 = vmatpush1.msra.mxu0 %v777
  %783 = vmatprep.subr.mxu0 0.0
  %784 = vmatpush1.msra.mxu0 0.0
  %785 = vmatprep.subr.mxu0 0.0
  %786 = vmatpush1.msra.mxu0 0.0
  %787 = vmatprep.subr.mxu0 0.0
  %788 = vmatpush1.msra.mxu0 0.0
  %789 = vmatprep.subr.mxu0 0.0
  %790 = vmatpush1.msra.mxu0 0.0
  %791 = vmatprep.subr.mxu0 0.0
  %792 = vmatpush1.msra.mxu0 0.0
  %793 = vmatprep.subr.mxu0 0.0
  %794 = vmatpush1.msra.mxu0 0.0
  %795 = vmatprep.subr.mxu0 0.0
  %796 = vmatpush1.msra.mxu0 0.0
  %797 = vmatprep.subr.mxu0 0.0
  %798 = vmatpush1.msra.mxu0 0.0
  %799 = vmatprep.subr.mxu0 0.0
  %800 = vmatpush1.msra.mxu0 0.0
  %801 = vmatprep.subr.mxu0 0.0
  %802 = vmatpush1.msra.mxu0 0.0
  %803 = vmatprep.subr.mxu0 0.0
  %804 = vmatpush1.msra.mxu0 0.0
  %805 = vmatprep.subr.mxu0 0.0
  %806 = vmatpush1.msra.mxu0 0.0
  %807 = vmatprep.subr.mxu0 0.0
  %808 = vmatpush1.msra.mxu0 0.0
  %809 = vmatprep.subr.mxu0 0.0
  %810 = vmatpush1.msra.mxu0 0.0
  %811 = vmatprep.subr.mxu0 0.0
  %812 = vmatpush1.msra.mxu0 0.0
  %813 = vmatprep.subr.mxu0 0.0
  %814 = vmatpush1.msra.mxu0 0.0
  %815 = vmatprep.subr.mxu0 0.0
  %816 = vmatpush1.msra.mxu0 0.0
  %817 = vmatprep.subr.mxu0 0.0
  %818 = vmatpush1.msra.mxu0 0.0
  %819 = vmatprep.subr.mxu0 0.0
  %820 = vmatpush1.msra.mxu0 0.0
  %821 = vmatprep.subr.mxu0 0.0
  %822 = vmatpush1.msra.mxu0 0.0
  %823 = vmatprep.subr.mxu0 0.0
  %824 = vmatpush1.msra.mxu0 0.0
  %825 = vmatprep.subr.mxu0 0.0
  %826 = vmatpush1.msra.mxu0 0.0
  %827 = vmatprep.subr.mxu0 0.0
  %828 = vmatpush1.msra.mxu0 0.0
  %829 = vmatprep.subr.mxu0 0.0
  %830 = vmatpush1.msra.mxu0 0.0
  %831 = vmatprep.subr.mxu0 0.0
  %832 = vmatpush1.msra.mxu0 0.0
  %833 = vmatprep.subr.mxu0 0.0
  %834 = vmatpush1.msra.mxu0 0.0
  %835 = vmatprep.subr.mxu0 0.0
  %836 = vmatpush1.msra.mxu0 0.0
  %837 = vmatprep.subr.mxu0 0.0
  %838 = vmatpush1.msra.mxu0 0.0
  %839 = vmatprep.subr.mxu0 0.0
  %840 = vmatpush1.msra.mxu0 0.0
  %841 = vmatprep.subr.mxu0 0.0
  %842 = vmatpush1.msra.mxu0 0.0
  %843 = vmatprep.mubr.f32.mxu0 0.0
  %844 = vmatmul.mubr.f32.gmra.mrb[0].mxu0 %v772
  %v845 = vpop.f32.mrb[0].mxu0
  %v846 = vadd.f32 %v765, %v845
  %v847 = vpop.f32.mrb[0].mxu0
  %848 = vmatprep.mubr.f32.mxu0 0.0
  %849 = vmatmul.mubr.f32.gmra.mrb[0].mxu0 %v774
  %v850 = vpop.f32.mrb[0].mxu0
  %v851 = vadd.f32 %v770, %v850
  %v852 = vpop.f32.mrb[0].mxu0
  %853 = vdwg.mxu0
  %v854 = vmax.f32 %v846, 0.0
  %v855 = vmax.f32 %v851, 0.0
  %v856 = vmul.f32 %v854, %v854
  %v857 = vmul.f32 %v855, %v855
  %v860 = vrot.slane %v856, 4
  %v861 = vrot.slane %v857, 4
  %v862 = vsel %vm128, %v860, %v861
  %v865 = vsel %vm128, %v855, %v860
  %v866 = vld [vmem:[%s2 + $0xa00] sm:$0xff]
  %v867 = vld [vmem:[%s2 + $0xa10] sm:$0xff]
  %v868 = vld [vmem:[%s2 + $0xa20] sm:$0xff]
  %v869 = vld [vmem:[%s2 + $0xa30] sm:$0xff]
  %v870 = vld [vmem:[%s2 + $0xa40] sm:$0xff]
  %v871 = vld [vmem:[%s2 + $0xa50] sm:$0xff]
  %v872 = vld [vmem:[%s2 + $0xa60] sm:$0xff]
  %v873 = vld [vmem:[%s2 + $0xa70] sm:$0xff]
  %v874 = vld [vmem:[%s2 + $0xa80] sm:$0xff]
  %v875 = vld [vmem:[%s2 + $0xa90] sm:$0xff]
  %v876 = vld [vmem:[%s2 + $0xaa0] sm:$0xff]
  %v877 = vld [vmem:[%s2 + $0xab0] sm:$0xff]
  %v878 = vld [vmem:[%s2 + $0xac0] sm:$0xff]
  %v879 = vld [vmem:[%s2 + $0xad0] sm:$0xff]
  %v880 = vld [vmem:[%s2 + $0xae0] sm:$0xff]
  %v881 = vld [vmem:[%s2 + $0xaf0] sm:$0xff]
  %882 = vmatprep.subr.mxu0 0.0
  %883 = vmatpush1.msra.mxu0 %v866
  %884 = vmatprep.subr.mxu0 0.0
  %885 = vmatpush1.msra.mxu0 %v867
  %886 = vmatprep.subr.mxu0 0.0
  %887 = vmatpush1.msra.mxu0 %v868
  %888 = vmatprep.subr.mxu0 0.0
  %889 = vmatpush1.msra.mxu0 %v869
  %890 = vmatprep.subr.mxu0 0.0
  %891 = vmatpush1.msra.mxu0 %v870
  %892 = vmatprep.subr.mxu0 0.0
  %893 = vmatpush1.msra.mxu0 %v871
  %894 = vmatprep.subr.mxu0 0.0
  %895 = vmatpush1.msra.mxu0 %v872
  %896 = vmatprep.subr.mxu0 0.0
  %897 = vmatpush1.msra.mxu0 %v873
  %898 = vmatprep.subr.mxu0 0.0
  %899 = vmatpush1.msra.mxu0 %v874
  %900 = vmatprep.subr.mxu0 0.0
  %901 = vmatpush1.msra.mxu0 %v875
  %902 = vmatprep.subr.mxu0 0.0
  %903 = vmatpush1.msra.mxu0 %v876
  %904 = vmatprep.subr.mxu0 0.0
  %905 = vmatpush1.msra.mxu0 %v877
  %906 = vmatprep.subr.mxu0 0.0
  %907 = vmatpush1.msra.mxu0 %v878
  %908 = vmatprep.subr.mxu0 0.0
  %909 = vmatpush1.msra.mxu0 %v879
  %910 = vmatprep.subr.mxu0 0.0
  %911 = vmatpush1.msra.mxu0 %v880
  %912 = vmatprep.subr.mxu0 0.0
  %913 = vmatpush1.msra.mxu0 %v881
  %914 = vmatprep.subr.mxu0 0.0
  %915 = vmatpush1.msra.mxu0 0.0
  %916 = vmatprep.subr.mxu0 0.0
  %917 = vmatpush1.msra.mxu0 0.0
  %918 = vmatprep.subr.mxu0 0.0
  %919 = vmatpush1.msra.mxu0 0.0
  %920 = vmatprep.subr.mxu0 0.0
  %921 = vmatpush1.msra.mxu0 0.0
  %922 = vmatprep.subr.mxu0 0.0
  %923 = vmatpush1.msra.mxu0 0.0
  %924 = vmatprep.subr.mxu0 0.0
  %925 = vmatpush1.msra.mxu0 0.0
  %926 = vmatprep.subr.mxu0 0.0
  %927 = vmatpush1.msra.mxu0 0.0
  %928 = vmatprep.subr.mxu0 0.0
  %929 = vmatpush1.msra.mxu0 0.0
  %930 = vmatprep.subr.mxu0 0.0
  %931 = vmatpush1.msra.mxu0 0.0
  %932 = vmatprep.subr.mxu0 0.0
  %933 = vmatpush1.msra.mxu0 0.0
  %934 = vmatprep.subr.mxu0 0.0
  %935 = vmatpush1.msra.mxu0 0.0
  %936 = vmatprep.subr.mxu0 0.0
  %937 = vmatpush1.msra.mxu0 0.0
  %938 = vmatprep.subr.mxu0 0.0
  %939 = vmatpush1.msra.mxu0 0.0
  %940 = vmatprep.subr.mxu0 0.0
  %941 = vmatpush1.msra.mxu0 0.0
  %942 = vmatprep.subr.mxu0 0.0
  %943 = vmatpush1.msra.mxu0 0.0
  %944 = vmatprep.subr.mxu0 0.0
  %945 = vmatpush1.msra.mxu0 0.0
  %946 = vmatprep.mubr.f32.mxu0 0.0
  %947 = vmatmul.mubr.f32.gmra.mrb[0].mxu0 %v854
  %v948 = vpop.f32.mrb[0].mxu0
  %v949 = vadd.f32 0.0, %v948
  %v950 = vpop.f32.mrb[0].mxu0
  %951 = vmatprep.mubr.f32.mxu0 0.0
  %952 = vmatmul.mubr.f32.gmra.mrb[0].mxu0 %v865
  %v953 = vpop.f32.mrb[0].mxu0
  %v954 = vadd.f32 0.0, %v953
  %v955 = vpop.f32.mrb[0].mxu0
  %956 = vmatprep.mubr.f32.mxu0 0.0
  %957 = vmatmul.mubr.f32.gmra.mrb[0].mxu0 %v862
  %v958 = vpop.f32.mrb[0].mxu0
  %v959 = vadd.f32 0.0, %v958
  %v960 = vpop.f32.mrb[0].mxu0
  %961 = vdwg.mxu0
  %v962 = vmul.f32 %v949, %v949
  %v963 = vmul.f32 %v954, %v954
  %v966 = vrot.slane %v962, 4
  %v967 = vrot.slane %v963, 4
  %v968 = vsel %vm128, %v966, %v967
  %v971 = vsub.f32 %v954, %v966
  %v972 = vsub.f32 %v959, %v968
  %v973 = vmax.f32 %v971, 0.0
  %v974 = vmax.f32 %v972, 0.0
  %v975 = vsub.f32 %v854, %v949
  %v976 = vsub.f32 %v855, %v954
  %v977 = vadd.f32 %v973, 1e-05
  %v978 = vadd.f32 %v974, 1e-05
  %v979 = vrsqrt.pop %v977
  %v980 = vrsqrt.pop %v978
  %v983 = vrot.slane %v979, 4
  %v984 = vrot.slane %v980, 4
  %v985 = vsel %vm128, %v983, %v984
  %v988 = vmul.f32 %v975, %v985
  %v989 = vmul.f32 %v976, %v984
  %v990 = vld [vmem:[%s2 + $0xc10] sm:$0xff]
  %v991 = vld [vmem:[%s2 + $0xc20] sm:$0xf]
  %v992 = vld [vmem:[%s2 + $0x340] sm:$0xff]
  %v993 = vld [vmem:[%s2 + $0x350] sm:$0xff]
  %v994 = vld [vmem:[%s2 + $0x360] sm:$0xff]
  %v995 = vld [vmem:[%s2 + $0x370] sm:$0xff]
  %v996 = vld [vmem:[%s2 + $0x380] sm:$0xff]
  %v997 = vld [vmem:[%s2 + $0x390] sm:$0xff]
  %v998 = vld [vmem:[%s2 + $0x3a0] sm:$0xff]
  %v999 = vld [vmem:[%s2 + $0x3b0] sm:$0xff]
  %v1000 = vld [vmem:[%s2 + $0x3c0] sm:$0xff]
  %v1001 = vld [vmem:[%s2 + $0x3d0] sm:$0xff]
  %v1002 = vld [vmem:[%s2 + $0x3e0] sm:$0xff]
  %v1003 = vld [vmem:[%s2 + $0x3f0] sm:$0xff]
  %v1004 = vld [vmem:[%s2 + $0x400] sm:$0xff]
  %v1005 = vld [vmem:[%s2 + $0x410] sm:$0xff]
  %v1006 = vld [vmem:[%s2 + $0x420] sm:$0xff]
  %v1007 = vld [vmem:[%s2 + $0x430] sm:$0xff]
  %1008 = vmatprep.subr.mxu0 0.0
  %1009 = vmatpush1.msra.mxu0 %v992
  %1010 = vmatprep.subr.mxu0 0.0
  %1011 = vmatpush1.msra.mxu0 %v993
  %1012 = vmatprep.subr.mxu0 0.0
  %1013 = vmatpush1.msra.mxu0 %v994
  %1014 = vmatprep.subr.mxu0 0.0
  %1015 = vmatpush1.msra.mxu0 %v995
  %1016 = vmatprep.subr.mxu0 0.0
  %1017 = vmatpush1.msra.mxu0 %v996
  %1018 = vmatprep.subr.mxu0 0.0
  %1019 = vmatpush1.msra.mxu0 %v997
  %1020 = vmatprep.subr.mxu0 0.0
  %1021 = vmatpush1.msra.mxu0 %v998
  %1022 = vmatprep.subr.mxu0 0.0
  %1023 = vmatpush1.msra.mxu0 %v999
  %1024 = vmatprep.subr.mxu0 0.0
  %1025 = vmatpush1.msra.mxu0 %v1000
  %1026 = vmatprep.subr.mxu0 0.0
  %1027 = vmatpush1.msra.mxu0 %v1001
  %1028 = vmatprep.subr.mxu0 0.0
  %1029 = vmatpush1.msra.mxu0 %v1002
  %1030 = vmatprep.subr.mxu0 0.0
  %1031 = vmatpush1.msra.mxu0 %v1003
  %1032 = vmatprep.subr.mxu0 0.0
  %1033 = vmatpush1.msra.mxu0 %v1004
  %1034 = vmatprep.subr.mxu0 0.0
  %1035 = vmatpush1.msra.mxu0 %v1005
  %1036 = vmatprep.subr.mxu0 0.0
  %1037 = vmatpush1.msra.mxu0 %v1006
  %1038 = vmatprep.subr.mxu0 0.0
  %1039 = vmatpush1.msra.mxu0 %v1007
  %1040 = vmatprep.subr.mxu0 0.0
  %1041 = vmatpush1.msra.mxu0 0.0
  %1042 = vmatprep.subr.mxu0 0.0
  %1043 = vmatpush1.msra.mxu0 0.0
  %1044 = vmatprep.subr.mxu0 0.0
  %1045 = vmatpush1.msra.mxu0 0.0
  %1046 = vmatprep.subr.mxu0 0.0
  %1047 = vmatpush1.msra.mxu0 0.0
  %1048 = vmatprep.subr.mxu0 0.0
  %1049 = vmatpush1.msra.mxu0 0.0
  %1050 = vmatprep.subr.mxu0 0.0
  %1051 = vmatpush1.msra.mxu0 0.0
  %1052 = vmatprep.subr.mxu0 0.0
  %1053 = vmatpush1.msra.mxu0 0.0
  %1054 = vmatprep.subr.mxu0 0.0
  %1055 = vmatpush1.msra.mxu0 0.0
  %1056 = vmatprep.subr.mxu0 0.0
  %1057 = vmatpush1.msra.mxu0 0.0
  %1058 = vmatprep.subr.mxu0 0.0
  %1059 = vmatpush1.msra.mxu0 0.0
  %1060 = vmatprep.subr.mxu0 0.0
  %1061 = vmatpush1.msra.mxu0 0.0
  %1062 = vmatprep.subr.mxu0 0.0
  %1063 = vmatpush1.msra.mxu0 0.0
  %1064 = vmatprep.subr.mxu0 0.0
  %1065 = vmatpush1.msra.mxu0 0.0
  %1066 = vmatprep.subr.mxu0 0.0
  %1067 = vmatpush1.msra.mxu0 0.0
  %1068 = vmatprep.subr.mxu0 0.0
  %1069 = vmatpush1.msra.mxu0 0.0
  %1070 = vmatprep.subr.mxu0 0.0
  %1071 = vmatpush1.msra.mxu0 0.0
  %1072 = vmatprep.mubr.f32.mxu0 0.0
  %1073 = vmatmul.mubr.f32.gmra.mrb[0].mxu0 %v988
  %v1074 = vpop.f32.mrb[0].mxu0
  %v1075 = vadd.f32 0.0, %v1074
  %v1076 = vpop.f32.mrb[0].mxu0
  %1077 = vmatprep.mubr.f32.mxu0 0.0
  %1078 = vmatmul.mubr.f32.gmra.mrb[0].mxu0 %v989
  %v1079 = vpop.f32.mrb[0].mxu0
  %v1080 = vadd.f32 0.0, %v1079
  %v1081 = vpop.f32.mrb[0].mxu0
  %1082 = vdwg.mxu0
  %1084 = vset.pattern.permute.xlu0 12
  %1085 = vperm.xlu0 %1084, %v990
  %v1086 = vpop.permute.xlu0 %1085
  %1089 = vset.pattern.permute.xlu0 12
  %1090 = vperm.xlu0 %1089, %v991
  %v1091 = vpop.permute.xlu0 %1090
  %v1093 = vsel %vm584, %v990, 0
  %v1095 = vsel %vm584, %v991, 0
  %v1098 = vsel %vm128, %v1080, 0
  %1100 = vmatprep.subr.mxu0 0.0
  %1101 = vmatpush1.msra.mxu0 %v1075
  %1102 = vmatprep.subr.mxu0 0.0
  %1103 = vmatpush1.msra.mxu0 %v1098
  %1104 = vmatprep.subr.mxu0 0.0
  %1105 = vmatpush1.msra.mxu0 0.0
  %1106 = vmatprep.subr.mxu0 0.0
  %1107 = vmatpush1.msra.mxu0 0.0
  %1108 = vmatprep.subr.mxu0 0.0
  %1109 = vmatpush1.msra.mxu0 0.0
  %1110 = vmatprep.subr.mxu0 0.0
  %1111 = vmatpush1.msra.mxu0 0.0
  %1112 = vmatprep.subr.mxu0 0.0
  %1113 = vmatpush1.msra.mxu0 0.0
  %1114 = vmatprep.subr.mxu0 0.0
  %1115 = vmatpush1.msra.mxu0 0.0
  %1116 = vmatprep.subr.mxu0 0.0
  %1117 = vmatpush1.msra.mxu0 0.0
  %1118 = vmatprep.subr.mxu0 0.0
  %1119 = vmatpush1.msra.mxu0 0.0
  %1120 = vmatprep.subr.mxu0 0.0
  %1121 = vmatpush1.msra.mxu0 0.0
  %1122 = vmatprep.subr.mxu0 0.0
  %1123 = vmatpush1.msra.mxu0 0.0
  %1124 = vmatprep.subr.mxu0 0.0
  %1125 = vmatpush1.msra.mxu0 0.0
  %1126 = vmatprep.subr.mxu0 0.0
  %1127 = vmatpush1.msra.mxu0 0.0
  %1128 = vmatprep.subr.mxu0 0.0
  %1129 = vmatpush1.msra.mxu0 0.0
  %1130 = vmatprep.subr.mxu0 0.0
  %1131 = vmatpush1.msra.mxu0 0.0
  %1132 = vmatprep.subr.mxu0 0.0
  %1133 = vmatpush1.msra.mxu0 0.0
  %1134 = vmatprep.subr.mxu0 0.0
  %1135 = vmatpush1.msra.mxu0 0.0
  %1136 = vmatprep.subr.mxu0 0.0
  %1137 = vmatpush1.msra.mxu0 0.0
  %1138 = vmatprep.subr.mxu0 0.0
  %1139 = vmatpush1.msra.mxu0 0.0
  %1140 = vmatprep.subr.mxu0 0.0
  %1141 = vmatpush1.msra.mxu0 0.0
  %1142 = vmatprep.subr.mxu0 0.0
  %1143 = vmatpush1.msra.mxu0 0.0
  %1144 = vmatprep.subr.mxu0 0.0
  %1145 = vmatpush1.msra.mxu0 0.0
  %1146 = vmatprep.subr.mxu0 0.0
  %1147 = vmatpush1.msra.mxu0 0.0
  %1148 = vmatprep.subr.mxu0 0.0
  %1149 = vmatpush1.msra.mxu0 0.0
  %1150 = vmatprep.subr.mxu0 0.0
  %1151 = vmatpush1.msra.mxu0 0.0
  %1152 = vmatprep.subr.mxu0 0.0
  %1153 = vmatpush1.msra.mxu0 0.0
  %1154 = vmatprep.subr.mxu0 0.0
  %1155 = vmatpush1.msra.mxu0 0.0
  %1156 = vmatprep.subr.mxu0 0.0
  %1157 = vmatpush1.msra.mxu0 0.0
  %1158 = vmatprep.subr.mxu0 0.0
  %1159 = vmatpush1.msra.mxu0 0.0
  %1160 = vmatprep.subr.mxu0 0.0
  %1161 = vmatpush1.msra.mxu0 0.0
  %1162 = vmatprep.subr.mxu0 0.0
  %1163 = vmatpush1.msra.mxu0 0.0
  %1164 = vmatprep.mubr.f32.mxu0 0.0
  %1165 = vmatmul.mubr.f32.gmra.mrb[0].mxu0 %v1093
  %v1166 = vpop.f32.mrb[0].mxu0
  %v1167 = vadd.f32 %v1086, %v1166
  %v1168 = vpop.f32.mrb[0].mxu0
  %1169 = vmatprep.mubr.f32.mxu0 0.0
  %1170 = vmatmul.mubr.f32.gmra.mrb[0].mxu0 %v1095
  %v1171 = vpop.f32.mrb[0].mxu0
  %v1172 = vadd.f32 %v1091, %v1171
  %v1173 = vpop.f32.mrb[0].mxu0
  %1174 = vdwg.mxu0
  %v1175 = vmax.f32 %v1167, 0.0
  %v1176 = vmax.f32 %v1172, 0.0
  %v1177 = vld [vmem:[%s2 + $0xc30] sm:$0xff]
  %v1178 = vld [vmem:[%s2 + $0xc40] sm:$0xf]
  %v1179 = vld [vmem:[%s2 + $0x440] sm:$0xff]
  %v1180 = vld [vmem:[%s2 + $0x450] sm:$0xff]
  %v1181 = vld [vmem:[%s2 + $0x460] sm:$0xff]
  %v1182 = vld [vmem:[%s2 + $0x470] sm:$0xff]
  %v1183 = vld [vmem:[%s2 + $0x480] sm:$0xff]
  %v1184 = vld [vmem:[%s2 + $0x490] sm:$0xff]
  %v1185 = vld [vmem:[%s2 + $0x4a0] sm:$0xff]
  %v1186 = vld [vmem:[%s2 + $0x4b0] sm:$0xff]
  %v1188 = vsel %vm179, %v1175, 0
  %v1191 = vsel %vm179, %v1176, 0
  %1193 = vmatprep.subr.mxu0 0.0
  %1194 = vmatpush1.msra.mxu0 %v1179
  %1195 = vmatprep.subr.mxu0 0.0
  %1196 = vmatpush1.msra.mxu0 %v1180
  %1197 = vmatprep.subr.mxu0 0.0
  %1198 = vmatpush1.msra.mxu0 %v1181
  %1199 = vmatprep.subr.mxu0 0.0
  %1200 = vmatpush1.msra.mxu0 %v1182
  %1201 = vmatprep.subr.mxu0 0.0
  %1202 = vmatpush1.msra.mxu0 %v1183
  %1203 = vmatprep.subr.mxu0 0.0
  %1204 = vmatpush1.msra.mxu0 %v1184
  %1205 = vmatprep.subr.mxu0 0.0
  %1206 = vmatpush1.msra.mxu0 %v1185
  %1207 = vmatprep.subr.mxu0 0.0
  %1208 = vmatpush1.msra.mxu0 %v1186
  %1209 = vmatprep.subr.mxu0 0.0
  %1210 = vmatpush1.msra.mxu0 0.0
  %1211 = vmatprep.subr.mxu0 0.0
  %1212 = vmatpush1.msra.mxu0 0.0
  %1213 = vmatprep.subr.mxu0 0.0
  %1214 = vmatpush1.msra.mxu0 0.0
  %1215 = vmatprep.subr.mxu0 0.0
  %1216 = vmatpush1.msra.mxu0 0.0
  %1217 = vmatprep.subr.mxu0 0.0
  %1218 = vmatpush1.msra.mxu0 0.0
  %1219 = vmatprep.subr.mxu0 0.0
  %1220 = vmatpush1.msra.mxu0 0.0
  %1221 = vmatprep.subr.mxu0 0.0
  %1222 = vmatpush1.msra.mxu0 0.0
  %1223 = vmatprep.subr.mxu0 0.0
  %1224 = vmatpush1.msra.mxu0 0.0
  %1225 = vmatprep.subr.mxu0 0.0
  %1226 = vmatpush1.msra.mxu0 0.0
  %1227 = vmatprep.subr.mxu0 0.0
  %1228 = vmatpush1.msra.mxu0 0.0
  %1229 = vmatprep.subr.mxu0 0.0
  %1230 = vmatpush1.msra.mxu0 0.0
  %1231 = vmatprep.subr.mxu0 0.0
  %1232 = vmatpush1.msra.mxu0 0.0
  %1233 = vmatprep.subr.mxu0 0.0
  %1234 = vmatpush1.msra.mxu0 0.0
  %1235 = vmatprep.subr.mxu0 0.0
  %1236 = vmatpush1.msra.mxu0 0.0
  %1237 = vmatprep.subr.mxu0 0.0
  %1238 = vmatpush1.msra.mxu0 0.0
  %1239 = vmatprep.subr.mxu0 0.0
  %1240 = vmatpush1.msra.mxu0 0.0
  %1241 = vmatprep.subr.mxu0 0.0
  %1242 = vmatpush1.msra.mxu0 0.0
  %1243 = vmatprep.subr.mxu0 0.0
  %1244 = vmatpush1.msra.mxu0 0.0
  %1245 = vmatprep.subr.mxu0 0.0
  %1246 = vmatpush1.msra.mxu0 0.0
  %1247 = vmatprep.subr.mxu0 0.0
  %1248 = vmatpush1.msra.mxu0 0.0
  %1249 = vmatprep.subr.mxu0 0.0
  %1250 = vmatpush1.msra.mxu0 0.0
  %1251 = vmatprep.subr.mxu0 0.0
  %1252 = vmatpush1.msra.mxu0 0.0
  %1253 = vmatprep.subr.mxu0 0.0
  %1254 = vmatpush1.msra.mxu0 0.0
  %1255 = vmatprep.subr.mxu0 0.0
  %1256 = vmatpush1.msra.mxu0 0.0
  %1257 = vmatprep.mubr.f32.mxu0 0.0
  %1258 = vmatmul.mubr.f32.gmra.mrb[0].mxu0 %v1188
  %v1259 = vpop.f32.mrb[0].mxu0
  %v1260 = vadd.f32 0.0, %v1259
  %v1261 = vpop.f32.mrb[0].mxu0
  %1262 = vmatprep.mubr.f32.mxu0 0.0
  %1263 = vmatmul.mubr.f32.gmra.mrb[0].mxu0 %v1191
  %v1264 = vpop.f32.mrb[0].mxu0
  %v1265 = vadd.f32 0.0, %v1264
  %v1266 = vpop.f32.mrb[0].mxu0
  %1267 = vdwg.mxu0
  %1269 = vset.pattern.permute.xlu0 12
  %1270 = vperm.xlu0 %1269, %v1177
  %v1271 = vpop.permute.xlu0 %1270
  %1274 = vset.pattern.permute.xlu0 12
  %1275 = vperm.xlu0 %1274, %v1178
  %v1276 = vpop.permute.xlu0 %1275
  %v1278 = vsel %vm584, %v1177, 0
  %v1280 = vsel %vm584, %v1178, 0
  %v1283 = vsel %vm128, %v1265, 0
  %1285 = vmatprep.subr.mxu0 0.0
  %1286 = vmatpush1.msra.mxu0 %v1260
  %1287 = vmatprep.subr.mxu0 0.0
  %1288 = vmatpush1.msra.mxu0 %v1283
  %1289 = vmatprep.subr.mxu0 0.0
  %1290 = vmatpush1.msra.mxu0 0.0
  %1291 = vmatprep.subr.mxu0 0.0
  %1292 = vmatpush1.msra.mxu0 0.0
  %1293 = vmatprep.subr.mxu0 0.0
  %1294 = vmatpush1.msra.mxu0 0.0
  %1295 = vmatprep.subr.mxu0 0.0
  %1296 = vmatpush1.msra.mxu0 0.0
  %1297 = vmatprep.subr.mxu0 0.0
  %1298 = vmatpush1.msra.mxu0 0.0
  %1299 = vmatprep.subr.mxu0 0.0
  %1300 = vmatpush1.msra.mxu0 0.0
  %1301 = vmatprep.subr.mxu0 0.0
  %1302 = vmatpush1.msra.mxu0 0.0
  %1303 = vmatprep.subr.mxu0 0.0
  %1304 = vmatpush1.msra.mxu0 0.0
  %1305 = vmatprep.subr.mxu0 0.0
  %1306 = vmatpush1.msra.mxu0 0.0
  %1307 = vmatprep.subr.mxu0 0.0
  %1308 = vmatpush1.msra.mxu0 0.0
  %1309 = vmatprep.subr.mxu0 0.0
  %1310 = vmatpush1.msra.mxu0 0.0
  %1311 = vmatprep.subr.mxu0 0.0
  %1312 = vmatpush1.msra.mxu0 0.0
  %1313 = vmatprep.subr.mxu0 0.0
  %1314 = vmatpush1.msra.mxu0 0.0
  %1315 = vmatprep.subr.mxu0 0.0
  %1316 = vmatpush1.msra.mxu0 0.0
  %1317 = vmatprep.subr.mxu0 0.0
  %1318 = vmatpush1.msra.mxu0 0.0
  %1319 = vmatprep.subr.mxu0 0.0
  %1320 = vmatpush1.msra.mxu0 0.0
  %1321 = vmatprep.subr.mxu0 0.0
  %1322 = vmatpush1.msra.mxu0 0.0
  %1323 = vmatprep.subr.mxu0 0.0
  %1324 = vmatpush1.msra.mxu0 0.0
  %1325 = vmatprep.subr.mxu0 0.0
  %1326 = vmatpush1.msra.mxu0 0.0
  %1327 = vmatprep.subr.mxu0 0.0
  %1328 = vmatpush1.msra.mxu0 0.0
  %1329 = vmatprep.subr.mxu0 0.0
  %1330 = vmatpush1.msra.mxu0 0.0
  %1331 = vmatprep.subr.mxu0 0.0
  %1332 = vmatpush1.msra.mxu0 0.0
  %1333 = vmatprep.subr.mxu0 0.0
  %1334 = vmatpush1.msra.mxu0 0.0
  %1335 = vmatprep.subr.mxu0 0.0
  %1336 = vmatpush1.msra.mxu0 0.0
  %1337 = vmatprep.subr.mxu0 0.0
  %1338 = vmatpush1.msra.mxu0 0.0
  %1339 = vmatprep.subr.mxu0 0.0
  %1340 = vmatpush1.msra.mxu0 0.0
  %1341 = vmatprep.subr.mxu0 0.0
  %1342 = vmatpush1.msra.mxu0 0.0
  %1343 = vmatprep.subr.mxu0 0.0
  %1344 = vmatpush1.msra.mxu0 0.0
  %1345 = vmatprep.subr.mxu0 0.0
  %1346 = vmatpush1.msra.mxu0 0.0
  %1347 = vmatprep.subr.mxu0 0.0
  %1348 = vmatpush1.msra.mxu0 0.0
  %1349 = vmatprep.mubr.f32.mxu0 0.0
  %1350 = vmatmul.mubr.f32.gmra.mrb[0].mxu0 %v1278
  %v1351 = vpop.f32.mrb[0].mxu0
  %v1352 = vadd.f32 %v1271, %v1351
  %v1353 = vpop.f32.mrb[0].mxu0
  %1354 = vmatprep.mubr.f32.mxu0 0.0
  %1355 = vmatmul.mubr.f32.gmra.mrb[0].mxu0 %v1280
  %v1356 = vpop.f32.mrb[0].mxu0
  %v1357 = vadd.f32 %v1276, %v1356
  %v1358 = vpop.f32.mrb[0].mxu0
  %1359 = vdwg.mxu0
  %v1360 = vmax.f32 %v1352, 0.0
  %v1361 = vmax.f32 %v1357, 0.0
  %v1362 = vmul.f32 %v1360, %v1360
  %v1363 = vmul.f32 %v1361, %v1361
  %v1366 = vrot.slane %v1362, 4
  %v1367 = vrot.slane %v1363, 4
  %v1368 = vsel %vm128, %v1366, %v1367
  %v1370 = vsel %vm128, %v1361, %v1366
  %v1371 = vld [vmem:[%s2 + $0xb00] sm:$0xff]
  %v1372 = vld [vmem:[%s2 + $0xb10] sm:$0xff]
  %v1373 = vld [vmem:[%s2 + $0xb20] sm:$0xff]
  %v1374 = vld [vmem:[%s2 + $0xb30] sm:$0xff]
  %v1375 = vld [vmem:[%s2 + $0xb40] sm:$0xff]
  %v1376 = vld [vmem:[%s2 + $0xb50] sm:$0xff]
  %v1377 = vld [vmem:[%s2 + $0xb60] sm:$0xff]
  %v1378 = vld [vmem:[%s2 + $0xb70] sm:$0xff]
  %v1380 = vsel %vm179, %v1360, 0
  %v1383 = vsel %vm179, %v1370, 0
  %v1385 = vsel %vm179, %v1368, 0
  %1387 = vmatprep.subr.mxu0 0.0
  %1388 = vmatpush1.msra.mxu0 %v1371
  %1389 = vmatprep.subr.mxu0 0.0
  %1390 = vmatpush1.msra.mxu0 %v1372
  %1391 = vmatprep.subr.mxu0 0.0
  %1392 = vmatpush1.msra.mxu0 %v1373
  %1393 = vmatprep.subr.mxu0 0.0
  %1394 = vmatpush1.msra.mxu0 %v1374
  %1395 = vmatprep.subr.mxu0 0.0
  %1396 = vmatpush1.msra.mxu0 %v1375
  %1397 = vmatprep.subr.mxu0 0.0
  %1398 = vmatpush1.msra.mxu0 %v1376
  %1399 = vmatprep.subr.mxu0 0.0
  %1400 = vmatpush1.msra.mxu0 %v1377
  %1401 = vmatprep.subr.mxu0 0.0
  %1402 = vmatpush1.msra.mxu0 %v1378
  %1403 = vmatprep.subr.mxu0 0.0
  %1404 = vmatpush1.msra.mxu0 0.0
  %1405 = vmatprep.subr.mxu0 0.0
  %1406 = vmatpush1.msra.mxu0 0.0
  %1407 = vmatprep.subr.mxu0 0.0
  %1408 = vmatpush1.msra.mxu0 0.0
  %1409 = vmatprep.subr.mxu0 0.0
  %1410 = vmatpush1.msra.mxu0 0.0
  %1411 = vmatprep.subr.mxu0 0.0
  %1412 = vmatpush1.msra.mxu0 0.0
  %1413 = vmatprep.subr.mxu0 0.0
  %1414 = vmatpush1.msra.mxu0 0.0
  %1415 = vmatprep.subr.mxu0 0.0
  %1416 = vmatpush1.msra.mxu0 0.0
  %1417 = vmatprep.subr.mxu0 0.0
  %1418 = vmatpush1.msra.mxu0 0.0
  %1419 = vmatprep.subr.mxu0 0.0
  %1420 = vmatpush1.msra.mxu0 0.0
  %1421 = vmatprep.subr.mxu0 0.0
  %1422 = vmatpush1.msra.mxu0 0.0
  %1423 = vmatprep.subr.mxu0 0.0
  %1424 = vmatpush1.msra.mxu0 0.0
  %1425 = vmatprep.subr.mxu0 0.0
  %1426 = vmatpush1.msra.mxu0 0.0
  %1427 = vmatprep.subr.mxu0 0.0
  %1428 = vmatpush1.msra.mxu0 0.0
  %1429 = vmatprep.subr.mxu0 0.0
  %1430 = vmatpush1.msra.mxu0 0.0
  %1431 = vmatprep.subr.mxu0 0.0
  %1432 = vmatpush1.msra.mxu0 0.0
  %1433 = vmatprep.subr.mxu0 0.0
  %1434 = vmatpush1.msra.mxu0 0.0
  %1435 = vmatprep.subr.mxu0 0.0
  %1436 = vmatpush1.msra.mxu0 0.0
  %1437 = vmatprep.subr.mxu0 0.0
  %1438 = vmatpush1.msra.mxu0 0.0
  %1439 = vmatprep.subr.mxu0 0.0
  %1440 = vmatpush1.msra.mxu0 0.0
  %1441 = vmatprep.subr.mxu0 0.0
  %1442 = vmatpush1.msra.mxu0 0.0
  %1443 = vmatprep.subr.mxu0 0.0
  %1444 = vmatpush1.msra.mxu0 0.0
  %1445 = vmatprep.subr.mxu0 0.0
  %1446 = vmatpush1.msra.mxu0 0.0
  %1447 = vmatprep.subr.mxu0 0.0
  %1448 = vmatpush1.msra.mxu0 0.0
  %1449 = vmatprep.subr.mxu0 0.0
  %1450 = vmatpush1.msra.mxu0 0.0
  %1451 = vmatprep.mubr.f32.mxu0 0.0
  %1452 = vmatmul.mubr.f32.gmra.mrb[0].mxu0 %v1380
  %v1453 = vpop.f32.mrb[0].mxu0
  %v1454 = vadd.f32 0.0, %v1453
  %v1455 = vpop.f32.mrb[0].mxu0
  %1456 = vmatprep.mubr.f32.mxu0 0.0
  %1457 = vmatmul.mubr.f32.gmra.mrb[0].mxu0 %v1383
  %v1458 = vpop.f32.mrb[0].mxu0
  %v1459 = vadd.f32 0.0, %v1458
  %v1460 = vpop.f32.mrb[0].mxu0
  %1461 = vmatprep.mubr.f32.mxu0 0.0
  %1462 = vmatmul.mubr.f32.gmra.mrb[0].mxu0 %v1385
  %v1463 = vpop.f32.mrb[0].mxu0
  %v1464 = vadd.f32 0.0, %v1463
  %v1465 = vpop.f32.mrb[0].mxu0
  %1466 = vdwg.mxu0
  %v1467 = vmul.f32 %v1454, %v1454
  %v1468 = vmul.f32 %v1459, %v1459
  %v1471 = vrot.slane %v1467, 4
  %v1472 = vrot.slane %v1468, 4
  %v1473 = vsel %vm128, %v1471, %v1472
  %v1476 = vsub.f32 %v1459, %v1471
  %v1477 = vsub.f32 %v1464, %v1473
  %v1478 = vmax.f32 %v1476, 0.0
  %v1479 = vmax.f32 %v1477, 0.0
  %v1480 = vsub.f32 %v1360, %v1454
  %v1481 = vsub.f32 %v1361, %v1459
  %v1482 = vadd.f32 %v1478, 1e-05
  %v1483 = vadd.f32 %v1479, 1e-05
  %v1484 = vrsqrt.pop %v1482
  %v1485 = vrsqrt.pop %v1483
  %v1488 = vrot.slane %v1484, 4
  %v1489 = vrot.slane %v1485, 4
  %v1490 = vsel %vm128, %v1488, %v1489
  %v1493 = vmul.f32 %v1480, %v1490
  %v1494 = vmul.f32 %v1481, %v1489
  %v1495 = vld [vmem:[%s2 + $0xc50] sm:$0xff]
  %v1496 = vld [vmem:[%s2 + $0xc60] sm:$0xf]
  %v1497 = vld [vmem:[%s2 + $0x4c0] sm:$0xff]
  %v1498 = vld [vmem:[%s2 + $0x4d0] sm:$0xff]
  %v1499 = vld [vmem:[%s2 + $0x4e0] sm:$0xff]
  %v1500 = vld [vmem:[%s2 + $0x4f0] sm:$0xff]
  %v1501 = vld [vmem:[%s2 + $0x500] sm:$0xff]
  %v1502 = vld [vmem:[%s2 + $0x510] sm:$0xff]
  %v1503 = vld [vmem:[%s2 + $0x520] sm:$0xff]
  %v1504 = vld [vmem:[%s2 + $0x530] sm:$0xff]
  %v1506 = vsel %vm179, %v1493, 0
  %v1509 = vsel %vm179, %v1494, 0
  %1511 = vmatprep.subr.mxu0 0.0
  %1512 = vmatpush1.msra.mxu0 %v1497
  %1513 = vmatprep.subr.mxu0 0.0
  %1514 = vmatpush1.msra.mxu0 %v1498
  %1515 = vmatprep.subr.mxu0 0.0
  %1516 = vmatpush1.msra.mxu0 %v1499
  %1517 = vmatprep.subr.mxu0 0.0
  %1518 = vmatpush1.msra.mxu0 %v1500
  %1519 = vmatprep.subr.mxu0 0.0
  %1520 = vmatpush1.msra.mxu0 %v1501
  %1521 = vmatprep.subr.mxu0 0.0
  %1522 = vmatpush1.msra.mxu0 %v1502
  %1523 = vmatprep.subr.mxu0 0.0
  %1524 = vmatpush1.msra.mxu0 %v1503
  %1525 = vmatprep.subr.mxu0 0.0
  %1526 = vmatpush1.msra.mxu0 %v1504
  %1527 = vmatprep.subr.mxu0 0.0
  %1528 = vmatpush1.msra.mxu0 0.0
  %1529 = vmatprep.subr.mxu0 0.0
  %1530 = vmatpush1.msra.mxu0 0.0
  %1531 = vmatprep.subr.mxu0 0.0
  %1532 = vmatpush1.msra.mxu0 0.0
  %1533 = vmatprep.subr.mxu0 0.0
  %1534 = vmatpush1.msra.mxu0 0.0
  %1535 = vmatprep.subr.mxu0 0.0
  %1536 = vmatpush1.msra.mxu0 0.0
  %1537 = vmatprep.subr.mxu0 0.0
  %1538 = vmatpush1.msra.mxu0 0.0
  %1539 = vmatprep.subr.mxu0 0.0
  %1540 = vmatpush1.msra.mxu0 0.0
  %1541 = vmatprep.subr.mxu0 0.0
  %1542 = vmatpush1.msra.mxu0 0.0
  %1543 = vmatprep.subr.mxu0 0.0
  %1544 = vmatpush1.msra.mxu0 0.0
  %1545 = vmatprep.subr.mxu0 0.0
  %1546 = vmatpush1.msra.mxu0 0.0
  %1547 = vmatprep.subr.mxu0 0.0
  %1548 = vmatpush1.msra.mxu0 0.0
  %1549 = vmatprep.subr.mxu0 0.0
  %1550 = vmatpush1.msra.mxu0 0.0
  %1551 = vmatprep.subr.mxu0 0.0
  %1552 = vmatpush1.msra.mxu0 0.0
  %1553 = vmatprep.subr.mxu0 0.0
  %1554 = vmatpush1.msra.mxu0 0.0
  %1555 = vmatprep.subr.mxu0 0.0
  %1556 = vmatpush1.msra.mxu0 0.0
  %1557 = vmatprep.subr.mxu0 0.0
  %1558 = vmatpush1.msra.mxu0 0.0
  %1559 = vmatprep.subr.mxu0 0.0
  %1560 = vmatpush1.msra.mxu0 0.0
  %1561 = vmatprep.subr.mxu0 0.0
  %1562 = vmatpush1.msra.mxu0 0.0
  %1563 = vmatprep.subr.mxu0 0.0
  %1564 = vmatpush1.msra.mxu0 0.0
  %1565 = vmatprep.subr.mxu0 0.0
  %1566 = vmatpush1.msra.mxu0 0.0
  %1567 = vmatprep.subr.mxu0 0.0
  %1568 = vmatpush1.msra.mxu0 0.0
  %1569 = vmatprep.subr.mxu0 0.0
  %1570 = vmatpush1.msra.mxu0 0.0
  %1571 = vmatprep.subr.mxu0 0.0
  %1572 = vmatpush1.msra.mxu0 0.0
  %1573 = vmatprep.subr.mxu0 0.0
  %1574 = vmatpush1.msra.mxu0 0.0
  %1575 = vmatprep.mubr.f32.mxu0 0.0
  %1576 = vmatmul.mubr.f32.gmra.mrb[0].mxu0 %v1506
  %v1577 = vpop.f32.mrb[0].mxu0
  %v1578 = vadd.f32 0.0, %v1577
  %v1579 = vpop.f32.mrb[0].mxu0
  %1580 = vmatprep.mubr.f32.mxu0 0.0
  %1581 = vmatmul.mubr.f32.gmra.mrb[0].mxu0 %v1509
  %v1582 = vpop.f32.mrb[0].mxu0
  %v1583 = vadd.f32 0.0, %v1582
  %v1584 = vpop.f32.mrb[0].mxu0
  %1585 = vdwg.mxu0
  %1587 = vset.pattern.permute.xlu0 12
  %1588 = vperm.xlu0 %1587, %v1495
  %v1589 = vpop.permute.xlu0 %1588
  %1592 = vset.pattern.permute.xlu0 12
  %1593 = vperm.xlu0 %1592, %v1496
  %v1594 = vpop.permute.xlu0 %1593
  %v1596 = vsel %vm584, %v1495, 0
  %v1598 = vsel %vm584, %v1496, 0
  %v1601 = vsel %vm128, %v1583, 0
  %1603 = vmatprep.subr.mxu0 0.0
  %1604 = vmatpush1.msra.mxu0 %v1578
  %1605 = vmatprep.subr.mxu0 0.0
  %1606 = vmatpush1.msra.mxu0 %v1601
  %1607 = vmatprep.subr.mxu0 0.0
  %1608 = vmatpush1.msra.mxu0 0.0
  %1609 = vmatprep.subr.mxu0 0.0
  %1610 = vmatpush1.msra.mxu0 0.0
  %1611 = vmatprep.subr.mxu0 0.0
  %1612 = vmatpush1.msra.mxu0 0.0
  %1613 = vmatprep.subr.mxu0 0.0
  %1614 = vmatpush1.msra.mxu0 0.0
  %1615 = vmatprep.subr.mxu0 0.0
  %1616 = vmatpush1.msra.mxu0 0.0
  %1617 = vmatprep.subr.mxu0 0.0
  %1618 = vmatpush1.msra.mxu0 0.0
  %1619 = vmatprep.subr.mxu0 0.0
  %1620 = vmatpush1.msra.mxu0 0.0
  %1621 = vmatprep.subr.mxu0 0.0
  %1622 = vmatpush1.msra.mxu0 0.0
  %1623 = vmatprep.subr.mxu0 0.0
  %1624 = vmatpush1.msra.mxu0 0.0
  %1625 = vmatprep.subr.mxu0 0.0
  %1626 = vmatpush1.msra.mxu0 0.0
  %1627 = vmatprep.subr.mxu0 0.0
  %1628 = vmatpush1.msra.mxu0 0.0
  %1629 = vmatprep.subr.mxu0 0.0
  %1630 = vmatpush1.msra.mxu0 0.0
  %1631 = vmatprep.subr.mxu0 0.0
  %1632 = vmatpush1.msra.mxu0 0.0
  %1633 = vmatprep.subr.mxu0 0.0
  %1634 = vmatpush1.msra.mxu0 0.0
  %1635 = vmatprep.subr.mxu0 0.0
  %1636 = vmatpush1.msra.mxu0 0.0
  %1637 = vmatprep.subr.mxu0 0.0
  %1638 = vmatpush1.msra.mxu0 0.0
  %1639 = vmatprep.subr.mxu0 0.0
  %1640 = vmatpush1.msra.mxu0 0.0
  %1641 = vmatprep.subr.mxu0 0.0
  %1642 = vmatpush1.msra.mxu0 0.0
  %1643 = vmatprep.subr.mxu0 0.0
  %1644 = vmatpush1.msra.mxu0 0.0
  %1645 = vmatprep.subr.mxu0 0.0
  %1646 = vmatpush1.msra.mxu0 0.0
  %1647 = vmatprep.subr.mxu0 0.0
  %1648 = vmatpush1.msra.mxu0 0.0
  %1649 = vmatprep.subr.mxu0 0.0
  %1650 = vmatpush1.msra.mxu0 0.0
  %1651 = vmatprep.subr.mxu0 0.0
  %1652 = vmatpush1.msra.mxu0 0.0
  %1653 = vmatprep.subr.mxu0 0.0
  %1654 = vmatpush1.msra.mxu0 0.0
  %1655 = vmatprep.subr.mxu0 0.0
  %1656 = vmatpush1.msra.mxu0 0.0
  %1657 = vmatprep.subr.mxu0 0.0
  %1658 = vmatpush1.msra.mxu0 0.0
  %1659 = vmatprep.subr.mxu0 0.0
  %1660 = vmatpush1.msra.mxu0 0.0
  %1661 = vmatprep.subr.mxu0 0.0
  %1662 = vmatpush1.msra.mxu0 0.0
  %1663 = vmatprep.subr.mxu0 0.0
  %1664 = vmatpush1.msra.mxu0 0.0
  %1665 = vmatprep.subr.mxu0 0.0
  %1666 = vmatpush1.msra.mxu0 0.0
  %1667 = vmatprep.mubr.f32.mxu0 0.0
  %1668 = vmatmul.mubr.f32.gmra.mrb[0].mxu0 %v1596
  %v1669 = vpop.f32.mrb[0].mxu0
  %v1670 = vadd.f32 %v1589, %v1669
  %v1671 = vpop.f32.mrb[0].mxu0
  %1672 = vmatprep.mubr.f32.mxu0 0.0
  %1673 = vmatmul.mubr.f32.gmra.mrb[0].mxu0 %v1598
  %v1674 = vpop.f32.mrb[0].mxu0
  %v1675 = vadd.f32 %v1594, %v1674
  %v1676 = vpop.f32.mrb[0].mxu0
  %1677 = vdwg.mxu0
  %v1678 = vmax.f32 %v1670, 0.0
  %v1679 = vmax.f32 %v1675, 0.0
  %v1680 = vld [vmem:[%s2 + $0xc70] sm:$0xff]
  %v1681 = vld [vmem:[%s2 + $0xc80] sm:$0xf]
  %v1682 = vld [vmem:[%s2 + $0x540] sm:$0xff]
  %v1683 = vld [vmem:[%s2 + $0x550] sm:$0xff]
  %v1684 = vld [vmem:[%s2 + $0x560] sm:$0xff]
  %v1685 = vld [vmem:[%s2 + $0x570] sm:$0xff]
  %vm1686 = vcmask 261120
  %v1688 = vsel %vm1686, %v1678, 0
  %v1691 = vsel %vm1686, %v1679, 0
  %1693 = vmatprep.subr.mxu0 0.0
  %1694 = vmatpush1.msra.mxu0 %v1682
  %1695 = vmatprep.subr.mxu0 0.0
  %1696 = vmatpush1.msra.mxu0 %v1683
  %1697 = vmatprep.subr.mxu0 0.0
  %1698 = vmatpush1.msra.mxu0 %v1684
  %1699 = vmatprep.subr.mxu0 0.0
  %1700 = vmatpush1.msra.mxu0 %v1685
  %1701 = vmatprep.subr.mxu0 0.0
  %1702 = vmatpush1.msra.mxu0 0.0
  %1703 = vmatprep.subr.mxu0 0.0
  %1704 = vmatpush1.msra.mxu0 0.0
  %1705 = vmatprep.subr.mxu0 0.0
  %1706 = vmatpush1.msra.mxu0 0.0
  %1707 = vmatprep.subr.mxu0 0.0
  %1708 = vmatpush1.msra.mxu0 0.0
  %1709 = vmatprep.subr.mxu0 0.0
  %1710 = vmatpush1.msra.mxu0 0.0
  %1711 = vmatprep.subr.mxu0 0.0
  %1712 = vmatpush1.msra.mxu0 0.0
  %1713 = vmatprep.subr.mxu0 0.0
  %1714 = vmatpush1.msra.mxu0 0.0
  %1715 = vmatprep.subr.mxu0 0.0
  %1716 = vmatpush1.msra.mxu0 0.0
  %1717 = vmatprep.subr.mxu0 0.0
  %1718 = vmatpush1.msra.mxu0 0.0
  %1719 = vmatprep.subr.mxu0 0.0
  %1720 = vmatpush1.msra.mxu0 0.0
  %1721 = vmatprep.subr.mxu0 0.0
  %1722 = vmatpush1.msra.mxu0 0.0
  %1723 = vmatprep.subr.mxu0 0.0
  %1724 = vmatpush1.msra.mxu0 0.0
  %1725 = vmatprep.subr.mxu0 0.0
  %1726 = vmatpush1.msra.mxu0 0.0
  %1727 = vmatprep.subr.mxu0 0.0
  %1728 = vmatpush1.msra.mxu0 0.0
  %1729 = vmatprep.subr.mxu0 0.0
  %1730 = vmatpush1.msra.mxu0 0.0
  %1731 = vmatprep.subr.mxu0 0.0
  %1732 = vmatpush1.msra.mxu0 0.0
  %1733 = vmatprep.subr.mxu0 0.0
  %1734 = vmatpush1.msra.mxu0 0.0
  %1735 = vmatprep.subr.mxu0 0.0
  %1736 = vmatpush1.msra.mxu0 0.0
  %1737 = vmatprep.subr.mxu0 0.0
  %1738 = vmatpush1.msra.mxu0 0.0
  %1739 = vmatprep.subr.mxu0 0.0
  %1740 = vmatpush1.msra.mxu0 0.0
  %1741 = vmatprep.subr.mxu0 0.0
  %1742 = vmatpush1.msra.mxu0 0.0
  %1743 = vmatprep.subr.mxu0 0.0
  %1744 = vmatpush1.msra.mxu0 0.0
  %1745 = vmatprep.subr.mxu0 0.0
  %1746 = vmatpush1.msra.mxu0 0.0
  %1747 = vmatprep.subr.mxu0 0.0
  %1748 = vmatpush1.msra.mxu0 0.0
  %1749 = vmatprep.subr.mxu0 0.0
  %1750 = vmatpush1.msra.mxu0 0.0
  %1751 = vmatprep.subr.mxu0 0.0
  %1752 = vmatpush1.msra.mxu0 0.0
  %1753 = vmatprep.subr.mxu0 0.0
  %1754 = vmatpush1.msra.mxu0 0.0
  %1755 = vmatprep.subr.mxu0 0.0
  %1756 = vmatpush1.msra.mxu0 0.0
  %1757 = vmatprep.mubr.f32.mxu0 0.0
  %1758 = vmatmul.mubr.f32.gmra.mrb[0].mxu0 %v1688
  %v1759 = vpop.f32.mrb[0].mxu0
  %v1760 = vadd.f32 0.0, %v1759
  %v1761 = vpop.f32.mrb[0].mxu0
  %1762 = vmatprep.mubr.f32.mxu0 0.0
  %1763 = vmatmul.mubr.f32.gmra.mrb[0].mxu0 %v1691
  %v1764 = vpop.f32.mrb[0].mxu0
  %v1765 = vadd.f32 0.0, %v1764
  %v1766 = vpop.f32.mrb[0].mxu0
  %1767 = vdwg.mxu0
  %1769 = vset.pattern.permute.xlu0 12
  %1770 = vperm.xlu0 %1769, %v1680
  %v1771 = vpop.permute.xlu0 %1770
  %1774 = vset.pattern.permute.xlu0 12
  %1775 = vperm.xlu0 %1774, %v1681
  %v1776 = vpop.permute.xlu0 %1775
  %v1778 = vsel %vm584, %v1680, 0
  %v1780 = vsel %vm584, %v1681, 0
  %v1783 = vsel %vm128, %v1765, 0
  %1785 = vmatprep.subr.mxu0 0.0
  %1786 = vmatpush1.msra.mxu0 %v1760
  %1787 = vmatprep.subr.mxu0 0.0
  %1788 = vmatpush1.msra.mxu0 %v1783
  %1789 = vmatprep.subr.mxu0 0.0
  %1790 = vmatpush1.msra.mxu0 0.0
  %1791 = vmatprep.subr.mxu0 0.0
  %1792 = vmatpush1.msra.mxu0 0.0
  %1793 = vmatprep.subr.mxu0 0.0
  %1794 = vmatpush1.msra.mxu0 0.0
  %1795 = vmatprep.subr.mxu0 0.0
  %1796 = vmatpush1.msra.mxu0 0.0
  %1797 = vmatprep.subr.mxu0 0.0
  %1798 = vmatpush1.msra.mxu0 0.0
  %1799 = vmatprep.subr.mxu0 0.0
  %1800 = vmatpush1.msra.mxu0 0.0
  %1801 = vmatprep.subr.mxu0 0.0
  %1802 = vmatpush1.msra.mxu0 0.0
  %1803 = vmatprep.subr.mxu0 0.0
  %1804 = vmatpush1.msra.mxu0 0.0
  %1805 = vmatprep.subr.mxu0 0.0
  %1806 = vmatpush1.msra.mxu0 0.0
  %1807 = vmatprep.subr.mxu0 0.0
  %1808 = vmatpush1.msra.mxu0 0.0
  %1809 = vmatprep.subr.mxu0 0.0
  %1810 = vmatpush1.msra.mxu0 0.0
  %1811 = vmatprep.subr.mxu0 0.0
  %1812 = vmatpush1.msra.mxu0 0.0
  %1813 = vmatprep.subr.mxu0 0.0
  %1814 = vmatpush1.msra.mxu0 0.0
  %1815 = vmatprep.subr.mxu0 0.0
  %1816 = vmatpush1.msra.mxu0 0.0
  %1817 = vmatprep.subr.mxu0 0.0
  %1818 = vmatpush1.msra.mxu0 0.0
  %1819 = vmatprep.subr.mxu0 0.0
  %1820 = vmatpush1.msra.mxu0 0.0
  %1821 = vmatprep.subr.mxu0 0.0
  %1822 = vmatpush1.msra.mxu0 0.0
  %1823 = vmatprep.subr.mxu0 0.0
  %1824 = vmatpush1.msra.mxu0 0.0
  %1825 = vmatprep.subr.mxu0 0.0
  %1826 = vmatpush1.msra.mxu0 0.0
  %1827 = vmatprep.subr.mxu0 0.0
  %1828 = vmatpush1.msra.mxu0 0.0
  %1829 = vmatprep.subr.mxu0 0.0
  %1830 = vmatpush1.msra.mxu0 0.0
  %1831 = vmatprep.subr.mxu0 0.0
  %1832 = vmatpush1.msra.mxu0 0.0
  %1833 = vmatprep.subr.mxu0 0.0
  %1834 = vmatpush1.msra.mxu0 0.0
  %1835 = vmatprep.subr.mxu0 0.0
  %1836 = vmatpush1.msra.mxu0 0.0
  %1837 = vmatprep.subr.mxu0 0.0
  %1838 = vmatpush1.msra.mxu0 0.0
  %1839 = vmatprep.subr.mxu0 0.0
  %1840 = vmatpush1.msra.mxu0 0.0
  %1841 = vmatprep.subr.mxu0 0.0
  %1842 = vmatpush1.msra.mxu0 0.0
  %1843 = vmatprep.subr.mxu0 0.0
  %1844 = vmatpush1.msra.mxu0 0.0
  %1845 = vmatprep.subr.mxu0 0.0
  %1846 = vmatpush1.msra.mxu0 0.0
  %1847 = vmatprep.subr.mxu0 0.0
  %1848 = vmatpush1.msra.mxu0 0.0
  %1849 = vmatprep.mubr.f32.mxu0 0.0
  %1850 = vmatmul.mubr.f32.gmra.mrb[0].mxu0 %v1778
  %v1851 = vpop.f32.mrb[0].mxu0
  %v1852 = vadd.f32 %v1771, %v1851
  %v1853 = vpop.f32.mrb[0].mxu0
  %1854 = vmatprep.mubr.f32.mxu0 0.0
  %1855 = vmatmul.mubr.f32.gmra.mrb[0].mxu0 %v1780
  %v1856 = vpop.f32.mrb[0].mxu0
  %v1857 = vadd.f32 %v1776, %v1856
  %v1858 = vpop.f32.mrb[0].mxu0
  %1859 = vdwg.mxu0
  %v1860 = vmax.f32 %v1852, 0.0
  %v1861 = vmax.f32 %v1857, 0.0
  %v1862 = vmul.f32 %v1860, %v1860
  %v1863 = vmul.f32 %v1861, %v1861
  %v1866 = vrot.slane %v1862, 4
  %v1867 = vrot.slane %v1863, 4
  %v1868 = vsel %vm128, %v1866, %v1867
  %v1870 = vsel %vm128, %v1861, %v1866
  %v1871 = vld [vmem:[%s2 + $0xb80] sm:$0xff]
  %v1872 = vld [vmem:[%s2 + $0xb90] sm:$0xff]
  %v1873 = vld [vmem:[%s2 + $0xba0] sm:$0xff]
  %v1874 = vld [vmem:[%s2 + $0xbb0] sm:$0xff]
  %v1876 = vsel %vm1686, %v1860, 0
  %v1879 = vsel %vm1686, %v1870, 0
  %v1881 = vsel %vm1686, %v1868, 0
  %1883 = vmatprep.subr.mxu0 0.0
  %1884 = vmatpush1.msra.mxu0 %v1871
  %1885 = vmatprep.subr.mxu0 0.0
  %1886 = vmatpush1.msra.mxu0 %v1872
  %1887 = vmatprep.subr.mxu0 0.0
  %1888 = vmatpush1.msra.mxu0 %v1873
  %1889 = vmatprep.subr.mxu0 0.0
  %1890 = vmatpush1.msra.mxu0 %v1874
  %1891 = vmatprep.subr.mxu0 0.0
  %1892 = vmatpush1.msra.mxu0 0.0
  %1893 = vmatprep.subr.mxu0 0.0
  %1894 = vmatpush1.msra.mxu0 0.0
  %1895 = vmatprep.subr.mxu0 0.0
  %1896 = vmatpush1.msra.mxu0 0.0
  %1897 = vmatprep.subr.mxu0 0.0
  %1898 = vmatpush1.msra.mxu0 0.0
  %1899 = vmatprep.subr.mxu0 0.0
  %1900 = vmatpush1.msra.mxu0 0.0
  %1901 = vmatprep.subr.mxu0 0.0
  %1902 = vmatpush1.msra.mxu0 0.0
  %1903 = vmatprep.subr.mxu0 0.0
  %1904 = vmatpush1.msra.mxu0 0.0
  %1905 = vmatprep.subr.mxu0 0.0
  %1906 = vmatpush1.msra.mxu0 0.0
  %1907 = vmatprep.subr.mxu0 0.0
  %1908 = vmatpush1.msra.mxu0 0.0
  %1909 = vmatprep.subr.mxu0 0.0
  %1910 = vmatpush1.msra.mxu0 0.0
  %1911 = vmatprep.subr.mxu0 0.0
  %1912 = vmatpush1.msra.mxu0 0.0
  %1913 = vmatprep.subr.mxu0 0.0
  %1914 = vmatpush1.msra.mxu0 0.0
  %1915 = vmatprep.subr.mxu0 0.0
  %1916 = vmatpush1.msra.mxu0 0.0
  %1917 = vmatprep.subr.mxu0 0.0
  %1918 = vmatpush1.msra.mxu0 0.0
  %1919 = vmatprep.subr.mxu0 0.0
  %1920 = vmatpush1.msra.mxu0 0.0
  %1921 = vmatprep.subr.mxu0 0.0
  %1922 = vmatpush1.msra.mxu0 0.0
  %1923 = vmatprep.subr.mxu0 0.0
  %1924 = vmatpush1.msra.mxu0 0.0
  %1925 = vmatprep.subr.mxu0 0.0
  %1926 = vmatpush1.msra.mxu0 0.0
  %1927 = vmatprep.subr.mxu0 0.0
  %1928 = vmatpush1.msra.mxu0 0.0
  %1929 = vmatprep.subr.mxu0 0.0
  %1930 = vmatpush1.msra.mxu0 0.0
  %1931 = vmatprep.subr.mxu0 0.0
  %1932 = vmatpush1.msra.mxu0 0.0
  %1933 = vmatprep.subr.mxu0 0.0
  %1934 = vmatpush1.msra.mxu0 0.0
  %1935 = vmatprep.subr.mxu0 0.0
  %1936 = vmatpush1.msra.mxu0 0.0
  %1937 = vmatprep.subr.mxu0 0.0
  %1938 = vmatpush1.msra.mxu0 0.0
  %1939 = vmatprep.subr.mxu0 0.0
  %1940 = vmatpush1.msra.mxu0 0.0
  %1941 = vmatprep.subr.mxu0 0.0
  %1942 = vmatpush1.msra.mxu0 0.0
  %1943 = vmatprep.subr.mxu0 0.0
  %1944 = vmatpush1.msra.mxu0 0.0
  %1945 = vmatprep.subr.mxu0 0.0
  %1946 = vmatpush1.msra.mxu0 0.0
  %1947 = vmatprep.mubr.f32.mxu0 0.0
  %1948 = vmatmul.mubr.f32.gmra.mrb[0].mxu0 %v1876
  %v1949 = vpop.f32.mrb[0].mxu0
  %v1950 = vadd.f32 0.0, %v1949
  %v1951 = vpop.f32.mrb[0].mxu0
  %1952 = vmatprep.mubr.f32.mxu0 0.0
  %1953 = vmatmul.mubr.f32.gmra.mrb[0].mxu0 %v1879
  %v1954 = vpop.f32.mrb[0].mxu0
  %v1955 = vadd.f32 0.0, %v1954
  %v1956 = vpop.f32.mrb[0].mxu0
  %1957 = vmatprep.mubr.f32.mxu0 0.0
  %1958 = vmatmul.mubr.f32.gmra.mrb[0].mxu0 %v1881
  %v1959 = vpop.f32.mrb[0].mxu0
  %v1960 = vadd.f32 0.0, %v1959
  %v1961 = vpop.f32.mrb[0].mxu0
  %1962 = vdwg.mxu0
  %v1963 = vmul.f32 %v1950, %v1950
  %v1964 = vmul.f32 %v1955, %v1955
  %v1967 = vrot.slane %v1963, 4
  %v1968 = vrot.slane %v1964, 4
  %v1969 = vsel %vm128, %v1967, %v1968
  %v1972 = vsub.f32 %v1955, %v1967
  %v1973 = vsub.f32 %v1960, %v1969
  %v1974 = vmax.f32 %v1972, 0.0
  %v1975 = vmax.f32 %v1973, 0.0
  %v1976 = vsub.f32 %v1860, %v1950
  %v1977 = vsub.f32 %v1861, %v1955
  %v1978 = vadd.f32 %v1974, 1e-05
  %v1979 = vadd.f32 %v1975, 1e-05
  %v1980 = vrsqrt.pop %v1978
  %v1981 = vrsqrt.pop %v1979
  %v1984 = vrot.slane %v1980, 4
  %v1985 = vrot.slane %v1981, 4
  %v1986 = vsel %vm128, %v1984, %v1985
  %v1989 = vmul.f32 %v1976, %v1986
  %v1990 = vmul.f32 %v1977, %v1985
  %v1991 = vld [vmem:[%s2 + $0xc90] sm:$0xff]
  %v1992 = vld [vmem:[%s2 + $0xca0] sm:$0xff]
  %v1993 = vld [vmem:[%s2 + $0xcb0] sm:$0xff]
  %v1994 = vld [vmem:[%s2 + $0x580] sm:$0xff]
  %v1995 = vld [vmem:[%s2 + $0x590] sm:$0xff]
  %v1996 = vld [vmem:[%s2 + $0x5a0] sm:$0xff]
  %v1997 = vld [vmem:[%s2 + $0x5b0] sm:$0xff]
  %v1999 = vsel %vm1686, %v1989, 0
  %v2002 = vsel %vm1686, %v1990, 0
  %2004 = vmatprep.subr.mxu0 0.0
  %2005 = vmatpush1.msra.mxu0 %v1994
  %2006 = vmatprep.subr.mxu0 0.0
  %2007 = vmatpush1.msra.mxu0 %v1995
  %2008 = vmatprep.subr.mxu0 0.0
  %2009 = vmatpush1.msra.mxu0 %v1996
  %2010 = vmatprep.subr.mxu0 0.0
  %2011 = vmatpush1.msra.mxu0 %v1997
  %2012 = vmatprep.subr.mxu0 0.0
  %2013 = vmatpush1.msra.mxu0 0.0
  %2014 = vmatprep.subr.mxu0 0.0
  %2015 = vmatpush1.msra.mxu0 0.0
  %2016 = vmatprep.subr.mxu0 0.0
  %2017 = vmatpush1.msra.mxu0 0.0
  %2018 = vmatprep.subr.mxu0 0.0
  %2019 = vmatpush1.msra.mxu0 0.0
  %2020 = vmatprep.subr.mxu0 0.0
  %2021 = vmatpush1.msra.mxu0 0.0
  %2022 = vmatprep.subr.mxu0 0.0
  %2023 = vmatpush1.msra.mxu0 0.0
  %2024 = vmatprep.subr.mxu0 0.0
  %2025 = vmatpush1.msra.mxu0 0.0
  %2026 = vmatprep.subr.mxu0 0.0
  %2027 = vmatpush1.msra.mxu0 0.0
  %2028 = vmatprep.subr.mxu0 0.0
  %2029 = vmatpush1.msra.mxu0 0.0
  %2030 = vmatprep.subr.mxu0 0.0
  %2031 = vmatpush1.msra.mxu0 0.0
  %2032 = vmatprep.subr.mxu0 0.0
  %2033 = vmatpush1.msra.mxu0 0.0
  %2034 = vmatprep.subr.mxu0 0.0
  %2035 = vmatpush1.msra.mxu0 0.0
  %2036 = vmatprep.subr.mxu0 0.0
  %2037 = vmatpush1.msra.mxu0 0.0
  %2038 = vmatprep.subr.mxu0 0.0
  %2039 = vmatpush1.msra.mxu0 0.0
  %2040 = vmatprep.subr.mxu0 0.0
  %2041 = vmatpush1.msra.mxu0 0.0
  %2042 = vmatprep.subr.mxu0 0.0
  %2043 = vmatpush1.msra.mxu0 0.0
  %2044 = vmatprep.subr.mxu0 0.0
  %2045 = vmatpush1.msra.mxu0 0.0
  %2046 = vmatprep.subr.mxu0 0.0
  %2047 = vmatpush1.msra.mxu0 0.0
  %2048 = vmatprep.subr.mxu0 0.0
  %2049 = vmatpush1.msra.mxu0 0.0
  %2050 = vmatprep.subr.mxu0 0.0
  %2051 = vmatpush1.msra.mxu0 0.0
  %2052 = vmatprep.subr.mxu0 0.0
  %2053 = vmatpush1.msra.mxu0 0.0
  %2054 = vmatprep.subr.mxu0 0.0
  %2055 = vmatpush1.msra.mxu0 0.0
  %2056 = vmatprep.subr.mxu0 0.0
  %2057 = vmatpush1.msra.mxu0 0.0
  %2058 = vmatprep.subr.mxu0 0.0
  %2059 = vmatpush1.msra.mxu0 0.0
  %2060 = vmatprep.subr.mxu0 0.0
  %2061 = vmatpush1.msra.mxu0 0.0
  %2062 = vmatprep.subr.mxu0 0.0
  %2063 = vmatpush1.msra.mxu0 0.0
  %2064 = vmatprep.subr.mxu0 0.0
  %2065 = vmatpush1.msra.mxu0 0.0
  %2066 = vmatprep.subr.mxu0 0.0
  %2067 = vmatpush1.msra.mxu0 0.0
  %2068 = vmatprep.mubr.f32.mxu0 0.0
  %2069 = vmatmul.mubr.f32.gmra.mrb[0].mxu0 %v1999
  %v2070 = vpop.f32.mrb[0].mxu0
  %v2071 = vadd.f32 0.0, %v2070
  %v2072 = vpop.f32.mrb[0].mxu0
  %2073 = vmatprep.mubr.f32.mxu0 0.0
  %2074 = vmatmul.mubr.f32.gmra.mrb[0].mxu0 %v2002
  %v2075 = vpop.f32.mrb[0].mxu0
  %v2076 = vadd.f32 0.0, %v2075
  %v2077 = vpop.f32.mrb[0].mxu0
  %2078 = vdwg.mxu0
  %2080 = vset.pattern.permute.xlu0 12
  %2081 = vperm.xlu0 %2080, %v1991
  %v2082 = vpop.permute.xlu0 %2081
  %2085 = vset.pattern.permute.xlu0 12
  %2086 = vperm.xlu0 %2085, %v1992
  %v2087 = vpop.permute.xlu0 %2086
  %2090 = vset.pattern.permute.xlu0 12
  %2091 = vperm.xlu0 %2090, %v1993
  %v2092 = vpop.permute.xlu0 %2091
  %v2094 = vsel %vm584, %v1991, 0
  %v2096 = vsel %vm584, %v1992, 0
  %v2098 = vsel %vm584, %v1993, 0
  %v2101 = vsel %vm128, %v2076, 0
  %2103 = vmatprep.subr.mxu0 0.0
  %2104 = vmatpush1.msra.mxu0 %v2071
  %2105 = vmatprep.subr.mxu0 0.0
  %2106 = vmatpush1.msra.mxu0 %v2101
  %2107 = vmatprep.subr.mxu0 0.0
  %2108 = vmatpush1.msra.mxu0 0.0
  %2109 = vmatprep.subr.mxu0 0.0
  %2110 = vmatpush1.msra.mxu0 0.0
  %2111 = vmatprep.subr.mxu0 0.0
  %2112 = vmatpush1.msra.mxu0 0.0
  %2113 = vmatprep.subr.mxu0 0.0
  %2114 = vmatpush1.msra.mxu0 0.0
  %2115 = vmatprep.subr.mxu0 0.0
  %2116 = vmatpush1.msra.mxu0 0.0
  %2117 = vmatprep.subr.mxu0 0.0
  %2118 = vmatpush1.msra.mxu0 0.0
  %2119 = vmatprep.subr.mxu0 0.0
  %2120 = vmatpush1.msra.mxu0 0.0
  %2121 = vmatprep.subr.mxu0 0.0
  %2122 = vmatpush1.msra.mxu0 0.0
  %2123 = vmatprep.subr.mxu0 0.0
  %2124 = vmatpush1.msra.mxu0 0.0
  %2125 = vmatprep.subr.mxu0 0.0
  %2126 = vmatpush1.msra.mxu0 0.0
  %2127 = vmatprep.subr.mxu0 0.0
  %2128 = vmatpush1.msra.mxu0 0.0
  %2129 = vmatprep.subr.mxu0 0.0
  %2130 = vmatpush1.msra.mxu0 0.0
  %2131 = vmatprep.subr.mxu0 0.0
  %2132 = vmatpush1.msra.mxu0 0.0
  %2133 = vmatprep.subr.mxu0 0.0
  %2134 = vmatpush1.msra.mxu0 0.0
  %2135 = vmatprep.subr.mxu0 0.0
  %2136 = vmatpush1.msra.mxu0 0.0
  %2137 = vmatprep.subr.mxu0 0.0
  %2138 = vmatpush1.msra.mxu0 0.0
  %2139 = vmatprep.subr.mxu0 0.0
  %2140 = vmatpush1.msra.mxu0 0.0
  %2141 = vmatprep.subr.mxu0 0.0
  %2142 = vmatpush1.msra.mxu0 0.0
  %2143 = vmatprep.subr.mxu0 0.0
  %2144 = vmatpush1.msra.mxu0 0.0
  %2145 = vmatprep.subr.mxu0 0.0
  %2146 = vmatpush1.msra.mxu0 0.0
  %2147 = vmatprep.subr.mxu0 0.0
  %2148 = vmatpush1.msra.mxu0 0.0
  %2149 = vmatprep.subr.mxu0 0.0
  %2150 = vmatpush1.msra.mxu0 0.0
  %2151 = vmatprep.subr.mxu0 0.0
  %2152 = vmatpush1.msra.mxu0 0.0
  %2153 = vmatprep.subr.mxu0 0.0
  %2154 = vmatpush1.msra.mxu0 0.0
  %2155 = vmatprep.subr.mxu0 0.0
  %2156 = vmatpush1.msra.mxu0 0.0
  %2157 = vmatprep.subr.mxu0 0.0
  %2158 = vmatpush1.msra.mxu0 0.0
  %2159 = vmatprep.subr.mxu0 0.0
  %2160 = vmatpush1.msra.mxu0 0.0
  %2161 = vmatprep.subr.mxu0 0.0
  %2162 = vmatpush1.msra.mxu0 0.0
  %2163 = vmatprep.subr.mxu0 0.0
  %2164 = vmatpush1.msra.mxu0 0.0
  %2165 = vmatprep.subr.mxu0 0.0
  %2166 = vmatpush1.msra.mxu0 0.0
  %2167 = vmatprep.mubr.f32.mxu0 0.0
  %2168 = vmatmul.mubr.f32.gmra.mrb[0].mxu0 %v2094
  %v2169 = vpop.f32.mrb[0].mxu0
  %v2170 = vadd.f32 %v2082, %v2169
  %v2171 = vpop.f32.mrb[0].mxu0
  %2172 = vmatprep.mubr.f32.mxu0 0.0
  %2173 = vmatmul.mubr.f32.gmra.mrb[0].mxu0 %v2096
  %v2174 = vpop.f32.mrb[0].mxu0
  %v2175 = vadd.f32 %v2087, %v2174
  %v2176 = vpop.f32.mrb[0].mxu0
  %2177 = vmatprep.mubr.f32.mxu0 0.0
  %2178 = vmatmul.mubr.f32.gmra.mrb[0].mxu0 %v2098
  %v2179 = vpop.f32.mrb[0].mxu0
  %v2180 = vadd.f32 %v2092, %v2179
  %v2181 = vpop.f32.mrb[0].mxu0
  %2182 = vdwg.mxu0
  %v2183 = vmax.f32 %v2170, 0.0
  %v2184 = vmax.f32 %v2175, 0.0
  %v2185 = vmax.f32 %v2180, 0.0
  %v2186 = vld [vmem:[%s2 + $0xcc0] sm:$0xff]
  %v2187 = vld [vmem:[%s2 + $0xcd0] sm:$0xff]
  %v2188 = vld [vmem:[%s2 + $0xce0] sm:$0xff]
  %v2189 = vld [vmem:[%s2 + $0x5c0] sm:$0xff]
  %v2190 = vld [vmem:[%s2 + $0x5d0] sm:$0xff]
  %vm2191 = vcmask 130048
  %v2193 = vsel %vm2191, %v2183, 0
  %v2196 = vsel %vm2191, %v2184, 0
  %v2199 = vsel %vm2191, %v2185, 0
  %2201 = vmatprep.subr.mxu0 0.0
  %2202 = vmatpush1.msra.mxu0 %v2189
  %2203 = vmatprep.subr.mxu0 0.0
  %2204 = vmatpush1.msra.mxu0 %v2190
  %2205 = vmatprep.subr.mxu0 0.0
  %2206 = vmatpush1.msra.mxu0 0.0
  %2207 = vmatprep.subr.mxu0 0.0
  %2208 = vmatpush1.msra.mxu0 0.0
  %2209 = vmatprep.subr.mxu0 0.0
  %2210 = vmatpush1.msra.mxu0 0.0
  %2211 = vmatprep.subr.mxu0 0.0
  %2212 = vmatpush1.msra.mxu0 0.0
  %2213 = vmatprep.subr.mxu0 0.0
  %2214 = vmatpush1.msra.mxu0 0.0
  %2215 = vmatprep.subr.mxu0 0.0
  %2216 = vmatpush1.msra.mxu0 0.0
  %2217 = vmatprep.subr.mxu0 0.0
  %2218 = vmatpush1.msra.mxu0 0.0
  %2219 = vmatprep.subr.mxu0 0.0
  %2220 = vmatpush1.msra.mxu0 0.0
  %2221 = vmatprep.subr.mxu0 0.0
  %2222 = vmatpush1.msra.mxu0 0.0
  %2223 = vmatprep.subr.mxu0 0.0
  %2224 = vmatpush1.msra.mxu0 0.0
  %2225 = vmatprep.subr.mxu0 0.0
  %2226 = vmatpush1.msra.mxu0 0.0
  %2227 = vmatprep.subr.mxu0 0.0
  %2228 = vmatpush1.msra.mxu0 0.0
  %2229 = vmatprep.subr.mxu0 0.0
  %2230 = vmatpush1.msra.mxu0 0.0
  %2231 = vmatprep.subr.mxu0 0.0
  %2232 = vmatpush1.msra.mxu0 0.0
  %2233 = vmatprep.subr.mxu0 0.0
  %2234 = vmatpush1.msra.mxu0 0.0
  %2235 = vmatprep.subr.mxu0 0.0
  %2236 = vmatpush1.msra.mxu0 0.0
  %2237 = vmatprep.subr.mxu0 0.0
  %2238 = vmatpush1.msra.mxu0 0.0
  %2239 = vmatprep.subr.mxu0 0.0
  %2240 = vmatpush1.msra.mxu0 0.0
  %2241 = vmatprep.subr.mxu0 0.0
  %2242 = vmatpush1.msra.mxu0 0.0
  %2243 = vmatprep.subr.mxu0 0.0
  %2244 = vmatpush1.msra.mxu0 0.0
  %2245 = vmatprep.subr.mxu0 0.0
  %2246 = vmatpush1.msra.mxu0 0.0
  %2247 = vmatprep.subr.mxu0 0.0
  %2248 = vmatpush1.msra.mxu0 0.0
  %2249 = vmatprep.subr.mxu0 0.0
  %2250 = vmatpush1.msra.mxu0 0.0
  %2251 = vmatprep.subr.mxu0 0.0
  %2252 = vmatpush1.msra.mxu0 0.0
  %2253 = vmatprep.subr.mxu0 0.0
  %2254 = vmatpush1.msra.mxu0 0.0
  %2255 = vmatprep.subr.mxu0 0.0
  %2256 = vmatpush1.msra.mxu0 0.0
  %2257 = vmatprep.subr.mxu0 0.0
  %2258 = vmatpush1.msra.mxu0 0.0
  %2259 = vmatprep.subr.mxu0 0.0
  %2260 = vmatpush1.msra.mxu0 0.0
  %2261 = vmatprep.subr.mxu0 0.0
  %2262 = vmatpush1.msra.mxu0 0.0
  %2263 = vmatprep.subr.mxu0 0.0
  %2264 = vmatpush1.msra.mxu0 0.0
  %2265 = vmatprep.mubr.f32.mxu0 0.0
  %2266 = vmatmul.mubr.f32.gmra.mrb[0].mxu0 %v2193
  %v2267 = vpop.f32.mrb[0].mxu0
  %v2268 = vadd.f32 0.0, %v2267
  %v2269 = vpop.f32.mrb[0].mxu0
  %2270 = vmatprep.mubr.f32.mxu0 0.0
  %2271 = vmatmul.mubr.f32.gmra.mrb[0].mxu0 %v2196
  %v2272 = vpop.f32.mrb[0].mxu0
  %v2273 = vadd.f32 0.0, %v2272
  %v2274 = vpop.f32.mrb[0].mxu0
  %2275 = vmatprep.mubr.f32.mxu0 0.0
  %2276 = vmatmul.mubr.f32.gmra.mrb[0].mxu0 %v2199
  %v2277 = vpop.f32.mrb[0].mxu0
  %v2278 = vadd.f32 0.0, %v2277
  %v2279 = vpop.f32.mrb[0].mxu0
  %2280 = vdwg.mxu0
  %2282 = vset.pattern.permute.xlu0 24
  %2283 = vperm.xlu0 %2282, %v2186
  %v2284 = vpop.permute.xlu0 %2283
  %2287 = vset.pattern.permute.xlu0 24
  %2288 = vperm.xlu0 %2287, %v2187
  %v2289 = vpop.permute.xlu0 %2288
  %2292 = vset.pattern.permute.xlu0 24
  %2293 = vperm.xlu0 %2292, %v2188
  %v2294 = vpop.permute.xlu0 %2293
  %vm2296 = vcmask 195584
  %v2297 = vsel %vm2296, %v2186, 0
  %v2299 = vsel %vm2296, %v2187, 0
  %v2301 = vsel %vm2296, %v2188, 0
  %2303 = vmatprep.subr.mxu0 0.0
  %2304 = vmatpush1.msra.mxu0 %v2268
  %2305 = vmatprep.subr.mxu0 0.0
  %2306 = vmatpush1.msra.mxu0 %v2273
  %2307 = vmatprep.subr.mxu0 0.0
  %2308 = vmatpush1.msra.mxu0 %v2278
  %2309 = vmatprep.subr.mxu0 0.0
  %2310 = vmatpush1.msra.mxu0 0.0
  %2311 = vmatprep.subr.mxu0 0.0
  %2312 = vmatpush1.msra.mxu0 0.0
  %2313 = vmatprep.subr.mxu0 0.0
  %2314 = vmatpush1.msra.mxu0 0.0
  %2315 = vmatprep.subr.mxu0 0.0
  %2316 = vmatpush1.msra.mxu0 0.0
  %2317 = vmatprep.subr.mxu0 0.0
  %2318 = vmatpush1.msra.mxu0 0.0
  %2319 = vmatprep.subr.mxu0 0.0
  %2320 = vmatpush1.msra.mxu0 0.0
  %2321 = vmatprep.subr.mxu0 0.0
  %2322 = vmatpush1.msra.mxu0 0.0
  %2323 = vmatprep.subr.mxu0 0.0
  %2324 = vmatpush1.msra.mxu0 0.0
  %2325 = vmatprep.subr.mxu0 0.0
  %2326 = vmatpush1.msra.mxu0 0.0
  %2327 = vmatprep.subr.mxu0 0.0
  %2328 = vmatpush1.msra.mxu0 0.0
  %2329 = vmatprep.subr.mxu0 0.0
  %2330 = vmatpush1.msra.mxu0 0.0
  %2331 = vmatprep.subr.mxu0 0.0
  %2332 = vmatpush1.msra.mxu0 0.0
  %2333 = vmatprep.subr.mxu0 0.0
  %2334 = vmatpush1.msra.mxu0 0.0
  %2335 = vmatprep.subr.mxu0 0.0
  %2336 = vmatpush1.msra.mxu0 0.0
  %2337 = vmatprep.subr.mxu0 0.0
  %2338 = vmatpush1.msra.mxu0 0.0
  %2339 = vmatprep.subr.mxu0 0.0
  %2340 = vmatpush1.msra.mxu0 0.0
  %2341 = vmatprep.subr.mxu0 0.0
  %2342 = vmatpush1.msra.mxu0 0.0
  %2343 = vmatprep.subr.mxu0 0.0
  %2344 = vmatpush1.msra.mxu0 0.0
  %2345 = vmatprep.subr.mxu0 0.0
  %2346 = vmatpush1.msra.mxu0 0.0
  %2347 = vmatprep.subr.mxu0 0.0
  %2348 = vmatpush1.msra.mxu0 0.0
  %2349 = vmatprep.subr.mxu0 0.0
  %2350 = vmatpush1.msra.mxu0 0.0
  %2351 = vmatprep.subr.mxu0 0.0
  %2352 = vmatpush1.msra.mxu0 0.0
  %2353 = vmatprep.subr.mxu0 0.0
  %2354 = vmatpush1.msra.mxu0 0.0
  %2355 = vmatprep.subr.mxu0 0.0
  %2356 = vmatpush1.msra.mxu0 0.0
  %2357 = vmatprep.subr.mxu0 0.0
  %2358 = vmatpush1.msra.mxu0 0.0
  %2359 = vmatprep.subr.mxu0 0.0
  %2360 = vmatpush1.msra.mxu0 0.0
  %2361 = vmatprep.subr.mxu0 0.0
  %2362 = vmatpush1.msra.mxu0 0.0
  %2363 = vmatprep.subr.mxu0 0.0
  %2364 = vmatpush1.msra.mxu0 0.0
  %2365 = vmatprep.subr.mxu0 0.0
  %2366 = vmatpush1.msra.mxu0 0.0
  %2367 = vmatprep.mubr.f32.mxu0 0.0
  %2368 = vmatmul.mubr.f32.gmra.mrb[0].mxu0 %v2297
  %v2369 = vpop.f32.mrb[0].mxu0
  %v2370 = vadd.f32 %v2284, %v2369
  %v2371 = vpop.f32.mrb[0].mxu0
  %2372 = vmatprep.mubr.f32.mxu0 0.0
  %2373 = vmatmul.mubr.f32.gmra.mrb[0].mxu0 %v2299
  %v2374 = vpop.f32.mrb[0].mxu0
  %v2375 = vadd.f32 %v2289, %v2374
  %v2376 = vpop.f32.mrb[0].mxu0
  %2377 = vmatprep.mubr.f32.mxu0 0.0
  %2378 = vmatmul.mubr.f32.gmra.mrb[0].mxu0 %v2301
  %v2379 = vpop.f32.mrb[0].mxu0
  %v2380 = vadd.f32 %v2294, %v2379
  %v2381 = vpop.f32.mrb[0].mxu0
  %2382 = vdwg.mxu0
  %v2383 = vmax.f32 %v2370, 0.0
  %v2384 = vmax.f32 %v2375, 0.0
  %v2385 = vmax.f32 %v2380, 0.0
  %v2386 = vld [vmem:[%s2 + $0xcf0] sm:$0xff]
  %v2387 = vld [vmem:[%s2 + $0xd00] sm:$0xff]
  %v2388 = vld [vmem:[%s2 + $0xd10] sm:$0xff]
  %v2390 = vsel %vm2191, %v2383, 0
  %v2393 = vsel %vm2191, %v2384, 0
  %v2396 = vsel %vm2191, %v2385, 0
  %2398 = vmatprep.subr.mxu0 0.0
  %2399 = vmatpush1.msra.mxu0 %v2189
  %2400 = vmatprep.subr.mxu0 0.0
  %2401 = vmatpush1.msra.mxu0 %v2190
  %2402 = vmatprep.subr.mxu0 0.0
  %2403 = vmatpush1.msra.mxu0 0.0
  %2404 = vmatprep.subr.mxu0 0.0
  %2405 = vmatpush1.msra.mxu0 0.0
  %2406 = vmatprep.subr.mxu0 0.0
  %2407 = vmatpush1.msra.mxu0 0.0
  %2408 = vmatprep.subr.mxu0 0.0
  %2409 = vmatpush1.msra.mxu0 0.0
  %2410 = vmatprep.subr.mxu0 0.0
  %2411 = vmatpush1.msra.mxu0 0.0
  %2412 = vmatprep.subr.mxu0 0.0
  %2413 = vmatpush1.msra.mxu0 0.0
  %2414 = vmatprep.subr.mxu0 0.0
  %2415 = vmatpush1.msra.mxu0 0.0
  %2416 = vmatprep.subr.mxu0 0.0
  %2417 = vmatpush1.msra.mxu0 0.0
  %2418 = vmatprep.subr.mxu0 0.0
  %2419 = vmatpush1.msra.mxu0 0.0
  %2420 = vmatprep.subr.mxu0 0.0
  %2421 = vmatpush1.msra.mxu0 0.0
  %2422 = vmatprep.subr.mxu0 0.0
  %2423 = vmatpush1.msra.mxu0 0.0
  %2424 = vmatprep.subr.mxu0 0.0
  %2425 = vmatpush1.msra.mxu0 0.0
  %2426 = vmatprep.subr.mxu0 0.0
  %2427 = vmatpush1.msra.mxu0 0.0
  %2428 = vmatprep.subr.mxu0 0.0
  %2429 = vmatpush1.msra.mxu0 0.0
  %2430 = vmatprep.subr.mxu0 0.0
  %2431 = vmatpush1.msra.mxu0 0.0
  %2432 = vmatprep.subr.mxu0 0.0
  %2433 = vmatpush1.msra.mxu0 0.0
  %2434 = vmatprep.subr.mxu0 0.0
  %2435 = vmatpush1.msra.mxu0 0.0
  %2436 = vmatprep.subr.mxu0 0.0
  %2437 = vmatpush1.msra.mxu0 0.0
  %2438 = vmatprep.subr.mxu0 0.0
  %2439 = vmatpush1.msra.mxu0 0.0
  %2440 = vmatprep.subr.mxu0 0.0
  %2441 = vmatpush1.msra.mxu0 0.0
  %2442 = vmatprep.subr.mxu0 0.0
  %2443 = vmatpush1.msra.mxu0 0.0
  %2444 = vmatprep.subr.mxu0 0.0
  %2445 = vmatpush1.msra.mxu0 0.0
  %2446 = vmatprep.subr.mxu0 0.0
  %2447 = vmatpush1.msra.mxu0 0.0
  %2448 = vmatprep.subr.mxu0 0.0
  %2449 = vmatpush1.msra.mxu0 0.0
  %2450 = vmatprep.subr.mxu0 0.0
  %2451 = vmatpush1.msra.mxu0 0.0
  %2452 = vmatprep.subr.mxu0 0.0
  %2453 = vmatpush1.msra.mxu0 0.0
  %2454 = vmatprep.subr.mxu0 0.0
  %2455 = vmatpush1.msra.mxu0 0.0
  %2456 = vmatprep.subr.mxu0 0.0
  %2457 = vmatpush1.msra.mxu0 0.0
  %2458 = vmatprep.subr.mxu0 0.0
  %2459 = vmatpush1.msra.mxu0 0.0
  %2460 = vmatprep.subr.mxu0 0.0
  %2461 = vmatpush1.msra.mxu0 0.0
  %2462 = vmatprep.mubr.f32.mxu0 0.0
  %2463 = vmatmul.mubr.f32.gmra.mrb[0].mxu0 %v2390
  %v2464 = vpop.f32.mrb[0].mxu0
  %v2465 = vadd.f32 0.0, %v2464
  %v2466 = vpop.f32.mrb[0].mxu0
  %2467 = vmatprep.mubr.f32.mxu0 0.0
  %2468 = vmatmul.mubr.f32.gmra.mrb[0].mxu0 %v2393
  %v2469 = vpop.f32.mrb[0].mxu0
  %v2470 = vadd.f32 0.0, %v2469
  %v2471 = vpop.f32.mrb[0].mxu0
  %2472 = vmatprep.mubr.f32.mxu0 0.0
  %2473 = vmatmul.mubr.f32.gmra.mrb[0].mxu0 %v2396
  %v2474 = vpop.f32.mrb[0].mxu0
  %v2475 = vadd.f32 0.0, %v2474
  %v2476 = vpop.f32.mrb[0].mxu0
  %2477 = vdwg.mxu0
  %2479 = vset.pattern.permute.xlu0 24
  %2480 = vperm.xlu0 %2479, %v2386
  %v2481 = vpop.permute.xlu0 %2480
  %2484 = vset.pattern.permute.xlu0 24
  %2485 = vperm.xlu0 %2484, %v2387
  %v2486 = vpop.permute.xlu0 %2485
  %2489 = vset.pattern.permute.xlu0 24
  %2490 = vperm.xlu0 %2489, %v2388
  %v2491 = vpop.permute.xlu0 %2490
  %v2493 = vsel %vm2296, %v2386, 0
  %v2495 = vsel %vm2296, %v2387, 0
  %v2497 = vsel %vm2296, %v2388, 0
  %2499 = vmatprep.subr.mxu0 0.0
  %2500 = vmatpush1.msra.mxu0 %v2465
  %2501 = vmatprep.subr.mxu0 0.0
  %2502 = vmatpush1.msra.mxu0 %v2470
  %2503 = vmatprep.subr.mxu0 0.0
  %2504 = vmatpush1.msra.mxu0 %v2475
  %2505 = vmatprep.subr.mxu0 0.0
  %2506 = vmatpush1.msra.mxu0 0.0
  %2507 = vmatprep.subr.mxu0 0.0
  %2508 = vmatpush1.msra.mxu0 0.0
  %2509 = vmatprep.subr.mxu0 0.0
  %2510 = vmatpush1.msra.mxu0 0.0
  %2511 = vmatprep.subr.mxu0 0.0
  %2512 = vmatpush1.msra.mxu0 0.0
  %2513 = vmatprep.subr.mxu0 0.0
  %2514 = vmatpush1.msra.mxu0 0.0
  %2515 = vmatprep.subr.mxu0 0.0
  %2516 = vmatpush1.msra.mxu0 0.0
  %2517 = vmatprep.subr.mxu0 0.0
  %2518 = vmatpush1.msra.mxu0 0.0
  %2519 = vmatprep.subr.mxu0 0.0
  %2520 = vmatpush1.msra.mxu0 0.0
  %2521 = vmatprep.subr.mxu0 0.0
  %2522 = vmatpush1.msra.mxu0 0.0
  %2523 = vmatprep.subr.mxu0 0.0
  %2524 = vmatpush1.msra.mxu0 0.0
  %2525 = vmatprep.subr.mxu0 0.0
  %2526 = vmatpush1.msra.mxu0 0.0
  %2527 = vmatprep.subr.mxu0 0.0
  %2528 = vmatpush1.msra.mxu0 0.0
  %2529 = vmatprep.subr.mxu0 0.0
  %2530 = vmatpush1.msra.mxu0 0.0
  %2531 = vmatprep.subr.mxu0 0.0
  %2532 = vmatpush1.msra.mxu0 0.0
  %2533 = vmatprep.subr.mxu0 0.0
  %2534 = vmatpush1.msra.mxu0 0.0
  %2535 = vmatprep.subr.mxu0 0.0
  %2536 = vmatpush1.msra.mxu0 0.0
  %2537 = vmatprep.subr.mxu0 0.0
  %2538 = vmatpush1.msra.mxu0 0.0
  %2539 = vmatprep.subr.mxu0 0.0
  %2540 = vmatpush1.msra.mxu0 0.0
  %2541 = vmatprep.subr.mxu0 0.0
  %2542 = vmatpush1.msra.mxu0 0.0
  %2543 = vmatprep.subr.mxu0 0.0
  %2544 = vmatpush1.msra.mxu0 0.0
  %2545 = vmatprep.subr.mxu0 0.0
  %2546 = vmatpush1.msra.mxu0 0.0
  %2547 = vmatprep.subr.mxu0 0.0
  %2548 = vmatpush1.msra.mxu0 0.0
  %2549 = vmatprep.subr.mxu0 0.0
  %2550 = vmatpush1.msra.mxu0 0.0
  %2551 = vmatprep.subr.mxu0 0.0
  %2552 = vmatpush1.msra.mxu0 0.0
  %2553 = vmatprep.subr.mxu0 0.0
  %2554 = vmatpush1.msra.mxu0 0.0
  %2555 = vmatprep.subr.mxu0 0.0
  %2556 = vmatpush1.msra.mxu0 0.0
  %2557 = vmatprep.subr.mxu0 0.0
  %2558 = vmatpush1.msra.mxu0 0.0
  %2559 = vmatprep.subr.mxu0 0.0
  %2560 = vmatpush1.msra.mxu0 0.0
  %2561 = vmatprep.subr.mxu0 0.0
  %2562 = vmatpush1.msra.mxu0 0.0
  %2563 = vmatprep.mubr.f32.mxu0 0.0
  %2564 = vmatmul.mubr.f32.gmra.mrb[0].mxu0 %v2493
  %v2565 = vpop.f32.mrb[0].mxu0
  %v2566 = vadd.f32 %v2481, %v2565
  %v2567 = vpop.f32.mrb[0].mxu0
  %2568 = vmatprep.mubr.f32.mxu0 0.0
  %2569 = vmatmul.mubr.f32.gmra.mrb[0].mxu0 %v2495
  %v2570 = vpop.f32.mrb[0].mxu0
  %v2571 = vadd.f32 %v2486, %v2570
  %v2572 = vpop.f32.mrb[0].mxu0
  %2573 = vmatprep.mubr.f32.mxu0 0.0
  %2574 = vmatmul.mubr.f32.gmra.mrb[0].mxu0 %v2497
  %v2575 = vpop.f32.mrb[0].mxu0
  %v2576 = vadd.f32 %v2491, %v2575
  %v2577 = vpop.f32.mrb[0].mxu0
  %2578 = vdwg.mxu0
  %v2579 = vmax.f32 %v2566, 0.0
  %v2580 = vmax.f32 %v2571, 0.0
  %v2581 = vmax.f32 %v2576, 0.0
  %v2582 = vld [vmem:[%s2 + $0xd20] sm:$0xff]
  %v2583 = vld [vmem:[%s2 + $0xd30] sm:$0xff]
  %v2584 = vld [vmem:[%s2 + $0xd40] sm:$0xff]
  %v2586 = vsel %vm2191, %v2579, 0
  %v2589 = vsel %vm2191, %v2580, 0
  %v2592 = vsel %vm2191, %v2581, 0
  %2594 = vmatprep.subr.mxu0 0.0
  %2595 = vmatpush1.msra.mxu0 %v2189
  %2596 = vmatprep.subr.mxu0 0.0
  %2597 = vmatpush1.msra.mxu0 %v2190
  %2598 = vmatprep.subr.mxu0 0.0
  %2599 = vmatpush1.msra.mxu0 0.0
  %2600 = vmatprep.subr.mxu0 0.0
  %2601 = vmatpush1.msra.mxu0 0.0
  %2602 = vmatprep.subr.mxu0 0.0
  %2603 = vmatpush1.msra.mxu0 0.0
  %2604 = vmatprep.subr.mxu0 0.0
  %2605 = vmatpush1.msra.mxu0 0.0
  %2606 = vmatprep.subr.mxu0 0.0
  %2607 = vmatpush1.msra.mxu0 0.0
  %2608 = vmatprep.subr.mxu0 0.0
  %2609 = vmatpush1.msra.mxu0 0.0
  %2610 = vmatprep.subr.mxu0 0.0
  %2611 = vmatpush1.msra.mxu0 0.0
  %2612 = vmatprep.subr.mxu0 0.0
  %2613 = vmatpush1.msra.mxu0 0.0
  %2614 = vmatprep.subr.mxu0 0.0
  %2615 = vmatpush1.msra.mxu0 0.0
  %2616 = vmatprep.subr.mxu0 0.0
  %2617 = vmatpush1.msra.mxu0 0.0
  %2618 = vmatprep.subr.mxu0 0.0
  %2619 = vmatpush1.msra.mxu0 0.0
  %2620 = vmatprep.subr.mxu0 0.0
  %2621 = vmatpush1.msra.mxu0 0.0
  %2622 = vmatprep.subr.mxu0 0.0
  %2623 = vmatpush1.msra.mxu0 0.0
  %2624 = vmatprep.subr.mxu0 0.0
  %2625 = vmatpush1.msra.mxu0 0.0
  %2626 = vmatprep.subr.mxu0 0.0
  %2627 = vmatpush1.msra.mxu0 0.0
  %2628 = vmatprep.subr.mxu0 0.0
  %2629 = vmatpush1.msra.mxu0 0.0
  %2630 = vmatprep.subr.mxu0 0.0
  %2631 = vmatpush1.msra.mxu0 0.0
  %2632 = vmatprep.subr.mxu0 0.0
  %2633 = vmatpush1.msra.mxu0 0.0
  %2634 = vmatprep.subr.mxu0 0.0
  %2635 = vmatpush1.msra.mxu0 0.0
  %2636 = vmatprep.subr.mxu0 0.0
  %2637 = vmatpush1.msra.mxu0 0.0
  %2638 = vmatprep.subr.mxu0 0.0
  %2639 = vmatpush1.msra.mxu0 0.0
  %2640 = vmatprep.subr.mxu0 0.0
  %2641 = vmatpush1.msra.mxu0 0.0
  %2642 = vmatprep.subr.mxu0 0.0
  %2643 = vmatpush1.msra.mxu0 0.0
  %2644 = vmatprep.subr.mxu0 0.0
  %2645 = vmatpush1.msra.mxu0 0.0
  %2646 = vmatprep.subr.mxu0 0.0
  %2647 = vmatpush1.msra.mxu0 0.0
  %2648 = vmatprep.subr.mxu0 0.0
  %2649 = vmatpush1.msra.mxu0 0.0
  %2650 = vmatprep.subr.mxu0 0.0
  %2651 = vmatpush1.msra.mxu0 0.0
  %2652 = vmatprep.subr.mxu0 0.0
  %2653 = vmatpush1.msra.mxu0 0.0
  %2654 = vmatprep.subr.mxu0 0.0
  %2655 = vmatpush1.msra.mxu0 0.0
  %2656 = vmatprep.subr.mxu0 0.0
  %2657 = vmatpush1.msra.mxu0 0.0
  %2658 = vmatprep.mubr.f32.mxu0 0.0
  %2659 = vmatmul.mubr.f32.gmra.mrb[0].mxu0 %v2586
  %v2660 = vpop.f32.mrb[0].mxu0
  %v2661 = vadd.f32 0.0, %v2660
  %v2662 = vpop.f32.mrb[0].mxu0
  %2663 = vmatprep.mubr.f32.mxu0 0.0
  %2664 = vmatmul.mubr.f32.gmra.mrb[0].mxu0 %v2589
  %v2665 = vpop.f32.mrb[0].mxu0
  %v2666 = vadd.f32 0.0, %v2665
  %v2667 = vpop.f32.mrb[0].mxu0
  %2668 = vmatprep.mubr.f32.mxu0 0.0
  %2669 = vmatmul.mubr.f32.gmra.mrb[0].mxu0 %v2592
  %v2670 = vpop.f32.mrb[0].mxu0
  %v2671 = vadd.f32 0.0, %v2670
  %v2672 = vpop.f32.mrb[0].mxu0
  %2673 = vdwg.mxu0
  %2675 = vset.pattern.permute.xlu0 24
  %2676 = vperm.xlu0 %2675, %v2582
  %v2677 = vpop.permute.xlu0 %2676
  %2680 = vset.pattern.permute.xlu0 24
  %2681 = vperm.xlu0 %2680, %v2583
  %v2682 = vpop.permute.xlu0 %2681
  %2685 = vset.pattern.permute.xlu0 24
  %2686 = vperm.xlu0 %2685, %v2584
  %v2687 = vpop.permute.xlu0 %2686
  %v2689 = vsel %vm2296, %v2582, 0
  %v2691 = vsel %vm2296, %v2583, 0
  %v2693 = vsel %vm2296, %v2584, 0
  %2695 = vmatprep.subr.mxu0 0.0
  %2696 = vmatpush1.msra.mxu0 %v2661
  %2697 = vmatprep.subr.mxu0 0.0
  %2698 = vmatpush1.msra.mxu0 %v2666
  %2699 = vmatprep.subr.mxu0 0.0
  %2700 = vmatpush1.msra.mxu0 %v2671
  %2701 = vmatprep.subr.mxu0 0.0
  %2702 = vmatpush1.msra.mxu0 0.0
  %2703 = vmatprep.subr.mxu0 0.0
  %2704 = vmatpush1.msra.mxu0 0.0
  %2705 = vmatprep.subr.mxu0 0.0
  %2706 = vmatpush1.msra.mxu0 0.0
  %2707 = vmatprep.subr.mxu0 0.0
  %2708 = vmatpush1.msra.mxu0 0.0
  %2709 = vmatprep.subr.mxu0 0.0
  %2710 = vmatpush1.msra.mxu0 0.0
  %2711 = vmatprep.subr.mxu0 0.0
  %2712 = vmatpush1.msra.mxu0 0.0
  %2713 = vmatprep.subr.mxu0 0.0
  %2714 = vmatpush1.msra.mxu0 0.0
  %2715 = vmatprep.subr.mxu0 0.0
  %2716 = vmatpush1.msra.mxu0 0.0
  %2717 = vmatprep.subr.mxu0 0.0
  %2718 = vmatpush1.msra.mxu0 0.0
  %2719 = vmatprep.subr.mxu0 0.0
  %2720 = vmatpush1.msra.mxu0 0.0
  %2721 = vmatprep.subr.mxu0 0.0
  %2722 = vmatpush1.msra.mxu0 0.0
  %2723 = vmatprep.subr.mxu0 0.0
  %2724 = vmatpush1.msra.mxu0 0.0
  %2725 = vmatprep.subr.mxu0 0.0
  %2726 = vmatpush1.msra.mxu0 0.0
  %2727 = vmatprep.subr.mxu0 0.0
  %2728 = vmatpush1.msra.mxu0 0.0
  %2729 = vmatprep.subr.mxu0 0.0
  %2730 = vmatpush1.msra.mxu0 0.0
  %2731 = vmatprep.subr.mxu0 0.0
  %2732 = vmatpush1.msra.mxu0 0.0
  %2733 = vmatprep.subr.mxu0 0.0
  %2734 = vmatpush1.msra.mxu0 0.0
  %2735 = vmatprep.subr.mxu0 0.0
  %2736 = vmatpush1.msra.mxu0 0.0
  %2737 = vmatprep.subr.mxu0 0.0
  %2738 = vmatpush1.msra.mxu0 0.0
  %2739 = vmatprep.subr.mxu0 0.0
  %2740 = vmatpush1.msra.mxu0 0.0
  %2741 = vmatprep.subr.mxu0 0.0
  %2742 = vmatpush1.msra.mxu0 0.0
  %2743 = vmatprep.subr.mxu0 0.0
  %2744 = vmatpush1.msra.mxu0 0.0
  %2745 = vmatprep.subr.mxu0 0.0
  %2746 = vmatpush1.msra.mxu0 0.0
  %2747 = vmatprep.subr.mxu0 0.0
  %2748 = vmatpush1.msra.mxu0 0.0
  %2749 = vmatprep.subr.mxu0 0.0
  %2750 = vmatpush1.msra.mxu0 0.0
  %2751 = vmatprep.subr.mxu0 0.0
  %2752 = vmatpush1.msra.mxu0 0.0
  %2753 = vmatprep.subr.mxu0 0.0
  %2754 = vmatpush1.msra.mxu0 0.0
  %2755 = vmatprep.subr.mxu0 0.0
  %2756 = vmatpush1.msra.mxu0 0.0
  %2757 = vmatprep.subr.mxu0 0.0
  %2758 = vmatpush1.msra.mxu0 0.0
  %2759 = vmatprep.mubr.f32.mxu0 0.0
  %2760 = vmatmul.mubr.f32.gmra.mrb[0].mxu0 %v2689
  %v2761 = vpop.f32.mrb[0].mxu0
  %v2762 = vadd.f32 %v2677, %v2761
  %v2763 = vpop.f32.mrb[0].mxu0
  %2764 = vmatprep.mubr.f32.mxu0 0.0
  %2765 = vmatmul.mubr.f32.gmra.mrb[0].mxu0 %v2691
  %v2766 = vpop.f32.mrb[0].mxu0
  %v2767 = vadd.f32 %v2682, %v2766
  %v2768 = vpop.f32.mrb[0].mxu0
  %2769 = vmatprep.mubr.f32.mxu0 0.0
  %2770 = vmatmul.mubr.f32.gmra.mrb[0].mxu0 %v2693
  %v2771 = vpop.f32.mrb[0].mxu0
  %v2772 = vadd.f32 %v2687, %v2771
  %v2773 = vpop.f32.mrb[0].mxu0
  %2774 = vdwg.mxu0
  %v2775 = vmax.f32 %v2762, 0.0
  %v2776 = vmax.f32 %v2767, 0.0
  %v2777 = vmax.f32 %v2772, 0.0
  %v2778 = vld [vmem:[%s2 + $0x5e0] sm:$0xff]
  %v2779 = vld [vmem:[%s2 + $0x5f0] sm:$0xff]
  %v2781 = vsel %vm2191, %v2775, 0
  %v2784 = vsel %vm2191, %v2776, 0
  %v2787 = vsel %vm2191, %v2777, 0
  %2789 = vmatprep.subr.mxu0 0.0
  %2790 = vmatpush1.msra.mxu0 %v2778
  %2791 = vmatprep.subr.mxu0 0.0
  %2792 = vmatpush1.msra.mxu0 %v2779
  %2793 = vmatprep.subr.mxu0 0.0
  %2794 = vmatpush1.msra.mxu0 0.0
  %2795 = vmatprep.subr.mxu0 0.0
  %2796 = vmatpush1.msra.mxu0 0.0
  %2797 = vmatprep.subr.mxu0 0.0
  %2798 = vmatpush1.msra.mxu0 0.0
  %2799 = vmatprep.subr.mxu0 0.0
  %2800 = vmatpush1.msra.mxu0 0.0
  %2801 = vmatprep.subr.mxu0 0.0
  %2802 = vmatpush1.msra.mxu0 0.0
  %2803 = vmatprep.subr.mxu0 0.0
  %2804 = vmatpush1.msra.mxu0 0.0
  %2805 = vmatprep.subr.mxu0 0.0
  %2806 = vmatpush1.msra.mxu0 0.0
  %2807 = vmatprep.subr.mxu0 0.0
  %2808 = vmatpush1.msra.mxu0 0.0
  %2809 = vmatprep.subr.mxu0 0.0
  %2810 = vmatpush1.msra.mxu0 0.0
  %2811 = vmatprep.subr.mxu0 0.0
  %2812 = vmatpush1.msra.mxu0 0.0
  %2813 = vmatprep.subr.mxu0 0.0
  %2814 = vmatpush1.msra.mxu0 0.0
  %2815 = vmatprep.subr.mxu0 0.0
  %2816 = vmatpush1.msra.mxu0 0.0
  %2817 = vmatprep.subr.mxu0 0.0
  %2818 = vmatpush1.msra.mxu0 0.0
  %2819 = vmatprep.subr.mxu0 0.0
  %2820 = vmatpush1.msra.mxu0 0.0
  %2821 = vmatprep.subr.mxu0 0.0
  %2822 = vmatpush1.msra.mxu0 0.0
  %2823 = vmatprep.subr.mxu0 0.0
  %2824 = vmatpush1.msra.mxu0 0.0
  %2825 = vmatprep.subr.mxu0 0.0
  %2826 = vmatpush1.msra.mxu0 0.0
  %2827 = vmatprep.subr.mxu0 0.0
  %2828 = vmatpush1.msra.mxu0 0.0
  %2829 = vmatprep.subr.mxu0 0.0
  %2830 = vmatpush1.msra.mxu0 0.0
  %2831 = vmatprep.subr.mxu0 0.0
  %2832 = vmatpush1.msra.mxu0 0.0
  %2833 = vmatprep.subr.mxu0 0.0
  %2834 = vmatpush1.msra.mxu0 0.0
  %2835 = vmatprep.subr.mxu0 0.0
  %2836 = vmatpush1.msra.mxu0 0.0
  %2837 = vmatprep.subr.mxu0 0.0
  %2838 = vmatpush1.msra.mxu0 0.0
  %2839 = vmatprep.subr.mxu0 0.0
  %2840 = vmatpush1.msra.mxu0 0.0
  %2841 = vmatprep.subr.mxu0 0.0
  %2842 = vmatpush1.msra.mxu0 0.0
  %2843 = vmatprep.subr.mxu0 0.0
  %2844 = vmatpush1.msra.mxu0 0.0
  %2845 = vmatprep.subr.mxu0 0.0
  %2846 = vmatpush1.msra.mxu0 0.0
  %2847 = vmatprep.subr.mxu0 0.0
  %2848 = vmatpush1.msra.mxu0 0.0
  %2849 = vmatprep.subr.mxu0 0.0
  %2850 = vmatpush1.msra.mxu0 0.0
  %2851 = vmatprep.subr.mxu0 0.0
  %2852 = vmatpush1.msra.mxu0 0.0
  %2853 = vmatprep.mubr.f32.mxu0 0.0
  %2854 = vmatmul.mubr.f32.gmra.mrb[0].mxu0 %v2781
  %v2855 = vpop.f32.mrb[0].mxu0
  %v2856 = vadd.f32 0.0, %v2855
  %v2857 = vpop.f32.mrb[0].mxu0
  %2858 = vmatprep.mubr.f32.mxu0 0.0
  %2859 = vmatmul.mubr.f32.gmra.mrb[0].mxu0 %v2784
  %v2860 = vpop.f32.mrb[0].mxu0
  %v2861 = vadd.f32 0.0, %v2860
  %v2862 = vpop.f32.mrb[0].mxu0
  %2863 = vmatprep.mubr.f32.mxu0 0.0
  %2864 = vmatmul.mubr.f32.gmra.mrb[0].mxu0 %v2787
  %v2865 = vpop.f32.mrb[0].mxu0
  %v2866 = vadd.f32 0.0, %v2865
  %v2867 = vpop.f32.mrb[0].mxu0
  %2868 = vdwg.mxu0
  %v2869 = vmul.f32 %v2856, %v2856
  %v2870 = vmul.f32 %v2861, %v2861
  %v2871 = vmul.f32 %v2866, %v2866
  %v2873 = vsel %vm1686, %v2856, 0
  %v2876 = vsel %vm1686, %v2861, 0
  %v2879 = vsel %vm1686, %v2866, 0
  %v2882 = vsel %vm1686, %v2869, 0
  %v2885 = vsel %vm1686, %v2870, 0
  %v2888 = vsel %vm1686, %v2871, 0
  %2890 = vmatprep.subr.mxu0 0.0
  %2891 = vmatpush1.msra.mxu0 %v1871
  %2892 = vmatprep.subr.mxu0 0.0
  %2893 = vmatpush1.msra.mxu0 %v1872
  %2894 = vmatprep.subr.mxu0 0.0
  %2895 = vmatpush1.msra.mxu0 %v1873
  %2896 = vmatprep.subr.mxu0 0.0
  %2897 = vmatpush1.msra.mxu0 %v1874
  %2898 = vmatprep.subr.mxu0 0.0
  %2899 = vmatpush1.msra.mxu0 0.0
  %2900 = vmatprep.subr.mxu0 0.0
  %2901 = vmatpush1.msra.mxu0 0.0
  %2902 = vmatprep.subr.mxu0 0.0
  %2903 = vmatpush1.msra.mxu0 0.0
  %2904 = vmatprep.subr.mxu0 0.0
  %2905 = vmatpush1.msra.mxu0 0.0
  %2906 = vmatprep.subr.mxu0 0.0
  %2907 = vmatpush1.msra.mxu0 0.0
  %2908 = vmatprep.subr.mxu0 0.0
  %2909 = vmatpush1.msra.mxu0 0.0
  %2910 = vmatprep.subr.mxu0 0.0
  %2911 = vmatpush1.msra.mxu0 0.0
  %2912 = vmatprep.subr.mxu0 0.0
  %2913 = vmatpush1.msra.mxu0 0.0
  %2914 = vmatprep.subr.mxu0 0.0
  %2915 = vmatpush1.msra.mxu0 0.0
  %2916 = vmatprep.subr.mxu0 0.0
  %2917 = vmatpush1.msra.mxu0 0.0
  %2918 = vmatprep.subr.mxu0 0.0
  %2919 = vmatpush1.msra.mxu0 0.0
  %2920 = vmatprep.subr.mxu0 0.0
  %2921 = vmatpush1.msra.mxu0 0.0
  %2922 = vmatprep.subr.mxu0 0.0
  %2923 = vmatpush1.msra.mxu0 0.0
  %2924 = vmatprep.subr.mxu0 0.0
  %2925 = vmatpush1.msra.mxu0 0.0
  %2926 = vmatprep.subr.mxu0 0.0
  %2927 = vmatpush1.msra.mxu0 0.0
  %2928 = vmatprep.subr.mxu0 0.0
  %2929 = vmatpush1.msra.mxu0 0.0
  %2930 = vmatprep.subr.mxu0 0.0
  %2931 = vmatpush1.msra.mxu0 0.0
  %2932 = vmatprep.subr.mxu0 0.0
  %2933 = vmatpush1.msra.mxu0 0.0
  %2934 = vmatprep.subr.mxu0 0.0
  %2935 = vmatpush1.msra.mxu0 0.0
  %2936 = vmatprep.subr.mxu0 0.0
  %2937 = vmatpush1.msra.mxu0 0.0
  %2938 = vmatprep.subr.mxu0 0.0
  %2939 = vmatpush1.msra.mxu0 0.0
  %2940 = vmatprep.subr.mxu0 0.0
  %2941 = vmatpush1.msra.mxu0 0.0
  %2942 = vmatprep.subr.mxu0 0.0
  %2943 = vmatpush1.msra.mxu0 0.0
  %2944 = vmatprep.subr.mxu0 0.0
  %2945 = vmatpush1.msra.mxu0 0.0
  %2946 = vmatprep.subr.mxu0 0.0
  %2947 = vmatpush1.msra.mxu0 0.0
  %2948 = vmatprep.subr.mxu0 0.0
  %2949 = vmatpush1.msra.mxu0 0.0
  %2950 = vmatprep.subr.mxu0 0.0
  %2951 = vmatpush1.msra.mxu0 0.0
  %2952 = vmatprep.subr.mxu0 0.0
  %2953 = vmatpush1.msra.mxu0 0.0
  %2954 = vmatprep.mubr.f32.mxu0 0.0
  %2955 = vmatmul.mubr.f32.gmra.mrb[0].mxu0 %v2873
  %v2956 = vpop.f32.mrb[0].mxu0
  %v2957 = vadd.f32 0.0, %v2956
  %v2958 = vpop.f32.mrb[0].mxu0
  %2959 = vmatprep.mubr.f32.mxu0 0.0
  %2960 = vmatmul.mubr.f32.gmra.mrb[0].mxu0 %v2876
  %v2961 = vpop.f32.mrb[0].mxu0
  %v2962 = vadd.f32 0.0, %v2961
  %v2963 = vpop.f32.mrb[0].mxu0
  %2964 = vmatprep.mubr.f32.mxu0 0.0
  %2965 = vmatmul.mubr.f32.gmra.mrb[0].mxu0 %v2879
  %v2966 = vpop.f32.mrb[0].mxu0
  %v2967 = vadd.f32 0.0, %v2966
  %v2968 = vpop.f32.mrb[0].mxu0
  %2969 = vmatprep.mubr.f32.mxu0 0.0
  %2970 = vmatmul.mubr.f32.gmra.mrb[0].mxu0 %v2882
  %v2971 = vpop.f32.mrb[0].mxu0
  %v2972 = vadd.f32 0.0, %v2971
  %v2973 = vpop.f32.mrb[0].mxu0
  %2974 = vmatprep.mubr.f32.mxu0 0.0
  %2975 = vmatmul.mubr.f32.gmra.mrb[0].mxu0 %v2885
  %v2976 = vpop.f32.mrb[0].mxu0
  %v2977 = vadd.f32 0.0, %v2976
  %v2978 = vpop.f32.mrb[0].mxu0
  %2979 = vmatprep.mubr.f32.mxu0 0.0
  %2980 = vmatmul.mubr.f32.gmra.mrb[0].mxu0 %v2888
  %v2981 = vpop.f32.mrb[0].mxu0
  %v2982 = vadd.f32 0.0, %v2981
  %v2983 = vpop.f32.mrb[0].mxu0
  %2984 = vdwg.mxu0
  %v2985 = vmul.f32 %v2957, %v2957
  %v2986 = vmul.f32 %v2962, %v2962
  %v2987 = vmul.f32 %v2967, %v2967
  %v2988 = vsub.f32 %v2972, %v2985
  %v2989 = vsub.f32 %v2977, %v2986
  %v2990 = vsub.f32 %v2982, %v2987
  %v2991 = vmax.f32 %v2988, 0.0
  %v2992 = vmax.f32 %v2989, 0.0
  %v2993 = vmax.f32 %v2990, 0.0
  %v2994 = vsub.f32 %v2856, %v2957
  %v2995 = vsub.f32 %v2861, %v2962
  %v2996 = vsub.f32 %v2866, %v2967
  %v2997 = vadd.f32 %v2991, 1e-05
  %v2998 = vadd.f32 %v2992, 1e-05
  %v2999 = vadd.f32 %v2993, 1e-05
  %v3000 = vrsqrt.pop %v2997
  %v3001 = vrsqrt.pop %v2998
  %v3002 = vrsqrt.pop %v2999
  %v3003 = vmul.f32 %v2994, %v3000
  %v3004 = vmul.f32 %v2995, %v3001
  %v3005 = vmul.f32 %v2996, %v3002
  %v3006 = vld [vmem:[%s2 + $0xd50] sm:$0xff]
  %v3007 = vld [vmem:[%s2 + $0xd60] sm:$0xff]
  %v3008 = vld [vmem:[%s2 + $0xd70] sm:$0xff]
  %v3010 = vsel %vm1686, %v3003, 0
  %v3013 = vsel %vm1686, %v3004, 0
  %v3016 = vsel %vm1686, %v3005, 0
  %3018 = vmatprep.subr.mxu0 0.0
  %3019 = vmatpush1.msra.mxu0 %v1682
  %3020 = vmatprep.subr.mxu0 0.0
  %3021 = vmatpush1.msra.mxu0 %v1683
  %3022 = vmatprep.subr.mxu0 0.0
  %3023 = vmatpush1.msra.mxu0 %v1684
  %3024 = vmatprep.subr.mxu0 0.0
  %3025 = vmatpush1.msra.mxu0 %v1685
  %3026 = vmatprep.subr.mxu0 0.0
  %3027 = vmatpush1.msra.mxu0 0.0
  %3028 = vmatprep.subr.mxu0 0.0
  %3029 = vmatpush1.msra.mxu0 0.0
  %3030 = vmatprep.subr.mxu0 0.0
  %3031 = vmatpush1.msra.mxu0 0.0
  %3032 = vmatprep.subr.mxu0 0.0
  %3033 = vmatpush1.msra.mxu0 0.0
  %3034 = vmatprep.subr.mxu0 0.0
  %3035 = vmatpush1.msra.mxu0 0.0
  %3036 = vmatprep.subr.mxu0 0.0
  %3037 = vmatpush1.msra.mxu0 0.0
  %3038 = vmatprep.subr.mxu0 0.0
  %3039 = vmatpush1.msra.mxu0 0.0
  %3040 = vmatprep.subr.mxu0 0.0
  %3041 = vmatpush1.msra.mxu0 0.0
  %3042 = vmatprep.subr.mxu0 0.0
  %3043 = vmatpush1.msra.mxu0 0.0
  %3044 = vmatprep.subr.mxu0 0.0
  %3045 = vmatpush1.msra.mxu0 0.0
  %3046 = vmatprep.subr.mxu0 0.0
  %3047 = vmatpush1.msra.mxu0 0.0
  %3048 = vmatprep.subr.mxu0 0.0
  %3049 = vmatpush1.msra.mxu0 0.0
  %3050 = vmatprep.subr.mxu0 0.0
  %3051 = vmatpush1.msra.mxu0 0.0
  %3052 = vmatprep.subr.mxu0 0.0
  %3053 = vmatpush1.msra.mxu0 0.0
  %3054 = vmatprep.subr.mxu0 0.0
  %3055 = vmatpush1.msra.mxu0 0.0
  %3056 = vmatprep.subr.mxu0 0.0
  %3057 = vmatpush1.msra.mxu0 0.0
  %3058 = vmatprep.subr.mxu0 0.0
  %3059 = vmatpush1.msra.mxu0 0.0
  %3060 = vmatprep.subr.mxu0 0.0
  %3061 = vmatpush1.msra.mxu0 0.0
  %3062 = vmatprep.subr.mxu0 0.0
  %3063 = vmatpush1.msra.mxu0 0.0
  %3064 = vmatprep.subr.mxu0 0.0
  %3065 = vmatpush1.msra.mxu0 0.0
  %3066 = vmatprep.subr.mxu0 0.0
  %3067 = vmatpush1.msra.mxu0 0.0
  %3068 = vmatprep.subr.mxu0 0.0
  %3069 = vmatpush1.msra.mxu0 0.0
  %3070 = vmatprep.subr.mxu0 0.0
  %3071 = vmatpush1.msra.mxu0 0.0
  %3072 = vmatprep.subr.mxu0 0.0
  %3073 = vmatpush1.msra.mxu0 0.0
  %3074 = vmatprep.subr.mxu0 0.0
  %3075 = vmatpush1.msra.mxu0 0.0
  %3076 = vmatprep.subr.mxu0 0.0
  %3077 = vmatpush1.msra.mxu0 0.0
  %3078 = vmatprep.subr.mxu0 0.0
  %3079 = vmatpush1.msra.mxu0 0.0
  %3080 = vmatprep.subr.mxu0 0.0
  %3081 = vmatpush1.msra.mxu0 0.0
  %3082 = vmatprep.mubr.f32.mxu0 0.0
  %3083 = vmatmul.mubr.f32.gmra.mrb[0].mxu0 %v3010
  %v3084 = vpop.f32.mrb[0].mxu0
  %v3085 = vadd.f32 0.0, %v3084
  %v3086 = vpop.f32.mrb[0].mxu0
  %3087 = vmatprep.mubr.f32.mxu0 0.0
  %3088 = vmatmul.mubr.f32.gmra.mrb[0].mxu0 %v3013
  %v3089 = vpop.f32.mrb[0].mxu0
  %v3090 = vadd.f32 0.0, %v3089
  %v3091 = vpop.f32.mrb[0].mxu0
  %3092 = vmatprep.mubr.f32.mxu0 0.0
  %3093 = vmatmul.mubr.f32.gmra.mrb[0].mxu0 %v3016
  %v3094 = vpop.f32.mrb[0].mxu0
  %v3095 = vadd.f32 0.0, %v3094
  %v3096 = vpop.f32.mrb[0].mxu0
  %3097 = vmatprep.mubr.f32.mxu0 0.0
  %3098 = vmatmul.mubr.f32.gmra.mrb[0].mxu0 %v1999
  %v3099 = vpop.f32.mrb[0].mxu0
  %v3100 = vadd.f32 0.0, %v3099
  %v3101 = vpop.f32.mrb[0].mxu0
  %3102 = vmatprep.mubr.f32.mxu0 0.0
  %3103 = vmatmul.mubr.f32.gmra.mrb[0].mxu0 %v2002
  %v3104 = vpop.f32.mrb[0].mxu0
  %v3105 = vadd.f32 0.0, %v3104
  %v3106 = vpop.f32.mrb[0].mxu0
  %3107 = vdwg.mxu0
  %3109 = vset.pattern.permute.xlu0 36
  %3110 = vperm.xlu0 %3109, %v3006
  %v3111 = vpop.permute.xlu0 %3110
  %3114 = vset.pattern.permute.xlu0 36
  %3115 = vperm.xlu0 %3114, %v3007
  %v3116 = vpop.permute.xlu0 %3115
  %3119 = vset.pattern.permute.xlu0 36
  %3120 = vperm.xlu0 %3119, %v3008
  %v3121 = vpop.permute.xlu0 %3120
  %vm3123 = vcmask 293888
  %v3124 = vsel %vm3123, %v3006, 0
  %v3126 = vsel %vm3123, %v3007, 0
  %v3128 = vsel %vm3123, %v3008, 0
  %v3131 = vsel %vm128, %v3105, 0
  %3133 = vmatprep.subr.mxu0 0.0
  %3134 = vmatpush1.msra.mxu0 %v3085
  %3135 = vmatprep.subr.mxu0 0.0
  %3136 = vmatpush1.msra.mxu0 %v3090
  %3137 = vmatprep.subr.mxu0 0.0
  %3138 = vmatpush1.msra.mxu0 %v3095
  %3139 = vmatprep.subr.mxu0 0.0
  %3140 = vmatpush1.msra.mxu0 %v3100
  %3141 = vmatprep.subr.mxu0 0.0
  %3142 = vmatpush1.msra.mxu0 %v3131
  %3143 = vmatprep.subr.mxu0 0.0
  %3144 = vmatpush1.msra.mxu0 0.0
  %3145 = vmatprep.subr.mxu0 0.0
  %3146 = vmatpush1.msra.mxu0 0.0
  %3147 = vmatprep.subr.mxu0 0.0
  %3148 = vmatpush1.msra.mxu0 0.0
  %3149 = vmatprep.subr.mxu0 0.0
  %3150 = vmatpush1.msra.mxu0 0.0
  %3151 = vmatprep.subr.mxu0 0.0
  %3152 = vmatpush1.msra.mxu0 0.0
  %3153 = vmatprep.subr.mxu0 0.0
  %3154 = vmatpush1.msra.mxu0 0.0
  %3155 = vmatprep.subr.mxu0 0.0
  %3156 = vmatpush1.msra.mxu0 0.0
  %3157 = vmatprep.subr.mxu0 0.0
  %3158 = vmatpush1.msra.mxu0 0.0
  %3159 = vmatprep.subr.mxu0 0.0
  %3160 = vmatpush1.msra.mxu0 0.0
  %3161 = vmatprep.subr.mxu0 0.0
  %3162 = vmatpush1.msra.mxu0 0.0
  %3163 = vmatprep.subr.mxu0 0.0
  %3164 = vmatpush1.msra.mxu0 0.0
  %3165 = vmatprep.subr.mxu0 0.0
  %3166 = vmatpush1.msra.mxu0 0.0
  %3167 = vmatprep.subr.mxu0 0.0
  %3168 = vmatpush1.msra.mxu0 0.0
  %3169 = vmatprep.subr.mxu0 0.0
  %3170 = vmatpush1.msra.mxu0 0.0
  %3171 = vmatprep.subr.mxu0 0.0
  %3172 = vmatpush1.msra.mxu0 0.0
  %3173 = vmatprep.subr.mxu0 0.0
  %3174 = vmatpush1.msra.mxu0 0.0
  %3175 = vmatprep.subr.mxu0 0.0
  %3176 = vmatpush1.msra.mxu0 0.0
  %3177 = vmatprep.subr.mxu0 0.0
  %3178 = vmatpush1.msra.mxu0 0.0
  %3179 = vmatprep.subr.mxu0 0.0
  %3180 = vmatpush1.msra.mxu0 0.0
  %3181 = vmatprep.subr.mxu0 0.0
  %3182 = vmatpush1.msra.mxu0 0.0
  %3183 = vmatprep.subr.mxu0 0.0
  %3184 = vmatpush1.msra.mxu0 0.0
  %3185 = vmatprep.subr.mxu0 0.0
  %3186 = vmatpush1.msra.mxu0 0.0
  %3187 = vmatprep.subr.mxu0 0.0
  %3188 = vmatpush1.msra.mxu0 0.0
  %3189 = vmatprep.subr.mxu0 0.0
  %3190 = vmatpush1.msra.mxu0 0.0
  %3191 = vmatprep.subr.mxu0 0.0
  %3192 = vmatpush1.msra.mxu0 0.0
  %3193 = vmatprep.subr.mxu0 0.0
  %3194 = vmatpush1.msra.mxu0 0.0
  %3195 = vmatprep.subr.mxu0 0.0
  %3196 = vmatpush1.msra.mxu0 0.0
  %3197 = vmatprep.mubr.f32.mxu0 0.0
  %3198 = vmatmul.mubr.f32.gmra.mrb[0].mxu0 %v3124
  %v3199 = vpop.f32.mrb[0].mxu0
  %v3200 = vadd.f32 %v3111, %v3199
  %v3201 = vpop.f32.mrb[0].mxu0
  %3202 = vmatprep.mubr.f32.mxu0 0.0
  %3203 = vmatmul.mubr.f32.gmra.mrb[0].mxu0 %v3126
  %v3204 = vpop.f32.mrb[0].mxu0
  %v3205 = vadd.f32 %v3116, %v3204
  %v3206 = vpop.f32.mrb[0].mxu0
  %3207 = vmatprep.mubr.f32.mxu0 0.0
  %3208 = vmatmul.mubr.f32.gmra.mrb[0].mxu0 %v3128
  %v3209 = vpop.f32.mrb[0].mxu0
  %v3210 = vadd.f32 %v3121, %v3209
  %v3211 = vpop.f32.mrb[0].mxu0
  %3212 = vdwg.mxu0
  %v3213 = vmax.f32 %v3200, 0.0
  %v3214 = vmax.f32 %v3205, 0.0
  %v3215 = vmax.f32 %v3210, 0.0
  %v3216 = vld [vmem:[%s2 + $0xd80] sm:$0xff]
  %v3217 = vld [vmem:[%s2 + $0xd90] sm:$0xff]
  %v3218 = vld [vmem:[%s2 + $0xda0] sm:$0xff]
  %v3220 = vsel %vm1686, %v3213, 0
  %v3223 = vsel %vm1686, %v3214, 0
  %v3226 = vsel %vm1686, %v3215, 0
  %3228 = vmatprep.subr.mxu0 0.0
  %3229 = vmatpush1.msra.mxu0 %v1682
  %3230 = vmatprep.subr.mxu0 0.0
  %3231 = vmatpush1.msra.mxu0 %v1683
  %3232 = vmatprep.subr.mxu0 0.0
  %3233 = vmatpush1.msra.mxu0 %v1684
  %3234 = vmatprep.subr.mxu0 0.0
  %3235 = vmatpush1.msra.mxu0 %v1685
  %3236 = vmatprep.subr.mxu0 0.0
  %3237 = vmatpush1.msra.mxu0 0.0
  %3238 = vmatprep.subr.mxu0 0.0
  %3239 = vmatpush1.msra.mxu0 0.0
  %3240 = vmatprep.subr.mxu0 0.0
  %3241 = vmatpush1.msra.mxu0 0.0
  %3242 = vmatprep.subr.mxu0 0.0
  %3243 = vmatpush1.msra.mxu0 0.0
  %3244 = vmatprep.subr.mxu0 0.0
  %3245 = vmatpush1.msra.mxu0 0.0
  %3246 = vmatprep.subr.mxu0 0.0
  %3247 = vmatpush1.msra.mxu0 0.0
  %3248 = vmatprep.subr.mxu0 0.0
  %3249 = vmatpush1.msra.mxu0 0.0
  %3250 = vmatprep.subr.mxu0 0.0
  %3251 = vmatpush1.msra.mxu0 0.0
  %3252 = vmatprep.subr.mxu0 0.0
  %3253 = vmatpush1.msra.mxu0 0.0
  %3254 = vmatprep.subr.mxu0 0.0
  %3255 = vmatpush1.msra.mxu0 0.0
  %3256 = vmatprep.subr.mxu0 0.0
  %3257 = vmatpush1.msra.mxu0 0.0
  %3258 = vmatprep.subr.mxu0 0.0
  %3259 = vmatpush1.msra.mxu0 0.0
  %3260 = vmatprep.subr.mxu0 0.0
  %3261 = vmatpush1.msra.mxu0 0.0
  %3262 = vmatprep.subr.mxu0 0.0
  %3263 = vmatpush1.msra.mxu0 0.0
  %3264 = vmatprep.subr.mxu0 0.0
  %3265 = vmatpush1.msra.mxu0 0.0
  %3266 = vmatprep.subr.mxu0 0.0
  %3267 = vmatpush1.msra.mxu0 0.0
  %3268 = vmatprep.subr.mxu0 0.0
  %3269 = vmatpush1.msra.mxu0 0.0
  %3270 = vmatprep.subr.mxu0 0.0
  %3271 = vmatpush1.msra.mxu0 0.0
  %3272 = vmatprep.subr.mxu0 0.0
  %3273 = vmatpush1.msra.mxu0 0.0
  %3274 = vmatprep.subr.mxu0 0.0
  %3275 = vmatpush1.msra.mxu0 0.0
  %3276 = vmatprep.subr.mxu0 0.0
  %3277 = vmatpush1.msra.mxu0 0.0
  %3278 = vmatprep.subr.mxu0 0.0
  %3279 = vmatpush1.msra.mxu0 0.0
  %3280 = vmatprep.subr.mxu0 0.0
  %3281 = vmatpush1.msra.mxu0 0.0
  %3282 = vmatprep.subr.mxu0 0.0
  %3283 = vmatpush1.msra.mxu0 0.0
  %3284 = vmatprep.subr.mxu0 0.0
  %3285 = vmatpush1.msra.mxu0 0.0
  %3286 = vmatprep.subr.mxu0 0.0
  %3287 = vmatpush1.msra.mxu0 0.0
  %3288 = vmatprep.subr.mxu0 0.0
  %3289 = vmatpush1.msra.mxu0 0.0
  %3290 = vmatprep.subr.mxu0 0.0
  %3291 = vmatpush1.msra.mxu0 0.0
  %3292 = vmatprep.mubr.f32.mxu0 0.0
  %3293 = vmatmul.mubr.f32.gmra.mrb[0].mxu0 %v3220
  %v3294 = vpop.f32.mrb[0].mxu0
  %v3295 = vadd.f32 0.0, %v3294
  %v3296 = vpop.f32.mrb[0].mxu0
  %3297 = vmatprep.mubr.f32.mxu0 0.0
  %3298 = vmatmul.mubr.f32.gmra.mrb[0].mxu0 %v3223
  %v3299 = vpop.f32.mrb[0].mxu0
  %v3300 = vadd.f32 0.0, %v3299
  %v3301 = vpop.f32.mrb[0].mxu0
  %3302 = vmatprep.mubr.f32.mxu0 0.0
  %3303 = vmatmul.mubr.f32.gmra.mrb[0].mxu0 %v3226
  %v3304 = vpop.f32.mrb[0].mxu0
  %v3305 = vadd.f32 0.0, %v3304
  %v3306 = vpop.f32.mrb[0].mxu0
  %3307 = vdwg.mxu0
  %3309 = vset.pattern.permute.xlu0 24
  %3310 = vperm.xlu0 %3309, %v3216
  %v3311 = vpop.permute.xlu0 %3310
  %3314 = vset.pattern.permute.xlu0 24
  %3315 = vperm.xlu0 %3314, %v3217
  %v3316 = vpop.permute.xlu0 %3315
  %3319 = vset.pattern.permute.xlu0 24
  %3320 = vperm.xlu0 %3319, %v3218
  %v3321 = vpop.permute.xlu0 %3320
  %v3323 = vsel %vm2296, %v3216, 0
  %v3325 = vsel %vm2296, %v3217, 0
  %v3327 = vsel %vm2296, %v3218, 0
  %3329 = vmatprep.subr.mxu0 0.0
  %3330 = vmatpush1.msra.mxu0 %v3295
  %3331 = vmatprep.subr.mxu0 0.0
  %3332 = vmatpush1.msra.mxu0 %v3300
  %3333 = vmatprep.subr.mxu0 0.0
  %3334 = vmatpush1.msra.mxu0 %v3305
  %3335 = vmatprep.subr.mxu0 0.0
  %3336 = vmatpush1.msra.mxu0 0.0
  %3337 = vmatprep.subr.mxu0 0.0
  %3338 = vmatpush1.msra.mxu0 0.0
  %3339 = vmatprep.subr.mxu0 0.0
  %3340 = vmatpush1.msra.mxu0 0.0
  %3341 = vmatprep.subr.mxu0 0.0
  %3342 = vmatpush1.msra.mxu0 0.0
  %3343 = vmatprep.subr.mxu0 0.0
  %3344 = vmatpush1.msra.mxu0 0.0
  %3345 = vmatprep.subr.mxu0 0.0
  %3346 = vmatpush1.msra.mxu0 0.0
  %3347 = vmatprep.subr.mxu0 0.0
  %3348 = vmatpush1.msra.mxu0 0.0
  %3349 = vmatprep.subr.mxu0 0.0
  %3350 = vmatpush1.msra.mxu0 0.0
  %3351 = vmatprep.subr.mxu0 0.0
  %3352 = vmatpush1.msra.mxu0 0.0
  %3353 = vmatprep.subr.mxu0 0.0
  %3354 = vmatpush1.msra.mxu0 0.0
  %3355 = vmatprep.subr.mxu0 0.0
  %3356 = vmatpush1.msra.mxu0 0.0
  %3357 = vmatprep.subr.mxu0 0.0
  %3358 = vmatpush1.msra.mxu0 0.0
  %3359 = vmatprep.subr.mxu0 0.0
  %3360 = vmatpush1.msra.mxu0 0.0
  %3361 = vmatprep.subr.mxu0 0.0
  %3362 = vmatpush1.msra.mxu0 0.0
  %3363 = vmatprep.subr.mxu0 0.0
  %3364 = vmatpush1.msra.mxu0 0.0
  %3365 = vmatprep.subr.mxu0 0.0
  %3366 = vmatpush1.msra.mxu0 0.0
  %3367 = vmatprep.subr.mxu0 0.0
  %3368 = vmatpush1.msra.mxu0 0.0
  %3369 = vmatprep.subr.mxu0 0.0
  %3370 = vmatpush1.msra.mxu0 0.0
  %3371 = vmatprep.subr.mxu0 0.0
  %3372 = vmatpush1.msra.mxu0 0.0
  %3373 = vmatprep.subr.mxu0 0.0
  %3374 = vmatpush1.msra.mxu0 0.0
  %3375 = vmatprep.subr.mxu0 0.0
  %3376 = vmatpush1.msra.mxu0 0.0
  %3377 = vmatprep.subr.mxu0 0.0
  %3378 = vmatpush1.msra.mxu0 0.0
  %3379 = vmatprep.subr.mxu0 0.0
  %3380 = vmatpush1.msra.mxu0 0.0
  %3381 = vmatprep.subr.mxu0 0.0
  %3382 = vmatpush1.msra.mxu0 0.0
  %3383 = vmatprep.subr.mxu0 0.0
  %3384 = vmatpush1.msra.mxu0 0.0
  %3385 = vmatprep.subr.mxu0 0.0
  %3386 = vmatpush1.msra.mxu0 0.0
  %3387 = vmatprep.subr.mxu0 0.0
  %3388 = vmatpush1.msra.mxu0 0.0
  %3389 = vmatprep.subr.mxu0 0.0
  %3390 = vmatpush1.msra.mxu0 0.0
  %3391 = vmatprep.subr.mxu0 0.0
  %3392 = vmatpush1.msra.mxu0 0.0
  %3393 = vmatprep.mubr.f32.mxu0 0.0
  %3394 = vmatmul.mubr.f32.gmra.mrb[0].mxu0 %v3323
  %v3395 = vpop.f32.mrb[0].mxu0
  %v3396 = vadd.f32 %v3311, %v3395
  %v3397 = vpop.f32.mrb[0].mxu0
  %3398 = vmatprep.mubr.f32.mxu0 0.0
  %3399 = vmatmul.mubr.f32.gmra.mrb[0].mxu0 %v3325
  %v3400 = vpop.f32.mrb[0].mxu0
  %v3401 = vadd.f32 %v3316, %v3400
  %v3402 = vpop.f32.mrb[0].mxu0
  %3403 = vmatprep.mubr.f32.mxu0 0.0
  %3404 = vmatmul.mubr.f32.gmra.mrb[0].mxu0 %v3327
  %v3405 = vpop.f32.mrb[0].mxu0
  %v3406 = vadd.f32 %v3321, %v3405
  %v3407 = vpop.f32.mrb[0].mxu0
  %3408 = vdwg.mxu0
  %v3409 = vmax.f32 %v3396, 0.0
  %v3410 = vmax.f32 %v3401, 0.0
  %v3411 = vmax.f32 %v3406, 0.0
  %v3412 = vld [vmem:[%s2 + $0x600] sm:$0xff]
  %v3413 = vld [vmem:[%s2 + $0x610] sm:$0xff]
  %v3414 = vld [vmem:[%s2 + $0x620] sm:$0xff]
  %v3415 = vld [vmem:[%s2 + $0x630] sm:$0xff]
  %v3417 = vsel %vm1686, %v3409, 0
  %v3420 = vsel %vm1686, %v3410, 0
  %v3423 = vsel %vm1686, %v3411, 0
  %3425 = vmatprep.subr.mxu0 0.0
  %3426 = vmatpush1.msra.mxu0 %v3412
  %3427 = vmatprep.subr.mxu0 0.0
  %3428 = vmatpush1.msra.mxu0 %v3413
  %3429 = vmatprep.subr.mxu0 0.0
  %3430 = vmatpush1.msra.mxu0 %v3414
  %3431 = vmatprep.subr.mxu0 0.0
  %3432 = vmatpush1.msra.mxu0 %v3415
  %3433 = vmatprep.subr.mxu0 0.0
  %3434 = vmatpush1.msra.mxu0 0.0
  %3435 = vmatprep.subr.mxu0 0.0
  %3436 = vmatpush1.msra.mxu0 0.0
  %3437 = vmatprep.subr.mxu0 0.0
  %3438 = vmatpush1.msra.mxu0 0.0
  %3439 = vmatprep.subr.mxu0 0.0
  %3440 = vmatpush1.msra.mxu0 0.0
  %3441 = vmatprep.subr.mxu0 0.0
  %3442 = vmatpush1.msra.mxu0 0.0
  %3443 = vmatprep.subr.mxu0 0.0
  %3444 = vmatpush1.msra.mxu0 0.0
  %3445 = vmatprep.subr.mxu0 0.0
  %3446 = vmatpush1.msra.mxu0 0.0
  %3447 = vmatprep.subr.mxu0 0.0
  %3448 = vmatpush1.msra.mxu0 0.0
  %3449 = vmatprep.subr.mxu0 0.0
  %3450 = vmatpush1.msra.mxu0 0.0
  %3451 = vmatprep.subr.mxu0 0.0
  %3452 = vmatpush1.msra.mxu0 0.0
  %3453 = vmatprep.subr.mxu0 0.0
  %3454 = vmatpush1.msra.mxu0 0.0
  %3455 = vmatprep.subr.mxu0 0.0
  %3456 = vmatpush1.msra.mxu0 0.0
  %3457 = vmatprep.subr.mxu0 0.0
  %3458 = vmatpush1.msra.mxu0 0.0
  %3459 = vmatprep.subr.mxu0 0.0
  %3460 = vmatpush1.msra.mxu0 0.0
  %3461 = vmatprep.subr.mxu0 0.0
  %3462 = vmatpush1.msra.mxu0 0.0
  %3463 = vmatprep.subr.mxu0 0.0
  %3464 = vmatpush1.msra.mxu0 0.0
  %3465 = vmatprep.subr.mxu0 0.0
  %3466 = vmatpush1.msra.mxu0 0.0
  %3467 = vmatprep.subr.mxu0 0.0
  %3468 = vmatpush1.msra.mxu0 0.0
  %3469 = vmatprep.subr.mxu0 0.0
  %3470 = vmatpush1.msra.mxu0 0.0
  %3471 = vmatprep.subr.mxu0 0.0
  %3472 = vmatpush1.msra.mxu0 0.0
  %3473 = vmatprep.subr.mxu0 0.0
  %3474 = vmatpush1.msra.mxu0 0.0
  %3475 = vmatprep.subr.mxu0 0.0
  %3476 = vmatpush1.msra.mxu0 0.0
  %3477 = vmatprep.subr.mxu0 0.0
  %3478 = vmatpush1.msra.mxu0 0.0
  %3479 = vmatprep.subr.mxu0 0.0
  %3480 = vmatpush1.msra.mxu0 0.0
  %3481 = vmatprep.subr.mxu0 0.0
  %3482 = vmatpush1.msra.mxu0 0.0
  %3483 = vmatprep.subr.mxu0 0.0
  %3484 = vmatpush1.msra.mxu0 0.0
  %3485 = vmatprep.subr.mxu0 0.0
  %3486 = vmatpush1.msra.mxu0 0.0
  %3487 = vmatprep.subr.mxu0 0.0
  %3488 = vmatpush1.msra.mxu0 0.0
  %3489 = vmatprep.mubr.f32.mxu0 0.0
  %3490 = vmatmul.mubr.f32.gmra.mrb[0].mxu0 %v3417
  %v3491 = vpop.f32.mrb[0].mxu0
  %v3492 = vadd.f32 0.0, %v3491
  %v3493 = vpop.f32.mrb[0].mxu0
  %3494 = vmatprep.mubr.f32.mxu0 0.0
  %3495 = vmatmul.mubr.f32.gmra.mrb[0].mxu0 %v3420
  %v3496 = vpop.f32.mrb[0].mxu0
  %v3497 = vadd.f32 0.0, %v3496
  %v3498 = vpop.f32.mrb[0].mxu0
  %3499 = vmatprep.mubr.f32.mxu0 0.0
  %3500 = vmatmul.mubr.f32.gmra.mrb[0].mxu0 %v3423
  %v3501 = vpop.f32.mrb[0].mxu0
  %v3502 = vadd.f32 0.0, %v3501
  %v3503 = vpop.f32.mrb[0].mxu0
  %3504 = vdwg.mxu0
  %v3505 = vmul.f32 %v3492, %v3492
  %v3506 = vmul.f32 %v3497, %v3497
  %v3507 = vmul.f32 %v3502, %v3502
  %v3509 = vsel %vm179, %v3492, 0
  %v3512 = vsel %vm179, %v3497, 0
  %v3515 = vsel %vm179, %v3502, 0
  %v3518 = vsel %vm179, %v3505, 0
  %v3521 = vsel %vm179, %v3506, 0
  %v3524 = vsel %vm179, %v3507, 0
  %3526 = vmatprep.subr.mxu0 0.0
  %3527 = vmatpush1.msra.mxu0 %v1371
  %3528 = vmatprep.subr.mxu0 0.0
  %3529 = vmatpush1.msra.mxu0 %v1372
  %3530 = vmatprep.subr.mxu0 0.0
  %3531 = vmatpush1.msra.mxu0 %v1373
  %3532 = vmatprep.subr.mxu0 0.0
  %3533 = vmatpush1.msra.mxu0 %v1374
  %3534 = vmatprep.subr.mxu0 0.0
  %3535 = vmatpush1.msra.mxu0 %v1375
  %3536 = vmatprep.subr.mxu0 0.0
  %3537 = vmatpush1.msra.mxu0 %v1376
  %3538 = vmatprep.subr.mxu0 0.0
  %3539 = vmatpush1.msra.mxu0 %v1377
  %3540 = vmatprep.subr.mxu0 0.0
  %3541 = vmatpush1.msra.mxu0 %v1378
  %3542 = vmatprep.subr.mxu0 0.0
  %3543 = vmatpush1.msra.mxu0 0.0
  %3544 = vmatprep.subr.mxu0 0.0
  %3545 = vmatpush1.msra.mxu0 0.0
  %3546 = vmatprep.subr.mxu0 0.0
  %3547 = vmatpush1.msra.mxu0 0.0
  %3548 = vmatprep.subr.mxu0 0.0
  %3549 = vmatpush1.msra.mxu0 0.0
  %3550 = vmatprep.subr.mxu0 0.0
  %3551 = vmatpush1.msra.mxu0 0.0
  %3552 = vmatprep.subr.mxu0 0.0
  %3553 = vmatpush1.msra.mxu0 0.0
  %3554 = vmatprep.subr.mxu0 0.0
  %3555 = vmatpush1.msra.mxu0 0.0
  %3556 = vmatprep.subr.mxu0 0.0
  %3557 = vmatpush1.msra.mxu0 0.0
  %3558 = vmatprep.subr.mxu0 0.0
  %3559 = vmatpush1.msra.mxu0 0.0
  %3560 = vmatprep.subr.mxu0 0.0
  %3561 = vmatpush1.msra.mxu0 0.0
  %3562 = vmatprep.subr.mxu0 0.0
  %3563 = vmatpush1.msra.mxu0 0.0
  %3564 = vmatprep.subr.mxu0 0.0
  %3565 = vmatpush1.msra.mxu0 0.0
  %3566 = vmatprep.subr.mxu0 0.0
  %3567 = vmatpush1.msra.mxu0 0.0
  %3568 = vmatprep.subr.mxu0 0.0
  %3569 = vmatpush1.msra.mxu0 0.0
  %3570 = vmatprep.subr.mxu0 0.0
  %3571 = vmatpush1.msra.mxu0 0.0
  %3572 = vmatprep.subr.mxu0 0.0
  %3573 = vmatpush1.msra.mxu0 0.0
  %3574 = vmatprep.subr.mxu0 0.0
  %3575 = vmatpush1.msra.mxu0 0.0
  %3576 = vmatprep.subr.mxu0 0.0
  %3577 = vmatpush1.msra.mxu0 0.0
  %3578 = vmatprep.subr.mxu0 0.0
  %3579 = vmatpush1.msra.mxu0 0.0
  %3580 = vmatprep.subr.mxu0 0.0
  %3581 = vmatpush1.msra.mxu0 0.0
  %3582 = vmatprep.subr.mxu0 0.0
  %3583 = vmatpush1.msra.mxu0 0.0
  %3584 = vmatprep.subr.mxu0 0.0
  %3585 = vmatpush1.msra.mxu0 0.0
  %3586 = vmatprep.subr.mxu0 0.0
  %3587 = vmatpush1.msra.mxu0 0.0
  %3588 = vmatprep.subr.mxu0 0.0
  %3589 = vmatpush1.msra.mxu0 0.0
  %3590 = vmatprep.mubr.f32.mxu0 0.0
  %3591 = vmatmul.mubr.f32.gmra.mrb[0].mxu0 %v3509
  %v3592 = vpop.f32.mrb[0].mxu0
  %v3593 = vadd.f32 0.0, %v3592
  %v3594 = vpop.f32.mrb[0].mxu0
  %3595 = vmatprep.mubr.f32.mxu0 0.0
  %3596 = vmatmul.mubr.f32.gmra.mrb[0].mxu0 %v3512
  %v3597 = vpop.f32.mrb[0].mxu0
  %v3598 = vadd.f32 0.0, %v3597
  %v3599 = vpop.f32.mrb[0].mxu0
  %3600 = vmatprep.mubr.f32.mxu0 0.0
  %3601 = vmatmul.mubr.f32.gmra.mrb[0].mxu0 %v3515
  %v3602 = vpop.f32.mrb[0].mxu0
  %v3603 = vadd.f32 0.0, %v3602
  %v3604 = vpop.f32.mrb[0].mxu0
  %3605 = vmatprep.mubr.f32.mxu0 0.0
  %3606 = vmatmul.mubr.f32.gmra.mrb[0].mxu0 %v3518
  %v3607 = vpop.f32.mrb[0].mxu0
  %v3608 = vadd.f32 0.0, %v3607
  %v3609 = vpop.f32.mrb[0].mxu0
  %3610 = vmatprep.mubr.f32.mxu0 0.0
  %3611 = vmatmul.mubr.f32.gmra.mrb[0].mxu0 %v3521
  %v3612 = vpop.f32.mrb[0].mxu0
  %v3613 = vadd.f32 0.0, %v3612
  %v3614 = vpop.f32.mrb[0].mxu0
  %3615 = vmatprep.mubr.f32.mxu0 0.0
  %3616 = vmatmul.mubr.f32.gmra.mrb[0].mxu0 %v3524
  %v3617 = vpop.f32.mrb[0].mxu0
  %v3618 = vadd.f32 0.0, %v3617
  %v3619 = vpop.f32.mrb[0].mxu0
  %3620 = vdwg.mxu0
  %v3621 = vmul.f32 %v3593, %v3593
  %v3622 = vmul.f32 %v3598, %v3598
  %v3623 = vmul.f32 %v3603, %v3603
  %v3624 = vsub.f32 %v3608, %v3621
  %v3625 = vsub.f32 %v3613, %v3622
  %v3626 = vsub.f32 %v3618, %v3623
  %v3627 = vmax.f32 %v3624, 0.0
  %v3628 = vmax.f32 %v3625, 0.0
  %v3629 = vmax.f32 %v3626, 0.0
  %v3630 = vsub.f32 %v3492, %v3593
  %v3631 = vsub.f32 %v3497, %v3598
  %v3632 = vsub.f32 %v3502, %v3603
  %v3633 = vadd.f32 %v3627, 1e-05
  %v3634 = vadd.f32 %v3628, 1e-05
  %v3635 = vadd.f32 %v3629, 1e-05
  %v3636 = vrsqrt.pop %v3633
  %v3637 = vrsqrt.pop %v3634
  %v3638 = vrsqrt.pop %v3635
  %v3639 = vmul.f32 %v3630, %v3636
  %v3640 = vmul.f32 %v3631, %v3637
  %v3641 = vmul.f32 %v3632, %v3638
  %v3642 = vld [vmem:[%s2 + $0xdb0] sm:$0xff]
  %v3643 = vld [vmem:[%s2 + $0xdc0] sm:$0xf]
  %v3645 = vsel %vm179, %v3639, 0
  %v3648 = vsel %vm179, %v3640, 0
  %v3651 = vsel %vm179, %v3641, 0
  %3653 = vmatprep.subr.mxu0 0.0
  %3654 = vmatpush1.msra.mxu0 %v1179
  %3655 = vmatprep.subr.mxu0 0.0
  %3656 = vmatpush1.msra.mxu0 %v1180
  %3657 = vmatprep.subr.mxu0 0.0
  %3658 = vmatpush1.msra.mxu0 %v1181
  %3659 = vmatprep.subr.mxu0 0.0
  %3660 = vmatpush1.msra.mxu0 %v1182
  %3661 = vmatprep.subr.mxu0 0.0
  %3662 = vmatpush1.msra.mxu0 %v1183
  %3663 = vmatprep.subr.mxu0 0.0
  %3664 = vmatpush1.msra.mxu0 %v1184
  %3665 = vmatprep.subr.mxu0 0.0
  %3666 = vmatpush1.msra.mxu0 %v1185
  %3667 = vmatprep.subr.mxu0 0.0
  %3668 = vmatpush1.msra.mxu0 %v1186
  %3669 = vmatprep.subr.mxu0 0.0
  %3670 = vmatpush1.msra.mxu0 0.0
  %3671 = vmatprep.subr.mxu0 0.0
  %3672 = vmatpush1.msra.mxu0 0.0
  %3673 = vmatprep.subr.mxu0 0.0
  %3674 = vmatpush1.msra.mxu0 0.0
  %3675 = vmatprep.subr.mxu0 0.0
  %3676 = vmatpush1.msra.mxu0 0.0
  %3677 = vmatprep.subr.mxu0 0.0
  %3678 = vmatpush1.msra.mxu0 0.0
  %3679 = vmatprep.subr.mxu0 0.0
  %3680 = vmatpush1.msra.mxu0 0.0
  %3681 = vmatprep.subr.mxu0 0.0
  %3682 = vmatpush1.msra.mxu0 0.0
  %3683 = vmatprep.subr.mxu0 0.0
  %3684 = vmatpush1.msra.mxu0 0.0
  %3685 = vmatprep.subr.mxu0 0.0
  %3686 = vmatpush1.msra.mxu0 0.0
  %3687 = vmatprep.subr.mxu0 0.0
  %3688 = vmatpush1.msra.mxu0 0.0
  %3689 = vmatprep.subr.mxu0 0.0
  %3690 = vmatpush1.msra.mxu0 0.0
  %3691 = vmatprep.subr.mxu0 0.0
  %3692 = vmatpush1.msra.mxu0 0.0
  %3693 = vmatprep.subr.mxu0 0.0
  %3694 = vmatpush1.msra.mxu0 0.0
  %3695 = vmatprep.subr.mxu0 0.0
  %3696 = vmatpush1.msra.mxu0 0.0
  %3697 = vmatprep.subr.mxu0 0.0
  %3698 = vmatpush1.msra.mxu0 0.0
  %3699 = vmatprep.subr.mxu0 0.0
  %3700 = vmatpush1.msra.mxu0 0.0
  %3701 = vmatprep.subr.mxu0 0.0
  %3702 = vmatpush1.msra.mxu0 0.0
  %3703 = vmatprep.subr.mxu0 0.0
  %3704 = vmatpush1.msra.mxu0 0.0
  %3705 = vmatprep.subr.mxu0 0.0
  %3706 = vmatpush1.msra.mxu0 0.0
  %3707 = vmatprep.subr.mxu0 0.0
  %3708 = vmatpush1.msra.mxu0 0.0
  %3709 = vmatprep.subr.mxu0 0.0
  %3710 = vmatpush1.msra.mxu0 0.0
  %3711 = vmatprep.subr.mxu0 0.0
  %3712 = vmatpush1.msra.mxu0 0.0
  %3713 = vmatprep.subr.mxu0 0.0
  %3714 = vmatpush1.msra.mxu0 0.0
  %3715 = vmatprep.subr.mxu0 0.0
  %3716 = vmatpush1.msra.mxu0 0.0
  %3717 = vmatprep.mubr.f32.mxu0 0.0
  %3718 = vmatmul.mubr.f32.gmra.mrb[0].mxu0 %v3645
  %v3719 = vpop.f32.mrb[0].mxu0
  %v3720 = vadd.f32 0.0, %v3719
  %v3721 = vpop.f32.mrb[0].mxu0
  %3722 = vmatprep.mubr.f32.mxu0 0.0
  %3723 = vmatmul.mubr.f32.gmra.mrb[0].mxu0 %v3648
  %v3724 = vpop.f32.mrb[0].mxu0
  %v3725 = vadd.f32 0.0, %v3724
  %v3726 = vpop.f32.mrb[0].mxu0
  %3727 = vmatprep.mubr.f32.mxu0 0.0
  %3728 = vmatmul.mubr.f32.gmra.mrb[0].mxu0 %v3651
  %v3729 = vpop.f32.mrb[0].mxu0
  %v3730 = vadd.f32 0.0, %v3729
  %v3731 = vpop.f32.mrb[0].mxu0
  %3732 = vmatprep.mubr.f32.mxu0 0.0
  %3733 = vmatmul.mubr.f32.gmra.mrb[0].mxu0 %v1506
  %v3734 = vpop.f32.mrb[0].mxu0
  %v3735 = vadd.f32 0.0, %v3734
  %v3736 = vpop.f32.mrb[0].mxu0
  %3737 = vmatprep.mubr.f32.mxu0 0.0
  %3738 = vmatmul.mubr.f32.gmra.mrb[0].mxu0 %v1509
  %v3739 = vpop.f32.mrb[0].mxu0
  %v3740 = vadd.f32 0.0, %v3739
  %v3741 = vpop.f32.mrb[0].mxu0
  %3742 = vdwg.mxu0
  %3744 = vset.pattern.permute.xlu0 36
  %3745 = vperm.xlu0 %3744, %v3642
  %v3746 = vpop.permute.xlu0 %3745
  %3749 = vset.pattern.permute.xlu0 36
  %3750 = vperm.xlu0 %3749, %v3643
  %v3751 = vpop.permute.xlu0 %3750
  %v3753 = vsel %vm3123, %v3642, 0
  %v3755 = vsel %vm3123, %v3643, 0
  %v3758 = vsel %vm128, %v3740, 0
  %3760 = vmatprep.subr.mxu0 0.0
  %3761 = vmatpush1.msra.mxu0 %v3720
  %3762 = vmatprep.subr.mxu0 0.0
  %3763 = vmatpush1.msra.mxu0 %v3725
  %3764 = vmatprep.subr.mxu0 0.0
  %3765 = vmatpush1.msra.mxu0 %v3730
  %3766 = vmatprep.subr.mxu0 0.0
  %3767 = vmatpush1.msra.mxu0 %v3735
  %3768 = vmatprep.subr.mxu0 0.0
  %3769 = vmatpush1.msra.mxu0 %v3758
  %3770 = vmatprep.subr.mxu0 0.0
  %3771 = vmatpush1.msra.mxu0 0.0
  %3772 = vmatprep.subr.mxu0 0.0
  %3773 = vmatpush1.msra.mxu0 0.0
  %3774 = vmatprep.subr.mxu0 0.0
  %3775 = vmatpush1.msra.mxu0 0.0
  %3776 = vmatprep.subr.mxu0 0.0
  %3777 = vmatpush1.msra.mxu0 0.0
  %3778 = vmatprep.subr.mxu0 0.0
  %3779 = vmatpush1.msra.mxu0 0.0
  %3780 = vmatprep.subr.mxu0 0.0
  %3781 = vmatpush1.msra.mxu0 0.0
  %3782 = vmatprep.subr.mxu0 0.0
  %3783 = vmatpush1.msra.mxu0 0.0
  %3784 = vmatprep.subr.mxu0 0.0
  %3785 = vmatpush1.msra.mxu0 0.0
  %3786 = vmatprep.subr.mxu0 0.0
  %3787 = vmatpush1.msra.mxu0 0.0
  %3788 = vmatprep.subr.mxu0 0.0
  %3789 = vmatpush1.msra.mxu0 0.0
  %3790 = vmatprep.subr.mxu0 0.0
  %3791 = vmatpush1.msra.mxu0 0.0
  %3792 = vmatprep.subr.mxu0 0.0
  %3793 = vmatpush1.msra.mxu0 0.0
  %3794 = vmatprep.subr.mxu0 0.0
  %3795 = vmatpush1.msra.mxu0 0.0
  %3796 = vmatprep.subr.mxu0 0.0
  %3797 = vmatpush1.msra.mxu0 0.0
  %3798 = vmatprep.subr.mxu0 0.0
  %3799 = vmatpush1.msra.mxu0 0.0
  %3800 = vmatprep.subr.mxu0 0.0
  %3801 = vmatpush1.msra.mxu0 0.0
  %3802 = vmatprep.subr.mxu0 0.0
  %3803 = vmatpush1.msra.mxu0 0.0
  %3804 = vmatprep.subr.mxu0 0.0
  %3805 = vmatpush1.msra.mxu0 0.0
  %3806 = vmatprep.subr.mxu0 0.0
  %3807 = vmatpush1.msra.mxu0 0.0
  %3808 = vmatprep.subr.mxu0 0.0
  %3809 = vmatpush1.msra.mxu0 0.0
  %3810 = vmatprep.subr.mxu0 0.0
  %3811 = vmatpush1.msra.mxu0 0.0
  %3812 = vmatprep.subr.mxu0 0.0
  %3813 = vmatpush1.msra.mxu0 0.0
  %3814 = vmatprep.subr.mxu0 0.0
  %3815 = vmatpush1.msra.mxu0 0.0
  %3816 = vmatprep.subr.mxu0 0.0
  %3817 = vmatpush1.msra.mxu0 0.0
  %3818 = vmatprep.subr.mxu0 0.0
  %3819 = vmatpush1.msra.mxu0 0.0
  %3820 = vmatprep.subr.mxu0 0.0
  %3821 = vmatpush1.msra.mxu0 0.0
  %3822 = vmatprep.subr.mxu0 0.0
  %3823 = vmatpush1.msra.mxu0 0.0
  %3824 = vmatprep.mubr.f32.mxu0 0.0
  %3825 = vmatmul.mubr.f32.gmra.mrb[0].mxu0 %v3753
  %v3826 = vpop.f32.mrb[0].mxu0
  %v3827 = vadd.f32 %v3746, %v3826
  %v3828 = vpop.f32.mrb[0].mxu0
  %3829 = vmatprep.mubr.f32.mxu0 0.0
  %3830 = vmatmul.mubr.f32.gmra.mrb[0].mxu0 %v3755
  %v3831 = vpop.f32.mrb[0].mxu0
  %v3832 = vadd.f32 %v3751, %v3831
  %v3833 = vpop.f32.mrb[0].mxu0
  %3834 = vdwg.mxu0
  %v3835 = vmax.f32 %v3827, 0.0
  %v3836 = vmax.f32 %v3832, 0.0
  %v3837 = vld [vmem:[%s2 + $0xdd0] sm:$0xff]
  %v3838 = vld [vmem:[%s2 + $0xde0] sm:$0xf]
  %v3840 = vsel %vm179, %v3835, 0
  %v3843 = vsel %vm179, %v3836, 0
  %3845 = vmatprep.subr.mxu0 0.0
  %3846 = vmatpush1.msra.mxu0 %v1179
  %3847 = vmatprep.subr.mxu0 0.0
  %3848 = vmatpush1.msra.mxu0 %v1180
  %3849 = vmatprep.subr.mxu0 0.0
  %3850 = vmatpush1.msra.mxu0 %v1181
  %3851 = vmatprep.subr.mxu0 0.0
  %3852 = vmatpush1.msra.mxu0 %v1182
  %3853 = vmatprep.subr.mxu0 0.0
  %3854 = vmatpush1.msra.mxu0 %v1183
  %3855 = vmatprep.subr.mxu0 0.0
  %3856 = vmatpush1.msra.mxu0 %v1184
  %3857 = vmatprep.subr.mxu0 0.0
  %3858 = vmatpush1.msra.mxu0 %v1185
  %3859 = vmatprep.subr.mxu0 0.0
  %3860 = vmatpush1.msra.mxu0 %v1186
  %3861 = vmatprep.subr.mxu0 0.0
  %3862 = vmatpush1.msra.mxu0 0.0
  %3863 = vmatprep.subr.mxu0 0.0
  %3864 = vmatpush1.msra.mxu0 0.0
  %3865 = vmatprep.subr.mxu0 0.0
  %3866 = vmatpush1.msra.mxu0 0.0
  %3867 = vmatprep.subr.mxu0 0.0
  %3868 = vmatpush1.msra.mxu0 0.0
  %3869 = vmatprep.subr.mxu0 0.0
  %3870 = vmatpush1.msra.mxu0 0.0
  %3871 = vmatprep.subr.mxu0 0.0
  %3872 = vmatpush1.msra.mxu0 0.0
  %3873 = vmatprep.subr.mxu0 0.0
  %3874 = vmatpush1.msra.mxu0 0.0
  %3875 = vmatprep.subr.mxu0 0.0
  %3876 = vmatpush1.msra.mxu0 0.0
  %3877 = vmatprep.subr.mxu0 0.0
  %3878 = vmatpush1.msra.mxu0 0.0
  %3879 = vmatprep.subr.mxu0 0.0
  %3880 = vmatpush1.msra.mxu0 0.0
  %3881 = vmatprep.subr.mxu0 0.0
  %3882 = vmatpush1.msra.mxu0 0.0
  %3883 = vmatprep.subr.mxu0 0.0
  %3884 = vmatpush1.msra.mxu0 0.0
  %3885 = vmatprep.subr.mxu0 0.0
  %3886 = vmatpush1.msra.mxu0 0.0
  %3887 = vmatprep.subr.mxu0 0.0
  %3888 = vmatpush1.msra.mxu0 0.0
  %3889 = vmatprep.subr.mxu0 0.0
  %3890 = vmatpush1.msra.mxu0 0.0
  %3891 = vmatprep.subr.mxu0 0.0
  %3892 = vmatpush1.msra.mxu0 0.0
  %3893 = vmatprep.subr.mxu0 0.0
  %3894 = vmatpush1.msra.mxu0 0.0
  %3895 = vmatprep.subr.mxu0 0.0
  %3896 = vmatpush1.msra.mxu0 0.0
  %3897 = vmatprep.subr.mxu0 0.0
  %3898 = vmatpush1.msra.mxu0 0.0
  %3899 = vmatprep.subr.mxu0 0.0
  %3900 = vmatpush1.msra.mxu0 0.0
  %3901 = vmatprep.subr.mxu0 0.0
  %3902 = vmatpush1.msra.mxu0 0.0
  %3903 = vmatprep.subr.mxu0 0.0
  %3904 = vmatpush1.msra.mxu0 0.0
  %3905 = vmatprep.subr.mxu0 0.0
  %3906 = vmatpush1.msra.mxu0 0.0
  %3907 = vmatprep.subr.mxu0 0.0
  %3908 = vmatpush1.msra.mxu0 0.0
  %3909 = vmatprep.mubr.f32.mxu0 0.0
  %3910 = vmatmul.mubr.f32.gmra.mrb[0].mxu0 %v3840
  %v3911 = vpop.f32.mrb[0].mxu0
  %v3912 = vadd.f32 0.0, %v3911
  %v3913 = vpop.f32.mrb[0].mxu0
  %3914 = vmatprep.mubr.f32.mxu0 0.0
  %3915 = vmatmul.mubr.f32.gmra.mrb[0].mxu0 %v3843
  %v3916 = vpop.f32.mrb[0].mxu0
  %v3917 = vadd.f32 0.0, %v3916
  %v3918 = vpop.f32.mrb[0].mxu0
  %3919 = vdwg.mxu0
  %3921 = vset.pattern.permute.xlu0 12
  %3922 = vperm.xlu0 %3921, %v3837
  %v3923 = vpop.permute.xlu0 %3922
  %3926 = vset.pattern.permute.xlu0 12
  %3927 = vperm.xlu0 %3926, %v3838
  %v3928 = vpop.permute.xlu0 %3927
  %v3930 = vsel %vm584, %v3837, 0
  %v3932 = vsel %vm584, %v3838, 0
  %v3935 = vsel %vm128, %v3917, 0
  %3937 = vmatprep.subr.mxu0 0.0
  %3938 = vmatpush1.msra.mxu0 %v3912
  %3939 = vmatprep.subr.mxu0 0.0
  %3940 = vmatpush1.msra.mxu0 %v3935
  %3941 = vmatprep.subr.mxu0 0.0
  %3942 = vmatpush1.msra.mxu0 0.0
  %3943 = vmatprep.subr.mxu0 0.0
  %3944 = vmatpush1.msra.mxu0 0.0
  %3945 = vmatprep.subr.mxu0 0.0
  %3946 = vmatpush1.msra.mxu0 0.0
  %3947 = vmatprep.subr.mxu0 0.0
  %3948 = vmatpush1.msra.mxu0 0.0
  %3949 = vmatprep.subr.mxu0 0.0
  %3950 = vmatpush1.msra.mxu0 0.0
  %3951 = vmatprep.subr.mxu0 0.0
  %3952 = vmatpush1.msra.mxu0 0.0
  %3953 = vmatprep.subr.mxu0 0.0
  %3954 = vmatpush1.msra.mxu0 0.0
  %3955 = vmatprep.subr.mxu0 0.0
  %3956 = vmatpush1.msra.mxu0 0.0
  %3957 = vmatprep.subr.mxu0 0.0
  %3958 = vmatpush1.msra.mxu0 0.0
  %3959 = vmatprep.subr.mxu0 0.0
  %3960 = vmatpush1.msra.mxu0 0.0
  %3961 = vmatprep.subr.mxu0 0.0
  %3962 = vmatpush1.msra.mxu0 0.0
  %3963 = vmatprep.subr.mxu0 0.0
  %3964 = vmatpush1.msra.mxu0 0.0
  %3965 = vmatprep.subr.mxu0 0.0
  %3966 = vmatpush1.msra.mxu0 0.0
  %3967 = vmatprep.subr.mxu0 0.0
  %3968 = vmatpush1.msra.mxu0 0.0
  %3969 = vmatprep.subr.mxu0 0.0
  %3970 = vmatpush1.msra.mxu0 0.0
  %3971 = vmatprep.subr.mxu0 0.0
  %3972 = vmatpush1.msra.mxu0 0.0
  %3973 = vmatprep.subr.mxu0 0.0
  %3974 = vmatpush1.msra.mxu0 0.0
  %3975 = vmatprep.subr.mxu0 0.0
  %3976 = vmatpush1.msra.mxu0 0.0
  %3977 = vmatprep.subr.mxu0 0.0
  %3978 = vmatpush1.msra.mxu0 0.0
  %3979 = vmatprep.subr.mxu0 0.0
  %3980 = vmatpush1.msra.mxu0 0.0
  %3981 = vmatprep.subr.mxu0 0.0
  %3982 = vmatpush1.msra.mxu0 0.0
  %3983 = vmatprep.subr.mxu0 0.0
  %3984 = vmatpush1.msra.mxu0 0.0
  %3985 = vmatprep.subr.mxu0 0.0
  %3986 = vmatpush1.msra.mxu0 0.0
  %3987 = vmatprep.subr.mxu0 0.0
  %3988 = vmatpush1.msra.mxu0 0.0
  %3989 = vmatprep.subr.mxu0 0.0
  %3990 = vmatpush1.msra.mxu0 0.0
  %3991 = vmatprep.subr.mxu0 0.0
  %3992 = vmatpush1.msra.mxu0 0.0
  %3993 = vmatprep.subr.mxu0 0.0
  %3994 = vmatpush1.msra.mxu0 0.0
  %3995 = vmatprep.subr.mxu0 0.0
  %3996 = vmatpush1.msra.mxu0 0.0
  %3997 = vmatprep.subr.mxu0 0.0
  %3998 = vmatpush1.msra.mxu0 0.0
  %3999 = vmatprep.subr.mxu0 0.0
  %4000 = vmatpush1.msra.mxu0 0.0
  %4001 = vmatprep.mubr.f32.mxu0 0.0
  %4002 = vmatmul.mubr.f32.gmra.mrb[0].mxu0 %v3930
  %v4003 = vpop.f32.mrb[0].mxu0
  %v4004 = vadd.f32 %v3923, %v4003
  %v4005 = vpop.f32.mrb[0].mxu0
  %4006 = vmatprep.mubr.f32.mxu0 0.0
  %4007 = vmatmul.mubr.f32.gmra.mrb[0].mxu0 %v3932
  %v4008 = vpop.f32.mrb[0].mxu0
  %v4009 = vadd.f32 %v3928, %v4008
  %v4010 = vpop.f32.mrb[0].mxu0
  %4011 = vdwg.mxu0
  %v4012 = vmax.f32 %v4004, 0.0
  %v4013 = vmax.f32 %v4009, 0.0
  %v4014 = vld [vmem:[%s2 + $0x640] sm:$0xff]
  %v4015 = vld [vmem:[%s2 + $0x650] sm:$0xff]
  %v4016 = vld [vmem:[%s2 + $0x660] sm:$0xff]
  %v4017 = vld [vmem:[%s2 + $0x670] sm:$0xff]
  %v4018 = vld [vmem:[%s2 + $0x680] sm:$0xff]
  %v4019 = vld [vmem:[%s2 + $0x690] sm:$0xff]
  %v4020 = vld [vmem:[%s2 + $0x6a0] sm:$0xff]
  %v4021 = vld [vmem:[%s2 + $0x6b0] sm:$0xff]
  %v4023 = vsel %vm179, %v4012, 0
  %v4026 = vsel %vm179, %v4013, 0
  %4028 = vmatprep.subr.mxu0 0.0
  %4029 = vmatpush1.msra.mxu0 %v4014
  %4030 = vmatprep.subr.mxu0 0.0
  %4031 = vmatpush1.msra.mxu0 %v4015
  %4032 = vmatprep.subr.mxu0 0.0
  %4033 = vmatpush1.msra.mxu0 %v4016
  %4034 = vmatprep.subr.mxu0 0.0
  %4035 = vmatpush1.msra.mxu0 %v4017
  %4036 = vmatprep.subr.mxu0 0.0
  %4037 = vmatpush1.msra.mxu0 %v4018
  %4038 = vmatprep.subr.mxu0 0.0
  %4039 = vmatpush1.msra.mxu0 %v4019
  %4040 = vmatprep.subr.mxu0 0.0
  %4041 = vmatpush1.msra.mxu0 %v4020
  %4042 = vmatprep.subr.mxu0 0.0
  %4043 = vmatpush1.msra.mxu0 %v4021
  %4044 = vmatprep.subr.mxu0 0.0
  %4045 = vmatpush1.msra.mxu0 0.0
  %4046 = vmatprep.subr.mxu0 0.0
  %4047 = vmatpush1.msra.mxu0 0.0
  %4048 = vmatprep.subr.mxu0 0.0
  %4049 = vmatpush1.msra.mxu0 0.0
  %4050 = vmatprep.subr.mxu0 0.0
  %4051 = vmatpush1.msra.mxu0 0.0
  %4052 = vmatprep.subr.mxu0 0.0
  %4053 = vmatpush1.msra.mxu0 0.0
  %4054 = vmatprep.subr.mxu0 0.0
  %4055 = vmatpush1.msra.mxu0 0.0
  %4056 = vmatprep.subr.mxu0 0.0
  %4057 = vmatpush1.msra.mxu0 0.0
  %4058 = vmatprep.subr.mxu0 0.0
  %4059 = vmatpush1.msra.mxu0 0.0
  %4060 = vmatprep.subr.mxu0 0.0
  %4061 = vmatpush1.msra.mxu0 0.0
  %4062 = vmatprep.subr.mxu0 0.0
  %4063 = vmatpush1.msra.mxu0 0.0
  %4064 = vmatprep.subr.mxu0 0.0
  %4065 = vmatpush1.msra.mxu0 0.0
  %4066 = vmatprep.subr.mxu0 0.0
  %4067 = vmatpush1.msra.mxu0 0.0
  %4068 = vmatprep.subr.mxu0 0.0
  %4069 = vmatpush1.msra.mxu0 0.0
  %4070 = vmatprep.subr.mxu0 0.0
  %4071 = vmatpush1.msra.mxu0 0.0
  %4072 = vmatprep.subr.mxu0 0.0
  %4073 = vmatpush1.msra.mxu0 0.0
  %4074 = vmatprep.subr.mxu0 0.0
  %4075 = vmatpush1.msra.mxu0 0.0
  %4076 = vmatprep.subr.mxu0 0.0
  %4077 = vmatpush1.msra.mxu0 0.0
  %4078 = vmatprep.subr.mxu0 0.0
  %4079 = vmatpush1.msra.mxu0 0.0
  %4080 = vmatprep.subr.mxu0 0.0
  %4081 = vmatpush1.msra.mxu0 0.0
  %4082 = vmatprep.subr.mxu0 0.0
  %4083 = vmatpush1.msra.mxu0 0.0
  %4084 = vmatprep.subr.mxu0 0.0
  %4085 = vmatpush1.msra.mxu0 0.0
  %4086 = vmatprep.subr.mxu0 0.0
  %4087 = vmatpush1.msra.mxu0 0.0
  %4088 = vmatprep.subr.mxu0 0.0
  %4089 = vmatpush1.msra.mxu0 0.0
  %4090 = vmatprep.subr.mxu0 0.0
  %4091 = vmatpush1.msra.mxu0 0.0
  %4092 = vmatprep.mubr.f32.mxu0 0.0
  %4093 = vmatmul.mubr.f32.gmra.mrb[0].mxu0 %v4023
  %v4094 = vpop.f32.mrb[0].mxu0
  %v4095 = vadd.f32 0.0, %v4094
  %v4096 = vpop.f32.mrb[0].mxu0
  %4097 = vmatprep.mubr.f32.mxu0 0.0
  %4098 = vmatmul.mubr.f32.gmra.mrb[0].mxu0 %v4026
  %v4099 = vpop.f32.mrb[0].mxu0
  %v4100 = vadd.f32 0.0, %v4099
  %v4101 = vpop.f32.mrb[0].mxu0
  %4102 = vdwg.mxu0
  %v4103 = vmul.f32 %v4095, %v4095
  %v4104 = vmul.f32 %v4100, %v4100
  %v4107 = vrot.slane %v4103, 4
  %v4108 = vrot.slane %v4104, 4
  %v4109 = vsel %vm128, %v4107, %v4108
  %v4112 = vsel %vm128, %v4100, %v4107
  %4113 = vmatprep.subr.mxu0 0.0
  %4114 = vmatpush1.msra.mxu0 %v866
  %4115 = vmatprep.subr.mxu0 0.0
  %4116 = vmatpush1.msra.mxu0 %v867
  %4117 = vmatprep.subr.mxu0 0.0
  %4118 = vmatpush1.msra.mxu0 %v868
  %4119 = vmatprep.subr.mxu0 0.0
  %4120 = vmatpush1.msra.mxu0 %v869
  %4121 = vmatprep.subr.mxu0 0.0
  %4122 = vmatpush1.msra.mxu0 %v870
  %4123 = vmatprep.subr.mxu0 0.0
  %4124 = vmatpush1.msra.mxu0 %v871
  %4125 = vmatprep.subr.mxu0 0.0
  %4126 = vmatpush1.msra.mxu0 %v872
  %4127 = vmatprep.subr.mxu0 0.0
  %4128 = vmatpush1.msra.mxu0 %v873
  %4129 = vmatprep.subr.mxu0 0.0
  %4130 = vmatpush1.msra.mxu0 %v874
  %4131 = vmatprep.subr.mxu0 0.0
  %4132 = vmatpush1.msra.mxu0 %v875
  %4133 = vmatprep.subr.mxu0 0.0
  %4134 = vmatpush1.msra.mxu0 %v876
  %4135 = vmatprep.subr.mxu0 0.0
  %4136 = vmatpush1.msra.mxu0 %v877
  %4137 = vmatprep.subr.mxu0 0.0
  %4138 = vmatpush1.msra.mxu0 %v878
  %4139 = vmatprep.subr.mxu0 0.0
  %4140 = vmatpush1.msra.mxu0 %v879
  %4141 = vmatprep.subr.mxu0 0.0
  %4142 = vmatpush1.msra.mxu0 %v880
  %4143 = vmatprep.subr.mxu0 0.0
  %4144 = vmatpush1.msra.mxu0 %v881
  %4145 = vmatprep.subr.mxu0 0.0
  %4146 = vmatpush1.msra.mxu0 0.0
  %4147 = vmatprep.subr.mxu0 0.0
  %4148 = vmatpush1.msra.mxu0 0.0
  %4149 = vmatprep.subr.mxu0 0.0
  %4150 = vmatpush1.msra.mxu0 0.0
  %4151 = vmatprep.subr.mxu0 0.0
  %4152 = vmatpush1.msra.mxu0 0.0
  %4153 = vmatprep.subr.mxu0 0.0
  %4154 = vmatpush1.msra.mxu0 0.0
  %4155 = vmatprep.subr.mxu0 0.0
  %4156 = vmatpush1.msra.mxu0 0.0
  %4157 = vmatprep.subr.mxu0 0.0
  %4158 = vmatpush1.msra.mxu0 0.0
  %4159 = vmatprep.subr.mxu0 0.0
  %4160 = vmatpush1.msra.mxu0 0.0
  %4161 = vmatprep.subr.mxu0 0.0
  %4162 = vmatpush1.msra.mxu0 0.0
  %4163 = vmatprep.subr.mxu0 0.0
  %4164 = vmatpush1.msra.mxu0 0.0
  %4165 = vmatprep.subr.mxu0 0.0
  %4166 = vmatpush1.msra.mxu0 0.0
  %4167 = vmatprep.subr.mxu0 0.0
  %4168 = vmatpush1.msra.mxu0 0.0
  %4169 = vmatprep.subr.mxu0 0.0
  %4170 = vmatpush1.msra.mxu0 0.0
  %4171 = vmatprep.subr.mxu0 0.0
  %4172 = vmatpush1.msra.mxu0 0.0
  %4173 = vmatprep.subr.mxu0 0.0
  %4174 = vmatpush1.msra.mxu0 0.0
  %4175 = vmatprep.subr.mxu0 0.0
  %4176 = vmatpush1.msra.mxu0 0.0
  %4177 = vmatprep.mubr.f32.mxu0 0.0
  %4178 = vmatmul.mubr.f32.gmra.mrb[0].mxu0 %v4095
  %v4179 = vpop.f32.mrb[0].mxu0
  %v4180 = vadd.f32 0.0, %v4179
  %v4181 = vpop.f32.mrb[0].mxu0
  %4182 = vmatprep.mubr.f32.mxu0 0.0
  %4183 = vmatmul.mubr.f32.gmra.mrb[0].mxu0 %v4112
  %v4184 = vpop.f32.mrb[0].mxu0
  %v4185 = vadd.f32 0.0, %v4184
  %v4186 = vpop.f32.mrb[0].mxu0
  %4187 = vmatprep.mubr.f32.mxu0 0.0
  %4188 = vmatmul.mubr.f32.gmra.mrb[0].mxu0 %v4109
  %v4189 = vpop.f32.mrb[0].mxu0
  %v4190 = vadd.f32 0.0, %v4189
  %v4191 = vpop.f32.mrb[0].mxu0
  %4192 = vdwg.mxu0
  %v4193 = vmul.f32 %v4180, %v4180
  %v4194 = vmul.f32 %v4185, %v4185
  %v4197 = vrot.slane %v4193, 4
  %v4198 = vrot.slane %v4194, 4
  %v4199 = vsel %vm128, %v4197, %v4198
  %v4202 = vsub.f32 %v4185, %v4197
  %v4203 = vsub.f32 %v4190, %v4199
  %v4204 = vmax.f32 %v4202, 0.0
  %v4205 = vmax.f32 %v4203, 0.0
  %v4206 = vsub.f32 %v4095, %v4180
  %v4207 = vsub.f32 %v4100, %v4185
  %v4208 = vadd.f32 %v4204, 1e-05
  %v4209 = vadd.f32 %v4205, 1e-05
  %v4210 = vrsqrt.pop %v4208
  %v4211 = vrsqrt.pop %v4209
  %v4214 = vrot.slane %v4210, 4
  %v4215 = vrot.slane %v4211, 4
  %v4216 = vsel %vm128, %v4214, %v4215
  %v4219 = vmul.f32 %v4206, %v4216
  %v4220 = vmul.f32 %v4207, %v4215
  %v4223 = vrot.slane %v988, 4
  %v4224 = vrot.slane %v989, 4
  %v4225 = vsel %vm128, %v4223, %v4224
  %v4228 = vsel %vm128, %v4220, %v4223
  %v4229 = vld [vmem:[%s2 + $0xdf0] sm:$0xff]
  %v4230 = vld [vmem:[%s2 + $0xe00] sm:$0xf]
  %4231 = vmatprep.subr.mxu0 0.0
  %4232 = vmatpush1.msra.mxu0 %v671
  %4233 = vmatprep.subr.mxu0 0.0
  %4234 = vmatpush1.msra.mxu0 %v672
  %4235 = vmatprep.subr.mxu0 0.0
  %4236 = vmatpush1.msra.mxu0 %v673
  %4237 = vmatprep.subr.mxu0 0.0
  %4238 = vmatpush1.msra.mxu0 %v674
  %4239 = vmatprep.subr.mxu0 0.0
  %4240 = vmatpush1.msra.mxu0 %v675
  %4241 = vmatprep.subr.mxu0 0.0
  %4242 = vmatpush1.msra.mxu0 %v676
  %4243 = vmatprep.subr.mxu0 0.0
  %4244 = vmatpush1.msra.mxu0 %v677
  %4245 = vmatprep.subr.mxu0 0.0
  %4246 = vmatpush1.msra.mxu0 %v678
  %4247 = vmatprep.subr.mxu0 0.0
  %4248 = vmatpush1.msra.mxu0 %v679
  %4249 = vmatprep.subr.mxu0 0.0
  %4250 = vmatpush1.msra.mxu0 %v680
  %4251 = vmatprep.subr.mxu0 0.0
  %4252 = vmatpush1.msra.mxu0 %v681
  %4253 = vmatprep.subr.mxu0 0.0
  %4254 = vmatpush1.msra.mxu0 %v682
  %4255 = vmatprep.subr.mxu0 0.0
  %4256 = vmatpush1.msra.mxu0 %v683
  %4257 = vmatprep.subr.mxu0 0.0
  %4258 = vmatpush1.msra.mxu0 %v684
  %4259 = vmatprep.subr.mxu0 0.0
  %4260 = vmatpush1.msra.mxu0 %v685
  %4261 = vmatprep.subr.mxu0 0.0
  %4262 = vmatpush1.msra.mxu0 %v686
  %4263 = vmatprep.subr.mxu0 0.0
  %4264 = vmatpush1.msra.mxu0 0.0
  %4265 = vmatprep.subr.mxu0 0.0
  %4266 = vmatpush1.msra.mxu0 0.0
  %4267 = vmatprep.subr.mxu0 0.0
  %4268 = vmatpush1.msra.mxu0 0.0
  %4269 = vmatprep.subr.mxu0 0.0
  %4270 = vmatpush1.msra.mxu0 0.0
  %4271 = vmatprep.subr.mxu0 0.0
  %4272 = vmatpush1.msra.mxu0 0.0
  %4273 = vmatprep.subr.mxu0 0.0
  %4274 = vmatpush1.msra.mxu0 0.0
  %4275 = vmatprep.subr.mxu0 0.0
  %4276 = vmatpush1.msra.mxu0 0.0
  %4277 = vmatprep.subr.mxu0 0.0
  %4278 = vmatpush1.msra.mxu0 0.0
  %4279 = vmatprep.subr.mxu0 0.0
  %4280 = vmatpush1.msra.mxu0 0.0
  %4281 = vmatprep.subr.mxu0 0.0
  %4282 = vmatpush1.msra.mxu0 0.0
  %4283 = vmatprep.subr.mxu0 0.0
  %4284 = vmatpush1.msra.mxu0 0.0
  %4285 = vmatprep.subr.mxu0 0.0
  %4286 = vmatpush1.msra.mxu0 0.0
  %4287 = vmatprep.subr.mxu0 0.0
  %4288 = vmatpush1.msra.mxu0 0.0
  %4289 = vmatprep.subr.mxu0 0.0
  %4290 = vmatpush1.msra.mxu0 0.0
  %4291 = vmatprep.subr.mxu0 0.0
  %4292 = vmatpush1.msra.mxu0 0.0
  %4293 = vmatprep.subr.mxu0 0.0
  %4294 = vmatpush1.msra.mxu0 0.0
  %4295 = vmatprep.mubr.f32.mxu0 0.0
  %4296 = vmatmul.mubr.f32.gmra.mrb[0].mxu0 %v4219
  %v4297 = vpop.f32.mrb[0].mxu0
  %v4298 = vadd.f32 0.0, %v4297
  %v4299 = vpop.f32.mrb[0].mxu0
  %4300 = vmatprep.mubr.f32.mxu0 0.0
  %4301 = vmatmul.mubr.f32.gmra.mrb[0].mxu0 %v4228
  %v4302 = vpop.f32.mrb[0].mxu0
  %v4303 = vadd.f32 0.0, %v4302
  %v4304 = vpop.f32.mrb[0].mxu0
  %4305 = vmatprep.mubr.f32.mxu0 0.0
  %4306 = vmatmul.mubr.f32.gmra.mrb[0].mxu0 %v4225
  %v4307 = vpop.f32.mrb[0].mxu0
  %v4308 = vadd.f32 0.0, %v4307
  %v4309 = vpop.f32.mrb[0].mxu0
  %4310 = vdwg.mxu0
  %4312 = vset.pattern.permute.xlu0 24
  %4313 = vperm.xlu0 %4312, %v4229
  %v4314 = vpop.permute.xlu0 %4313
  %4317 = vset.pattern.permute.xlu0 24
  %4318 = vperm.xlu0 %4317, %v4230
  %v4319 = vpop.permute.xlu0 %4318
  %v4321 = vsel %vm2296, %v4229, 0
  %v4323 = vsel %vm2296, %v4230, 0
  %4325 = vmatprep.subr.mxu0 0.0
  %4326 = vmatpush1.msra.mxu0 %v4298
  %4327 = vmatprep.subr.mxu0 0.0
  %4328 = vmatpush1.msra.mxu0 %v4303
  %4329 = vmatprep.subr.mxu0 0.0
  %4330 = vmatpush1.msra.mxu0 %v4308
  %4331 = vmatprep.subr.mxu0 0.0
  %4332 = vmatpush1.msra.mxu0 0.0
  %4333 = vmatprep.subr.mxu0 0.0
  %4334 = vmatpush1.msra.mxu0 0.0
  %4335 = vmatprep.subr.mxu0 0.0
  %4336 = vmatpush1.msra.mxu0 0.0
  %4337 = vmatprep.subr.mxu0 0.0
  %4338 = vmatpush1.msra.mxu0 0.0
  %4339 = vmatprep.subr.mxu0 0.0
  %4340 = vmatpush1.msra.mxu0 0.0
  %4341 = vmatprep.subr.mxu0 0.0
  %4342 = vmatpush1.msra.mxu0 0.0
  %4343 = vmatprep.subr.mxu0 0.0
  %4344 = vmatpush1.msra.mxu0 0.0
  %4345 = vmatprep.subr.mxu0 0.0
  %4346 = vmatpush1.msra.mxu0 0.0
  %4347 = vmatprep.subr.mxu0 0.0
  %4348 = vmatpush1.msra.mxu0 0.0
  %4349 = vmatprep.subr.mxu0 0.0
  %4350 = vmatpush1.msra.mxu0 0.0
  %4351 = vmatprep.subr.mxu0 0.0
  %4352 = vmatpush1.msra.mxu0 0.0
  %4353 = vmatprep.subr.mxu0 0.0
  %4354 = vmatpush1.msra.mxu0 0.0
  %4355 = vmatprep.subr.mxu0 0.0
  %4356 = vmatpush1.msra.mxu0 0.0
  %4357 = vmatprep.subr.mxu0 0.0
  %4358 = vmatpush1.msra.mxu0 0.0
  %4359 = vmatprep.subr.mxu0 0.0
  %4360 = vmatpush1.msra.mxu0 0.0
  %4361 = vmatprep.subr.mxu0 0.0
  %4362 = vmatpush1.msra.mxu0 0.0
  %4363 = vmatprep.subr.mxu0 0.0
  %4364 = vmatpush1.msra.mxu0 0.0
  %4365 = vmatprep.subr.mxu0 0.0
  %4366 = vmatpush1.msra.mxu0 0.0
  %4367 = vmatprep.subr.mxu0 0.0
  %4368 = vmatpush1.msra.mxu0 0.0
  %4369 = vmatprep.subr.mxu0 0.0
  %4370 = vmatpush1.msra.mxu0 0.0
  %4371 = vmatprep.subr.mxu0 0.0
  %4372 = vmatpush1.msra.mxu0 0.0
  %4373 = vmatprep.subr.mxu0 0.0
  %4374 = vmatpush1.msra.mxu0 0.0
  %4375 = vmatprep.subr.mxu0 0.0
  %4376 = vmatpush1.msra.mxu0 0.0
  %4377 = vmatprep.subr.mxu0 0.0
  %4378 = vmatpush1.msra.mxu0 0.0
  %4379 = vmatprep.subr.mxu0 0.0
  %4380 = vmatpush1.msra.mxu0 0.0
  %4381 = vmatprep.subr.mxu0 0.0
  %4382 = vmatpush1.msra.mxu0 0.0
  %4383 = vmatprep.subr.mxu0 0.0
  %4384 = vmatpush1.msra.mxu0 0.0
  %4385 = vmatprep.subr.mxu0 0.0
  %4386 = vmatpush1.msra.mxu0 0.0
  %4387 = vmatprep.subr.mxu0 0.0
  %4388 = vmatpush1.msra.mxu0 0.0
  %4389 = vmatprep.mubr.f32.mxu0 0.0
  %4390 = vmatmul.mubr.f32.gmra.mrb[0].mxu0 %v4321
  %v4391 = vpop.f32.mrb[0].mxu0
  %v4392 = vadd.f32 %v4314, %v4391
  %v4393 = vpop.f32.mrb[0].mxu0
  %4394 = vmatprep.mubr.f32.mxu0 0.0
  %4395 = vmatmul.mubr.f32.gmra.mrb[0].mxu0 %v4323
  %v4396 = vpop.f32.mrb[0].mxu0
  %v4397 = vadd.f32 %v4319, %v4396
  %v4398 = vpop.f32.mrb[0].mxu0
  %4399 = vdwg.mxu0
  %v4400 = vmax.f32 %v4392, 0.0
  %v4401 = vmax.f32 %v4397, 0.0
  %v4402 = vld [vmem:[%s2 + $0xe10] sm:$0xff]
  %v4403 = vld [vmem:[%s2 + $0xe20] sm:$0xf]
  %v4404 = vld [vmem:[%s2 + $0x6c0] sm:$0xff]
  %v4405 = vld [vmem:[%s2 + $0x6d0] sm:$0xff]
  %v4406 = vld [vmem:[%s2 + $0x6e0] sm:$0xff]
  %v4407 = vld [vmem:[%s2 + $0x6f0] sm:$0xff]
  %v4408 = vld [vmem:[%s2 + $0x700] sm:$0xff]
  %v4409 = vld [vmem:[%s2 + $0x710] sm:$0xff]
  %v4410 = vld [vmem:[%s2 + $0x720] sm:$0xff]
  %v4411 = vld [vmem:[%s2 + $0x730] sm:$0xff]
  %v4412 = vld [vmem:[%s2 + $0x740] sm:$0xff]
  %v4413 = vld [vmem:[%s2 + $0x750] sm:$0xff]
  %v4414 = vld [vmem:[%s2 + $0x760] sm:$0xff]
  %v4415 = vld [vmem:[%s2 + $0x770] sm:$0xff]
  %v4416 = vld [vmem:[%s2 + $0x780] sm:$0xff]
  %v4417 = vld [vmem:[%s2 + $0x790] sm:$0xff]
  %v4418 = vld [vmem:[%s2 + $0x7a0] sm:$0xff]
  %v4419 = vld [vmem:[%s2 + $0x7b0] sm:$0xff]
  %4420 = vmatprep.subr.mxu0 0.0
  %4421 = vmatpush1.msra.mxu0 %v4404
  %4422 = vmatprep.subr.mxu0 0.0
  %4423 = vmatpush1.msra.mxu0 %v4405
  %4424 = vmatprep.subr.mxu0 0.0
  %4425 = vmatpush1.msra.mxu0 %v4406
  %4426 = vmatprep.subr.mxu0 0.0
  %4427 = vmatpush1.msra.mxu0 %v4407
  %4428 = vmatprep.subr.mxu0 0.0
  %4429 = vmatpush1.msra.mxu0 %v4408
  %4430 = vmatprep.subr.mxu0 0.0
  %4431 = vmatpush1.msra.mxu0 %v4409
  %4432 = vmatprep.subr.mxu0 0.0
  %4433 = vmatpush1.msra.mxu0 %v4410
  %4434 = vmatprep.subr.mxu0 0.0
  %4435 = vmatpush1.msra.mxu0 %v4411
  %4436 = vmatprep.subr.mxu0 0.0
  %4437 = vmatpush1.msra.mxu0 %v4412
  %4438 = vmatprep.subr.mxu0 0.0
  %4439 = vmatpush1.msra.mxu0 %v4413
  %4440 = vmatprep.subr.mxu0 0.0
  %4441 = vmatpush1.msra.mxu0 %v4414
  %4442 = vmatprep.subr.mxu0 0.0
  %4443 = vmatpush1.msra.mxu0 %v4415
  %4444 = vmatprep.subr.mxu0 0.0
  %4445 = vmatpush1.msra.mxu0 %v4416
  %4446 = vmatprep.subr.mxu0 0.0
  %4447 = vmatpush1.msra.mxu0 %v4417
  %4448 = vmatprep.subr.mxu0 0.0
  %4449 = vmatpush1.msra.mxu0 %v4418
  %4450 = vmatprep.subr.mxu0 0.0
  %4451 = vmatpush1.msra.mxu0 %v4419
  %4452 = vmatprep.subr.mxu0 0.0
  %4453 = vmatpush1.msra.mxu0 0.0
  %4454 = vmatprep.subr.mxu0 0.0
  %4455 = vmatpush1.msra.mxu0 0.0
  %4456 = vmatprep.subr.mxu0 0.0
  %4457 = vmatpush1.msra.mxu0 0.0
  %4458 = vmatprep.subr.mxu0 0.0
  %4459 = vmatpush1.msra.mxu0 0.0
  %4460 = vmatprep.subr.mxu0 0.0
  %4461 = vmatpush1.msra.mxu0 0.0
  %4462 = vmatprep.subr.mxu0 0.0
  %4463 = vmatpush1.msra.mxu0 0.0
  %4464 = vmatprep.subr.mxu0 0.0
  %4465 = vmatpush1.msra.mxu0 0.0
  %4466 = vmatprep.subr.mxu0 0.0
  %4467 = vmatpush1.msra.mxu0 0.0
  %4468 = vmatprep.subr.mxu0 0.0
  %4469 = vmatpush1.msra.mxu0 0.0
  %4470 = vmatprep.subr.mxu0 0.0
  %4471 = vmatpush1.msra.mxu0 0.0
  %4472 = vmatprep.subr.mxu0 0.0
  %4473 = vmatpush1.msra.mxu0 0.0
  %4474 = vmatprep.subr.mxu0 0.0
  %4475 = vmatpush1.msra.mxu0 0.0
  %4476 = vmatprep.subr.mxu0 0.0
  %4477 = vmatpush1.msra.mxu0 0.0
  %4478 = vmatprep.subr.mxu0 0.0
  %4479 = vmatpush1.msra.mxu0 0.0
  %4480 = vmatprep.subr.mxu0 0.0
  %4481 = vmatpush1.msra.mxu0 0.0
  %4482 = vmatprep.subr.mxu0 0.0
  %4483 = vmatpush1.msra.mxu0 0.0
  %4484 = vmatprep.mubr.f32.mxu0 0.0
  %4485 = vmatmul.mubr.f32.gmra.mrb[0].mxu0 %v4400
  %v4486 = vpop.f32.mrb[0].mxu0
  %v4487 = vadd.f32 0.0, %v4486
  %v4488 = vpop.f32.mrb[0].mxu0
  %4489 = vmatprep.mubr.f32.mxu0 0.0
  %4490 = vmatmul.mubr.f32.gmra.mrb[0].mxu0 %v4401
  %v4491 = vpop.f32.mrb[0].mxu0
  %v4492 = vadd.f32 0.0, %v4491
  %v4493 = vpop.f32.mrb[0].mxu0
  %4494 = vdwg.mxu0
  %4496 = vset.pattern.permute.xlu0 12
  %4497 = vperm.xlu0 %4496, %v4402
  %v4498 = vpop.permute.xlu0 %4497
  %4501 = vset.pattern.permute.xlu0 12
  %4502 = vperm.xlu0 %4501, %v4403
  %v4503 = vpop.permute.xlu0 %4502
  %v4505 = vsel %vm584, %v4402, 0
  %v4507 = vsel %vm584, %v4403, 0
  %v4510 = vsel %vm128, %v4492, 0
  %4512 = vmatprep.subr.mxu0 0.0
  %4513 = vmatpush1.msra.mxu0 %v4487
  %4514 = vmatprep.subr.mxu0 0.0
  %4515 = vmatpush1.msra.mxu0 %v4510
  %4516 = vmatprep.subr.mxu0 0.0
  %4517 = vmatpush1.msra.mxu0 0.0
  %4518 = vmatprep.subr.mxu0 0.0
  %4519 = vmatpush1.msra.mxu0 0.0
  %4520 = vmatprep.subr.mxu0 0.0
  %4521 = vmatpush1.msra.mxu0 0.0
  %4522 = vmatprep.subr.mxu0 0.0
  %4523 = vmatpush1.msra.mxu0 0.0
  %4524 = vmatprep.subr.mxu0 0.0
  %4525 = vmatpush1.msra.mxu0 0.0
  %4526 = vmatprep.subr.mxu0 0.0
  %4527 = vmatpush1.msra.mxu0 0.0
  %4528 = vmatprep.subr.mxu0 0.0
  %4529 = vmatpush1.msra.mxu0 0.0
  %4530 = vmatprep.subr.mxu0 0.0
  %4531 = vmatpush1.msra.mxu0 0.0
  %4532 = vmatprep.subr.mxu0 0.0
  %4533 = vmatpush1.msra.mxu0 0.0
  %4534 = vmatprep.subr.mxu0 0.0
  %4535 = vmatpush1.msra.mxu0 0.0
  %4536 = vmatprep.subr.mxu0 0.0
  %4537 = vmatpush1.msra.mxu0 0.0
  %4538 = vmatprep.subr.mxu0 0.0
  %4539 = vmatpush1.msra.mxu0 0.0
  %4540 = vmatprep.subr.mxu0 0.0
  %4541 = vmatpush1.msra.mxu0 0.0
  %4542 = vmatprep.subr.mxu0 0.0
  %4543 = vmatpush1.msra.mxu0 0.0
  %4544 = vmatprep.subr.mxu0 0.0
  %4545 = vmatpush1.msra.mxu0 0.0
  %4546 = vmatprep.subr.mxu0 0.0
  %4547 = vmatpush1.msra.mxu0 0.0
  %4548 = vmatprep.subr.mxu0 0.0
  %4549 = vmatpush1.msra.mxu0 0.0
  %4550 = vmatprep.subr.mxu0 0.0
  %4551 = vmatpush1.msra.mxu0 0.0
  %4552 = vmatprep.subr.mxu0 0.0
  %4553 = vmatpush1.msra.mxu0 0.0
  %4554 = vmatprep.subr.mxu0 0.0
  %4555 = vmatpush1.msra.mxu0 0.0
  %4556 = vmatprep.subr.mxu0 0.0
  %4557 = vmatpush1.msra.mxu0 0.0
  %4558 = vmatprep.subr.mxu0 0.0
  %4559 = vmatpush1.msra.mxu0 0.0
  %4560 = vmatprep.subr.mxu0 0.0
  %4561 = vmatpush1.msra.mxu0 0.0
  %4562 = vmatprep.subr.mxu0 0.0
  %4563 = vmatpush1.msra.mxu0 0.0
  %4564 = vmatprep.subr.mxu0 0.0
  %4565 = vmatpush1.msra.mxu0 0.0
  %4566 = vmatprep.subr.mxu0 0.0
  %4567 = vmatpush1.msra.mxu0 0.0
  %4568 = vmatprep.subr.mxu0 0.0
  %4569 = vmatpush1.msra.mxu0 0.0
  %4570 = vmatprep.subr.mxu0 0.0
  %4571 = vmatpush1.msra.mxu0 0.0
  %4572 = vmatprep.subr.mxu0 0.0
  %4573 = vmatpush1.msra.mxu0 0.0
  %4574 = vmatprep.subr.mxu0 0.0
  %4575 = vmatpush1.msra.mxu0 0.0
  %4576 = vmatprep.mubr.f32.mxu0 0.0
  %4577 = vmatmul.mubr.f32.gmra.mrb[0].mxu0 %v4505
  %v4578 = vpop.f32.mrb[0].mxu0
  %v4579 = vadd.f32 %v4498, %v4578
  %v4580 = vpop.f32.mrb[0].mxu0
  %4581 = vmatprep.mubr.f32.mxu0 0.0
  %4582 = vmatmul.mubr.f32.gmra.mrb[0].mxu0 %v4507
  %v4583 = vpop.f32.mrb[0].mxu0
  %v4584 = vadd.f32 %v4503, %v4583
  %v4585 = vpop.f32.mrb[0].mxu0
  %4586 = vdwg.mxu0
  %v4587 = vmax.f32 %v4579, 0.0
  %v4588 = vmax.f32 %v4584, 0.0
  %v4589 = vld [vmem:[%s2 + $0xe30] ss:$0 sm:$0xff]
  %4591 = vset.pattern.permute.xlu0 12
  %4592 = vperm.xlu0 %4591, %v4589
  %v4593 = vpop.permute.xlu0 %4592
  %v4595 = vsel %vm584, %v4589, 0
  %v4598 = vsel %vm128, %v4588, 0
  %4600 = vmatprep.subr.mxu0 0.0
  %4601 = vmatpush1.msra.mxu0 %v4587
  %4602 = vmatprep.subr.mxu0 0.0
  %4603 = vmatpush1.msra.mxu0 %v4598
  %4604 = vmatprep.subr.mxu0 0.0
  %4605 = vmatpush1.msra.mxu0 0.0
  %4606 = vmatprep.subr.mxu0 0.0
  %4607 = vmatpush1.msra.mxu0 0.0
  %4608 = vmatprep.subr.mxu0 0.0
  %4609 = vmatpush1.msra.mxu0 0.0
  %4610 = vmatprep.subr.mxu0 0.0
  %4611 = vmatpush1.msra.mxu0 0.0
  %4612 = vmatprep.subr.mxu0 0.0
  %4613 = vmatpush1.msra.mxu0 0.0
  %4614 = vmatprep.subr.mxu0 0.0
  %4615 = vmatpush1.msra.mxu0 0.0
  %4616 = vmatprep.subr.mxu0 0.0
  %4617 = vmatpush1.msra.mxu0 0.0
  %4618 = vmatprep.subr.mxu0 0.0
  %4619 = vmatpush1.msra.mxu0 0.0
  %4620 = vmatprep.subr.mxu0 0.0
  %4621 = vmatpush1.msra.mxu0 0.0
  %4622 = vmatprep.subr.mxu0 0.0
  %4623 = vmatpush1.msra.mxu0 0.0
  %4624 = vmatprep.subr.mxu0 0.0
  %4625 = vmatpush1.msra.mxu0 0.0
  %4626 = vmatprep.subr.mxu0 0.0
  %4627 = vmatpush1.msra.mxu0 0.0
  %4628 = vmatprep.subr.mxu0 0.0
  %4629 = vmatpush1.msra.mxu0 0.0
  %4630 = vmatprep.subr.mxu0 0.0
  %4631 = vmatpush1.msra.mxu0 0.0
  %4632 = vmatprep.subr.mxu0 0.0
  %4633 = vmatpush1.msra.mxu0 0.0
  %4634 = vmatprep.subr.mxu0 0.0
  %4635 = vmatpush1.msra.mxu0 0.0
  %4636 = vmatprep.subr.mxu0 0.0
  %4637 = vmatpush1.msra.mxu0 0.0
  %4638 = vmatprep.subr.mxu0 0.0
  %4639 = vmatpush1.msra.mxu0 0.0
  %4640 = vmatprep.subr.mxu0 0.0
  %4641 = vmatpush1.msra.mxu0 0.0
  %4642 = vmatprep.subr.mxu0 0.0
  %4643 = vmatpush1.msra.mxu0 0.0
  %4644 = vmatprep.subr.mxu0 0.0
  %4645 = vmatpush1.msra.mxu0 0.0
  %4646 = vmatprep.subr.mxu0 0.0
  %4647 = vmatpush1.msra.mxu0 0.0
  %4648 = vmatprep.subr.mxu0 0.0
  %4649 = vmatpush1.msra.mxu0 0.0
  %4650 = vmatprep.subr.mxu0 0.0
  %4651 = vmatpush1.msra.mxu0 0.0
  %4652 = vmatprep.subr.mxu0 0.0
  %4653 = vmatpush1.msra.mxu0 0.0
  %4654 = vmatprep.subr.mxu0 0.0
  %4655 = vmatpush1.msra.mxu0 0.0
  %4656 = vmatprep.subr.mxu0 0.0
  %4657 = vmatpush1.msra.mxu0 0.0
  %4658 = vmatprep.subr.mxu0 0.0
  %4659 = vmatpush1.msra.mxu0 0.0
  %4660 = vmatprep.subr.mxu0 0.0
  %4661 = vmatpush1.msra.mxu0 0.0
  %4662 = vmatprep.subr.mxu0 0.0
  %4663 = vmatpush1.msra.mxu0 0.0
  %4664 = vmatprep.mubr.f32.mxu0 0.0
  %4665 = vmatmul.mubr.f32.gmra.mrb[0].mxu0 %v4595
  %v4666 = vpop.f32.mrb[0].mxu0
  %v4667 = vadd.f32 %v4593, %v4666
  %v4668 = vpop.f32.mrb[0].mxu0
  %4669 = vdwg.mxu0
  %vm4670 = vcmask 778240
  %4671 = vst.msk [vmem:[%s3] sm:$0x1] %vm4670, %v4667
  // Predicated region
  $region14: #{graph_unet_forward.1} parent=0 // pred_check
    _
  $region15: #{graph_unet_forward.1} parent=0 // pred_check_branch
    %4673 = sbr.rel (0) target = $region17
  $region16: #{graph_unet_forward.1} parent=0 // pred_region
    _
  $region17: #{graph_unet_forward.1} parent=0 // pred_fallthru
    _
  // Predicated region
  $region18: #{graph_unet_forward.1} parent=0 // pred_check
    _
  $region19: #{graph_unet_forward.1} parent=0 // pred_check_branch
    %4675 = sbr.rel (0) target = $region21
  $region20: #{graph_unet_forward.1} parent=0 // pred_region
    _
  $region21: #{graph_unet_forward.1} parent=0 // pred_fallthru
    _

</llo_original>
